<compile_context>
chip_gen: v7x
topology: tpu7x:2x2x1
jax: 0.10.0
libtpu: 0.0.40
codegen_flags: <defaults>
</compile_context>

<pallas_src>
import jax
import jax.numpy as jnp
from jax.experimental import pallas as pl
from jax.experimental.pallas import tpu as pltpu


# --------------------------------------------------------------------------
# kernel
# --------------------------------------------------------------------------
def _make_kernel(d: int, l_tile: int, e_tile: int, compute_dtype):
    # Tokens are iterated in 128-lane groups: one aligned (e_tile, 128) mask
    # load per group, then a static per-token unroll inside the group.
    grp = 128 if (l_tile % 128 == 0) else l_tile
    n_grp = l_tile // grp

    def kernel(doc_ref, emap_ref, lens_ref, max_ref, mean_ref, max_acc, sum_acc):
        l = pl.program_id(2)

        @pl.when(l == 0)
        def _init():
            max_acc[...] = jnp.full(max_acc.shape, -jnp.inf, dtype=max_acc.dtype)
            sum_acc[...] = jnp.zeros(sum_acc.shape, dtype=sum_acc.dtype)

        # ---- mean path: contract the token axis on the MXU, f32 accumulate.
        # (mask is 0/1 so a bf16 mask x bf16 doc is exact; wrapper casts the
        # mask to doc dtype so bf16 inputs hit the fast MXU path.)
        sum_acc[...] += jnp.dot(emap_ref[0], doc_ref[0],
                                preferred_element_type=jnp.float32)

        # ---- max path: per-token running maximum.  Each step broadcasts one
        # mask column against one doc row and maxes into (e_tile, d); the
        # token loop is only an unroll factor, never a materialized axis.
        run_max = jnp.full((e_tile, d), -jnp.inf, dtype=compute_dtype)
        for g in range(n_grp):
            g0 = g * grp
            e_grp = emap_ref[0, :, g0:g0 + grp].astype(compute_dtype)  # (e_tile, grp)
            for j in range(grp):
                e_col = e_grp[:, j:j + 1]                              # (e_tile, 1)
                d_row = doc_ref[0, g0 + j:g0 + j + 1, :].astype(compute_dtype)  # (1, d)
                run_max = jnp.maximum(run_max, e_col * d_row)
        max_acc[...] = jnp.maximum(max_acc[...], run_max.astype(jnp.float32))

        @pl.when(l == pl.num_programs(2) - 1)
        def _finalize():
            inv_len = pl.reciprocal(lens_ref[0], approx=False)         # (e_tile, 1) EUP
            max_ref[0] = max_acc[...].astype(max_ref.dtype)
            mean_ref[0] = (sum_acc[...] * inv_len).astype(mean_ref.dtype)

    return kernel


# --------------------------------------------------------------------------
# tiling / chip heuristics
# --------------------------------------------------------------------------
def _device_kind() -> str:
    try:
        return jax.devices()[0].device_kind
    except Exception:
        return ""


def _is_v7_like(kind: str) -> bool:
    return "v7" in kind.lower()


def _max_compute_dtype(doc_dtype, kind: str):
    # bf16 max path is exact (0/1 mask product + max), but only profitable
    # where the VPU has native bf16 (v6e / v7x).  Older chips stay in f32.
    if doc_dtype == jnp.bfloat16:
        k = kind.lower()
        if not any(v in k for v in ("v2", "v3", "v4", "v5")):
            return jnp.bfloat16
    return jnp.float32


def _choose_l_tile(L: int, max_tile: int) -> int:
    # entity_mapping puts L on lanes, so an L tile must be a multiple of 128
    # (or the full L).  Pick the largest 128-multiple divisor of L <= max_tile.
    if L % 128 == 0:
        t = min(max_tile, L)
        t -= t % 128
        while t >= 128:
            if L % t == 0:
                return t
            t -= 128
    return L


def _choose_e_tile(E: int, N: int, kind: str) -> int:
    # On v7x (2 TensorCores / chip) with tiny batch, split E so both cores
    # get parallel work; elsewhere keep the full E block (near-zero effect).
    if not _is_v7_like(kind):
        return E
    if N >= 2 or E < 16 or E % 16 != 0:
        return E
    return E // 2          # multiple of 8 by construction (E % 16 == 0)


def _compiler_params(e_tile: int, l_tile: int, d: int, itemsize: int, kind: str):
    rup = lambda x, m: -(-x // m) * m
    block_bytes = itemsize * (
        rup(l_tile, 8) * rup(d, 128)            # doc block
        + rup(e_tile, 8) * rup(l_tile, 128)     # mask block
        + rup(e_tile, 8) * 128                  # lens block (lane padded)
        + 2 * rup(e_tile, 8) * rup(d, 128))     # two lane-aligned output blocks
    scratch_bytes = 2 * 4 * rup(e_tile, 8) * rup(d, 128)
    est = 2 * block_bytes + scratch_bytes       # 2x: double-buffered pipeline
    try:
        cap = getattr(pltpu.get_tpu_info(), "vmem_capacity_bytes", None)
    except Exception:
        cap = None
    if cap is None:
        cap = (64 if _is_v7_like(kind) else 128) * 1024 * 1024
    ceiling = int(cap) * 3 // 4                 # leave headroom for compiler scratch
    vmem_limit = int(min(max(2 * est, 32 * 1024 * 1024), ceiling))
    return pltpu.CompilerParams(
        dimension_semantics=("parallel", "parallel", "arbitrary"),
        vmem_limit_bytes=vmem_limit)


# --------------------------------------------------------------------------
# wrapper
# --------------------------------------------------------------------------
def mean_max_pooling(doc_state, entity_mapping, entity_lens, *,
                     l_tile=None, e_tile=None):
    """doc_state: (N, L, d), entity_mapping: (N, E, L), entity_lens: (N, E)
    -> (N, E, 2d) laid out as [max_pooled | mean_pooled] (matches torch.cat)."""
    N, L, d = doc_state.shape
    _, E, _ = entity_mapping.shape
    kind = _device_kind()

    if l_tile is None:
        # Bound the static per-token unroll; v7x also gets smaller blocks.
        l_tile = _choose_l_tile(L, max_tile=256 if _is_v7_like(kind) else 512)
    assert L % l_tile == 0 and (l_tile == L or l_tile % 128 == 0), "bad l_tile"

    if e_tile is None:
        e_tile = _choose_e_tile(E, N, kind)
    assert E % e_tile == 0 and (e_tile == E or e_tile % 8 == 0), "bad e_tile"

    n_l = L // l_tile
    n_e = E // e_tile

    compute_dtype = _max_compute_dtype(doc_state.dtype, kind)

    # Cast the 0/1 mask to the doc dtype (exact): bf16 inputs hit the fast MXU
    # path, and bool/int masks don't force a mixed-dtype upcast in the kernel.
    emap = entity_mapping.astype(doc_state.dtype)
    # Lens kept as a lane-1 block: constant block index over the L axis, so it
    # is DMA'd once per (n, e) group; the (e_tile, 1) sublane layout broadcasts
    # against (e_tile, d) with no relayout.
    lens3 = entity_lens.reshape(N, E, 1).astype(jnp.float32)

    kernel = _make_kernel(d, l_tile, e_tile, compute_dtype)
    out_dtype = doc_state.dtype

    max_p, mean_p = pl.pallas_call(
        kernel,
        out_shape=(jax.ShapeDtypeStruct((N, E, d), out_dtype),
                   jax.ShapeDtypeStruct((N, E, d), out_dtype)),
        grid_spec=pltpu.PrefetchScalarGridSpec(
            num_scalar_prefetch=0,
            grid=(N, n_e, n_l),
            in_specs=[
                pl.BlockSpec((1, l_tile, d), lambda n, e, l: (n, l, 0)),
                pl.BlockSpec((1, e_tile, l_tile), lambda n, e, l: (n, e, l)),
                pl.BlockSpec((1, e_tile, 1), lambda n, e, l: (n, e, 0)),
            ],
            out_specs=[
                pl.BlockSpec((1, e_tile, d), lambda n, e, l: (n, e, 0)),
                pl.BlockSpec((1, e_tile, d), lambda n, e, l: (n, e, 0)),
            ],
            scratch_shapes=[
                pltpu.VMEM((e_tile, d), jnp.float32),   # running max
                pltpu.VMEM((e_tile, d), jnp.float32),   # running sum
            ],
        ),
        compiler_params=_compiler_params(e_tile, l_tile, d,
                                         doc_state.dtype.itemsize, kind),
    )(doc_state, emap, lens3)

    # [max | mean] on the last axis, exactly torch.cat([max_pooled, mean_pooled], 2).
    return jnp.concatenate([max_p, mean_p], axis=2)


# --------------------------------------------------------------------------
# reference + test
# --------------------------------------------------------------------------
def mean_max_pooling_ref(doc_state, entity_mapping, entity_lens):
    # Pure-JAX reference mirroring the PyTorch forward exactly.
    es = entity_mapping[:, :, :, None] * doc_state[:, None, :, :]   # (N,E,L,d)
    max_p = jnp.max(es, axis=2)                                     # (N,E,d)
    mean_p = jnp.sum(es, axis=2) / entity_lens[:, :, None]          # (N,E,d)
    return jnp.concatenate([max_p, mean_p], axis=2)                 # (N,E,2d)


if __name__ == "__main__":
    # Small shapes, but L large enough to exercise 2 L-tiles (accumulator
    # init / accumulate / finalize across the "arbitrary" axis).
    N, L, E, d = 2, 256, 8, 32

    key = jax.random.PRNGKey(0)
    k_doc, k_map = jax.random.split(key)

    doc_state = jax.random.normal(k_doc, (N, L, d), dtype=jnp.float32)
    # Binary entity->token mapping mask.
    entity_mapping = (jax.random.uniform(k_map, (N, E, L)) > 0.6).astype(jnp.float32)
    # Lengths = number of mapped tokens per entity (clamped >= 1 to avoid /0;
    # division by zero lens is the caller's responsibility, as in the module).
    entity_lens = jnp.maximum(entity_mapping.sum(axis=2), 1.0).astype(jnp.float32)

    out = mean_max_pooling(doc_state, entity_mapping, entity_lens, l_tile=128)
    out = jax.block_until_ready(out)

    ref = mean_max_pooling_ref(doc_state, entity_mapping, entity_lens)
    assert out.shape == (N, E, 2 * d)
    assert jnp.allclose(out, ref, atol=1e-4, rtol=1e-4), "mismatch vs reference"

    print("KERNEL_OK")
</pallas_src>

<mosaic_0001>
module attributes {stable_mosaic.version = 11 : i64} {
  func.func @kernel(%arg0: i32, %arg1: i32, %arg2: i32, %arg3: memref<1x128x32xf32, #tpu.memory_space<vmem>>, %arg4: memref<1x8x128xf32, #tpu.memory_space<vmem>>, %arg5: memref<1x8x1xf32, #tpu.memory_space<vmem>>, %arg6: memref<1x8x32xf32, #tpu.memory_space<vmem>>, %arg7: memref<1x8x32xf32, #tpu.memory_space<vmem>>, %arg8: memref<8x32xf32, #tpu.memory_space<vmem>>, %arg9: memref<8x32xf32, #tpu.memory_space<vmem>>) attributes {dimension_semantics = [#tpu.dimension_semantics<parallel>, #tpu.dimension_semantics<parallel>, #tpu.dimension_semantics<arbitrary>], iteration_bounds = array<i64: 2, 1, 2>, scalar_prefetch = 0 : i64, scratch_operands = 2 : i64, tpu.core_type = #tpu.core_type<tc>, window_params = [{transform_indices = @transform_0, window_bounds = array<i64: 1, 128, 32>}, {transform_indices = @transform_1, window_bounds = array<i64: 1, 8, 128>}, {transform_indices = @transform_2, window_bounds = array<i64: 1, 8, 1>}, {transform_indices = @transform_3, window_bounds = array<i64: 1, 8, 32>}, {transform_indices = @transform_4, window_bounds = array<i64: 1, 8, 32>}]} {
    %c0_i32 = arith.constant 0 : i32
    %0 = arith.cmpi eq, %arg2, %c0_i32 : i32
    %1 = arith.extui %0 : i1 to i32
    %c0_i32_0 = arith.constant 0 : i32
    %2 = arith.cmpi ne, %1, %c0_i32_0 : i32
    scf.if %2 {
      %cst_276 = arith.constant 0xFF800000 : f32
      %916 = vector.broadcast %cst_276 : f32 to vector<8x32xf32>
      %c0_277 = arith.constant 0 : index
      %c0_278 = arith.constant 0 : index
      %917 = vector.load %arg8[%c0_277, %c0_278] : memref<8x32xf32, #tpu.memory_space<vmem>>, vector<8x32xf32>
      tpu.vector_store %arg8[%c0_277, %c0_278], %916 {strides = array<i32>} : memref<8x32xf32, #tpu.memory_space<vmem>>, vector<8x32xf32>,
      %cst_279 = arith.constant 0.000000e+00 : f32
      %918 = vector.broadcast %cst_279 : f32 to vector<8x32xf32>
      %c0_280 = arith.constant 0 : index
      %c0_281 = arith.constant 0 : index
      %919 = vector.load %arg9[%c0_280, %c0_281] : memref<8x32xf32, #tpu.memory_space<vmem>>, vector<8x32xf32>
      tpu.vector_store %arg9[%c0_280, %c0_281], %918 {strides = array<i32>} : memref<8x32xf32, #tpu.memory_space<vmem>>, vector<8x32xf32>,
    } else {
    }
    %c0 = arith.constant 0 : index
    %c0_1 = arith.constant 0 : index
    %3 = vector.load %arg9[%c0, %c0_1] : memref<8x32xf32, #tpu.memory_space<vmem>>, vector<8x32xf32>
    %c0_2 = arith.constant 0 : index
    %c0_3 = arith.constant 0 : index
    %c0_4 = arith.constant 0 : index
    %4 = vector.load %arg4[%c0_2, %c0_3, %c0_4] : memref<1x8x128xf32, #tpu.memory_space<vmem>>, vector<1x8x128xf32>
    %5 = vector.shape_cast %4 : vector<1x8x128xf32> to vector<8x128xf32>
    %c0_5 = arith.constant 0 : index
    %c0_6 = arith.constant 0 : index
    %c0_7 = arith.constant 0 : index
    %6 = vector.load %arg3[%c0_5, %c0_6, %c0_7] : memref<1x128x32xf32, #tpu.memory_space<vmem>>, vector<1x128x32xf32>
    %7 = vector.shape_cast %6 : vector<1x128x32xf32> to vector<128x32xf32>
    %cst = arith.constant dense<0.000000e+00> : vector<8x32xf32>
    %8 = tpu.matmul %5, %7, %cst {dimension_numbers = #tpu.dot_dimension_numbers<[1], [0], [0], [1], [0, 0, 1, 1], [], []>} : vector<8x128xf32>, vector<128x32xf32>, vector<8x32xf32> -> vector<8x32xf32>
    %9 = arith.addf %3, %8 : vector<8x32xf32>
    %c0_8 = arith.constant 0 : index
    %c0_9 = arith.constant 0 : index
    %10 = vector.load %arg9[%c0_8, %c0_9] : memref<8x32xf32, #tpu.memory_space<vmem>>, vector<8x32xf32>
    tpu.vector_store %arg9[%c0_8, %c0_9], %9 {strides = array<i32>} : memref<8x32xf32, #tpu.memory_space<vmem>>, vector<8x32xf32>,
    %cst_10 = arith.constant 0xFF800000 : f32
    %11 = vector.broadcast %cst_10 : f32 to vector<8x32xf32>
    %c0_11 = arith.constant 0 : index
    %c0_12 = arith.constant 0 : index
    %c0_13 = arith.constant 0 : index
    %12 = vector.load %arg4[%c0_11, %c0_12, %c0_13] : memref<1x8x128xf32, #tpu.memory_space<vmem>>, vector<1x8x128xf32>
    %13 = vector.shape_cast %12 : vector<1x8x128xf32> to vector<8x128xf32>
    %14 = vector.extract_strided_slice %13 {offsets = [0, 0], sizes = [8, 1], strides = [1, 1]} : vector<8x128xf32> to vector<8x1xf32>
    %c0_14 = arith.constant 0 : index
    %c0_15 = arith.constant 0 : index
    %c0_16 = arith.constant 0 : index
    %15 = vector.load %arg3[%c0_14, %c0_15, %c0_16] : memref<1x128x32xf32, #tpu.memory_space<vmem>>, vector<1x1x32xf32>
    %16 = vector.shape_cast %15 : vector<1x1x32xf32> to vector<1x32xf32>
    %17 = vector.broadcast %14 : vector<8x1xf32> to vector<8x32xf32>
    %18 = vector.broadcast %16 : vector<1x32xf32> to vector<8x32xf32>
    %19 = arith.mulf %17, %18 : vector<8x32xf32>
    %20 = arith.maximumf %11, %19 : vector<8x32xf32>
    %21 = vector.extract_strided_slice %13 {offsets = [0, 1], sizes = [8, 1], strides = [1, 1]} : vector<8x128xf32> to vector<8x1xf32>
    %c0_17 = arith.constant 0 : index
    %c1 = arith.constant 1 : index
    %c0_18 = arith.constant 0 : index
    %22 = vector.load %arg3[%c0_17, %c1, %c0_18] : memref<1x128x32xf32, #tpu.memory_space<vmem>>, vector<1x1x32xf32>
    %23 = vector.shape_cast %22 : vector<1x1x32xf32> to vector<1x32xf32>
    %24 = vector.broadcast %21 : vector<8x1xf32> to vector<8x32xf32>
    %25 = vector.broadcast %23 : vector<1x32xf32> to vector<8x32xf32>
    %26 = arith.mulf %24, %25 : vector<8x32xf32>
    %27 = arith.maximumf %20, %26 : vector<8x32xf32>
    %28 = vector.extract_strided_slice %13 {offsets = [0, 2], sizes = [8, 1], strides = [1, 1]} : vector<8x128xf32> to vector<8x1xf32>
    %c0_19 = arith.constant 0 : index
    %c2 = arith.constant 2 : index
    %c0_20 = arith.constant 0 : index
    %29 = vector.load %arg3[%c0_19, %c2, %c0_20] : memref<1x128x32xf32, #tpu.memory_space<vmem>>, vector<1x1x32xf32>
    %30 = vector.shape_cast %29 : vector<1x1x32xf32> to vector<1x32xf32>
    %31 = vector.broadcast %28 : vector<8x1xf32> to vector<8x32xf32>
    %32 = vector.broadcast %30 : vector<1x32xf32> to vector<8x32xf32>
    %33 = arith.mulf %31, %32 : vector<8x32xf32>
    %34 = arith.maximumf %27, %33 : vector<8x32xf32>
    %35 = vector.extract_strided_slice %13 {offsets = [0, 3], sizes = [8, 1], strides = [1, 1]} : vector<8x128xf32> to vector<8x1xf32>
    %c0_21 = arith.constant 0 : index
    %c3 = arith.constant 3 : index
    %c0_22 = arith.constant 0 : index
    %36 = vector.load %arg3[%c0_21, %c3, %c0_22] : memref<1x128x32xf32, #tpu.memory_space<vmem>>, vector<1x1x32xf32>
    %37 = vector.shape_cast %36 : vector<1x1x32xf32> to vector<1x32xf32>
    %38 = vector.broadcast %35 : vector<8x1xf32> to vector<8x32xf32>
    %39 = vector.broadcast %37 : vector<1x32xf32> to vector<8x32xf32>
    %40 = arith.mulf %38, %39 : vector<8x32xf32>
    %41 = arith.maximumf %34, %40 : vector<8x32xf32>
    %42 = vector.extract_strided_slice %13 {offsets = [0, 4], sizes = [8, 1], strides = [1, 1]} : vector<8x128xf32> to vector<8x1xf32>
    %c0_23 = arith.constant 0 : index
    %c4 = arith.constant 4 : index
    %c0_24 = arith.constant 0 : index
    %43 = vector.load %arg3[%c0_23, %c4, %c0_24] : memref<1x128x32xf32, #tpu.memory_space<vmem>>, vector<1x1x32xf32>
    %44 = vector.shape_cast %43 : vector<1x1x32xf32> to vector<1x32xf32>
    %45 = vector.broadcast %42 : vector<8x1xf32> to vector<8x32xf32>
    %46 = vector.broadcast %44 : vector<1x32xf32> to vector<8x32xf32>
    %47 = arith.mulf %45, %46 : vector<8x32xf32>
    %48 = arith.maximumf %41, %47 : vector<8x32xf32>
    %49 = vector.extract_strided_slice %13 {offsets = [0, 5], sizes = [8, 1], strides = [1, 1]} : vector<8x128xf32> to vector<8x1xf32>
    %c0_25 = arith.constant 0 : index
    %c5 = arith.constant 5 : index
    %c0_26 = arith.constant 0 : index
    %50 = vector.load %arg3[%c0_25, %c5, %c0_26] : memref<1x128x32xf32, #tpu.memory_space<vmem>>, vector<1x1x32xf32>
    %51 = vector.shape_cast %50 : vector<1x1x32xf32> to vector<1x32xf32>
    %52 = vector.broadcast %49 : vector<8x1xf32> to vector<8x32xf32>
    %53 = vector.broadcast %51 : vector<1x32xf32> to vector<8x32xf32>
    %54 = arith.mulf %52, %53 : vector<8x32xf32>
    %55 = arith.maximumf %48, %54 : vector<8x32xf32>
    %56 = vector.extract_strided_slice %13 {offsets = [0, 6], sizes = [8, 1], strides = [1, 1]} : vector<8x128xf32> to vector<8x1xf32>
    %c0_27 = arith.constant 0 : index
    %c6 = arith.constant 6 : index
    %c0_28 = arith.constant 0 : index
    %57 = vector.load %arg3[%c0_27, %c6, %c0_28] : memref<1x128x32xf32, #tpu.memory_space<vmem>>, vector<1x1x32xf32>
    %58 = vector.shape_cast %57 : vector<1x1x32xf32> to vector<1x32xf32>
    %59 = vector.broadcast %56 : vector<8x1xf32> to vector<8x32xf32>
    %60 = vector.broadcast %58 : vector<1x32xf32> to vector<8x32xf32>
    %61 = arith.mulf %59, %60 : vector<8x32xf32>
    %62 = arith.maximumf %55, %61 : vector<8x32xf32>
    %63 = vector.extract_strided_slice %13 {offsets = [0, 7], sizes = [8, 1], strides = [1, 1]} : vector<8x128xf32> to vector<8x1xf32>
    %c0_29 = arith.constant 0 : index
    %c7 = arith.constant 7 : index
    %c0_30 = arith.constant 0 : index
    %64 = vector.load %arg3[%c0_29, %c7, %c0_30] : memref<1x128x32xf32, #tpu.memory_space<vmem>>, vector<1x1x32xf32>
    %65 = vector.shape_cast %64 : vector<1x1x32xf32> to vector<1x32xf32>
    %66 = vector.broadcast %63 : vector<8x1xf32> to vector<8x32xf32>
    %67 = vector.broadcast %65 : vector<1x32xf32> to vector<8x32xf32>
    %68 = arith.mulf %66, %67 : vector<8x32xf32>
    %69 = arith.maximumf %62, %68 : vector<8x32xf32>
    %70 = vector.extract_strided_slice %13 {offsets = [0, 8], sizes = [8, 1], strides = [1, 1]} : vector<8x128xf32> to vector<8x1xf32>
    %c0_31 = arith.constant 0 : index
    %c8 = arith.constant 8 : index
    %c0_32 = arith.constant 0 : index
    %71 = vector.load %arg3[%c0_31, %c8, %c0_32] : memref<1x128x32xf32, #tpu.memory_space<vmem>>, vector<1x1x32xf32>
    %72 = vector.shape_cast %71 : vector<1x1x32xf32> to vector<1x32xf32>
    %73 = vector.broadcast %70 : vector<8x1xf32> to vector<8x32xf32>
    %74 = vector.broadcast %72 : vector<1x32xf32> to vector<8x32xf32>
    %75 = arith.mulf %73, %74 : vector<8x32xf32>
    %76 = arith.maximumf %69, %75 : vector<8x32xf32>
    %77 = vector.extract_strided_slice %13 {offsets = [0, 9], sizes = [8, 1], strides = [1, 1]} : vector<8x128xf32> to vector<8x1xf32>
    %c0_33 = arith.constant 0 : index
    %c9 = arith.constant 9 : index
    %c0_34 = arith.constant 0 : index
    %78 = vector.load %arg3[%c0_33, %c9, %c0_34] : memref<1x128x32xf32, #tpu.memory_space<vmem>>, vector<1x1x32xf32>
    %79 = vector.shape_cast %78 : vector<1x1x32xf32> to vector<1x32xf32>
    %80 = vector.broadcast %77 : vector<8x1xf32> to vector<8x32xf32>
    %81 = vector.broadcast %79 : vector<1x32xf32> to vector<8x32xf32>
    %82 = arith.mulf %80, %81 : vector<8x32xf32>
    %83 = arith.maximumf %76, %82 : vector<8x32xf32>
    %84 = vector.extract_strided_slice %13 {offsets = [0, 10], sizes = [8, 1], strides = [1, 1]} : vector<8x128xf32> to vector<8x1xf32>
    %c0_35 = arith.constant 0 : index
    %c10 = arith.constant 10 : index
    %c0_36 = arith.constant 0 : index
    %85 = vector.load %arg3[%c0_35, %c10, %c0_36] : memref<1x128x32xf32, #tpu.memory_space<vmem>>, vector<1x1x32xf32>
    %86 = vector.shape_cast %85 : vector<1x1x32xf32> to vector<1x32xf32>
    %87 = vector.broadcast %84 : vector<8x1xf32> to vector<8x32xf32>
    %88 = vector.broadcast %86 : vector<1x32xf32> to vector<8x32xf32>
    %89 = arith.mulf %87, %88 : vector<8x32xf32>
    %90 = arith.maximumf %83, %89 : vector<8x32xf32>
    %91 = vector.extract_strided_slice %13 {offsets = [0, 11], sizes = [8, 1], strides = [1, 1]} : vector<8x128xf32> to vector<8x1xf32>
    %c0_37 = arith.constant 0 : index
    %c11 = arith.constant 11 : index
    %c0_38 = arith.constant 0 : index
    %92 = vector.load %arg3[%c0_37, %c11, %c0_38] : memref<1x128x32xf32, #tpu.memory_space<vmem>>, vector<1x1x32xf32>
    %93 = vector.shape_cast %92 : vector<1x1x32xf32> to vector<1x32xf32>
    %94 = vector.broadcast %91 : vector<8x1xf32> to vector<8x32xf32>
    %95 = vector.broadcast %93 : vector<1x32xf32> to vector<8x32xf32>
    %96 = arith.mulf %94, %95 : vector<8x32xf32>
    %97 = arith.maximumf %90, %96 : vector<8x32xf32>
    %98 = vector.extract_strided_slice %13 {offsets = [0, 12], sizes = [8, 1], strides = [1, 1]} : vector<8x128xf32> to vector<8x1xf32>
    %c0_39 = arith.constant 0 : index
    %c12 = arith.constant 12 : index
    %c0_40 = arith.constant 0 : index
    %99 = vector.load %arg3[%c0_39, %c12, %c0_40] : memref<1x128x32xf32, #tpu.memory_space<vmem>>, vector<1x1x32xf32>
    %100 = vector.shape_cast %99 : vector<1x1x32xf32> to vector<1x32xf32>
    %101 = vector.broadcast %98 : vector<8x1xf32> to vector<8x32xf32>
    %102 = vector.broadcast %100 : vector<1x32xf32> to vector<8x32xf32>
    %103 = arith.mulf %101, %102 : vector<8x32xf32>
    %104 = arith.maximumf %97, %103 : vector<8x32xf32>
    %105 = vector.extract_strided_slice %13 {offsets = [0, 13], sizes = [8, 1], strides = [1, 1]} : vector<8x128xf32> to vector<8x1xf32>
    %c0_41 = arith.constant 0 : index
    %c13 = arith.constant 13 : index
    %c0_42 = arith.constant 0 : index
    %106 = vector.load %arg3[%c0_41, %c13, %c0_42] : memref<1x128x32xf32, #tpu.memory_space<vmem>>, vector<1x1x32xf32>
    %107 = vector.shape_cast %106 : vector<1x1x32xf32> to vector<1x32xf32>
    %108 = vector.broadcast %105 : vector<8x1xf32> to vector<8x32xf32>
    %109 = vector.broadcast %107 : vector<1x32xf32> to vector<8x32xf32>
    %110 = arith.mulf %108, %109 : vector<8x32xf32>
    %111 = arith.maximumf %104, %110 : vector<8x32xf32>
    %112 = vector.extract_strided_slice %13 {offsets = [0, 14], sizes = [8, 1], strides = [1, 1]} : vector<8x128xf32> to vector<8x1xf32>
    %c0_43 = arith.constant 0 : index
    %c14 = arith.constant 14 : index
    %c0_44 = arith.constant 0 : index
    %113 = vector.load %arg3[%c0_43, %c14, %c0_44] : memref<1x128x32xf32, #tpu.memory_space<vmem>>, vector<1x1x32xf32>
    %114 = vector.shape_cast %113 : vector<1x1x32xf32> to vector<1x32xf32>
    %115 = vector.broadcast %112 : vector<8x1xf32> to vector<8x32xf32>
    %116 = vector.broadcast %114 : vector<1x32xf32> to vector<8x32xf32>
    %117 = arith.mulf %115, %116 : vector<8x32xf32>
    %118 = arith.maximumf %111, %117 : vector<8x32xf32>
    %119 = vector.extract_strided_slice %13 {offsets = [0, 15], sizes = [8, 1], strides = [1, 1]} : vector<8x128xf32> to vector<8x1xf32>
    %c0_45 = arith.constant 0 : index
    %c15 = arith.constant 15 : index
    %c0_46 = arith.constant 0 : index
    %120 = vector.load %arg3[%c0_45, %c15, %c0_46] : memref<1x128x32xf32, #tpu.memory_space<vmem>>, vector<1x1x32xf32>
    %121 = vector.shape_cast %120 : vector<1x1x32xf32> to vector<1x32xf32>
    %122 = vector.broadcast %119 : vector<8x1xf32> to vector<8x32xf32>
    %123 = vector.broadcast %121 : vector<1x32xf32> to vector<8x32xf32>
    %124 = arith.mulf %122, %123 : vector<8x32xf32>
    %125 = arith.maximumf %118, %124 : vector<8x32xf32>
    %126 = vector.extract_strided_slice %13 {offsets = [0, 16], sizes = [8, 1], strides = [1, 1]} : vector<8x128xf32> to vector<8x1xf32>
    %c0_47 = arith.constant 0 : index
    %c16 = arith.constant 16 : index
    %c0_48 = arith.constant 0 : index
    %127 = vector.load %arg3[%c0_47, %c16, %c0_48] : memref<1x128x32xf32, #tpu.memory_space<vmem>>, vector<1x1x32xf32>
    %128 = vector.shape_cast %127 : vector<1x1x32xf32> to vector<1x32xf32>
    %129 = vector.broadcast %126 : vector<8x1xf32> to vector<8x32xf32>
    %130 = vector.broadcast %128 : vector<1x32xf32> to vector<8x32xf32>
    %131 = arith.mulf %129, %130 : vector<8x32xf32>
    %132 = arith.maximumf %125, %131 : vector<8x32xf32>
    %133 = vector.extract_strided_slice %13 {offsets = [0, 17], sizes = [8, 1], strides = [1, 1]} : vector<8x128xf32> to vector<8x1xf32>
    %c0_49 = arith.constant 0 : index
    %c17 = arith.constant 17 : index
    %c0_50 = arith.constant 0 : index
    %134 = vector.load %arg3[%c0_49, %c17, %c0_50] : memref<1x128x32xf32, #tpu.memory_space<vmem>>, vector<1x1x32xf32>
    %135 = vector.shape_cast %134 : vector<1x1x32xf32> to vector<1x32xf32>
    %136 = vector.broadcast %133 : vector<8x1xf32> to vector<8x32xf32>
    %137 = vector.broadcast %135 : vector<1x32xf32> to vector<8x32xf32>
    %138 = arith.mulf %136, %137 : vector<8x32xf32>
    %139 = arith.maximumf %132, %138 : vector<8x32xf32>
    %140 = vector.extract_strided_slice %13 {offsets = [0, 18], sizes = [8, 1], strides = [1, 1]} : vector<8x128xf32> to vector<8x1xf32>
    %c0_51 = arith.constant 0 : index
    %c18 = arith.constant 18 : index
    %c0_52 = arith.constant 0 : index
    %141 = vector.load %arg3[%c0_51, %c18, %c0_52] : memref<1x128x32xf32, #tpu.memory_space<vmem>>, vector<1x1x32xf32>
    %142 = vector.shape_cast %141 : vector<1x1x32xf32> to vector<1x32xf32>
    %143 = vector.broadcast %140 : vector<8x1xf32> to vector<8x32xf32>
    %144 = vector.broadcast %142 : vector<1x32xf32> to vector<8x32xf32>
    %145 = arith.mulf %143, %144 : vector<8x32xf32>
    %146 = arith.maximumf %139, %145 : vector<8x32xf32>
    %147 = vector.extract_strided_slice %13 {offsets = [0, 19], sizes = [8, 1], strides = [1, 1]} : vector<8x128xf32> to vector<8x1xf32>
    %c0_53 = arith.constant 0 : index
    %c19 = arith.constant 19 : index
    %c0_54 = arith.constant 0 : index
    %148 = vector.load %arg3[%c0_53, %c19, %c0_54] : memref<1x128x32xf32, #tpu.memory_space<vmem>>, vector<1x1x32xf32>
    %149 = vector.shape_cast %148 : vector<1x1x32xf32> to vector<1x32xf32>
    %150 = vector.broadcast %147 : vector<8x1xf32> to vector<8x32xf32>
    %151 = vector.broadcast %149 : vector<1x32xf32> to vector<8x32xf32>
    %152 = arith.mulf %150, %151 : vector<8x32xf32>
    %153 = arith.maximumf %146, %152 : vector<8x32xf32>
    %154 = vector.extract_strided_slice %13 {offsets = [0, 20], sizes = [8, 1], strides = [1, 1]} : vector<8x128xf32> to vector<8x1xf32>
    %c0_55 = arith.constant 0 : index
    %c20 = arith.constant 20 : index
    %c0_56 = arith.constant 0 : index
    %155 = vector.load %arg3[%c0_55, %c20, %c0_56] : memref<1x128x32xf32, #tpu.memory_space<vmem>>, vector<1x1x32xf32>
    %156 = vector.shape_cast %155 : vector<1x1x32xf32> to vector<1x32xf32>
    %157 = vector.broadcast %154 : vector<8x1xf32> to vector<8x32xf32>
    %158 = vector.broadcast %156 : vector<1x32xf32> to vector<8x32xf32>
    %159 = arith.mulf %157, %158 : vector<8x32xf32>
    %160 = arith.maximumf %153, %159 : vector<8x32xf32>
    %161 = vector.extract_strided_slice %13 {offsets = [0, 21], sizes = [8, 1], strides = [1, 1]} : vector<8x128xf32> to vector<8x1xf32>
    %c0_57 = arith.constant 0 : index
    %c21 = arith.constant 21 : index
    %c0_58 = arith.constant 0 : index
    %162 = vector.load %arg3[%c0_57, %c21, %c0_58] : memref<1x128x32xf32, #tpu.memory_space<vmem>>, vector<1x1x32xf32>
    %163 = vector.shape_cast %162 : vector<1x1x32xf32> to vector<1x32xf32>
    %164 = vector.broadcast %161 : vector<8x1xf32> to vector<8x32xf32>
    %165 = vector.broadcast %163 : vector<1x32xf32> to vector<8x32xf32>
    %166 = arith.mulf %164, %165 : vector<8x32xf32>
    %167 = arith.maximumf %160, %166 : vector<8x32xf32>
    %168 = vector.extract_strided_slice %13 {offsets = [0, 22], sizes = [8, 1], strides = [1, 1]} : vector<8x128xf32> to vector<8x1xf32>
    %c0_59 = arith.constant 0 : index
    %c22 = arith.constant 22 : index
    %c0_60 = arith.constant 0 : index
    %169 = vector.load %arg3[%c0_59, %c22, %c0_60] : memref<1x128x32xf32, #tpu.memory_space<vmem>>, vector<1x1x32xf32>
    %170 = vector.shape_cast %169 : vector<1x1x32xf32> to vector<1x32xf32>
    %171 = vector.broadcast %168 : vector<8x1xf32> to vector<8x32xf32>
    %172 = vector.broadcast %170 : vector<1x32xf32> to vector<8x32xf32>
    %173 = arith.mulf %171, %172 : vector<8x32xf32>
    %174 = arith.maximumf %167, %173 : vector<8x32xf32>
    %175 = vector.extract_strided_slice %13 {offsets = [0, 23], sizes = [8, 1], strides = [1, 1]} : vector<8x128xf32> to vector<8x1xf32>
    %c0_61 = arith.constant 0 : index
    %c23 = arith.constant 23 : index
    %c0_62 = arith.constant 0 : index
    %176 = vector.load %arg3[%c0_61, %c23, %c0_62] : memref<1x128x32xf32, #tpu.memory_space<vmem>>, vector<1x1x32xf32>
    %177 = vector.shape_cast %176 : vector<1x1x32xf32> to vector<1x32xf32>
    %178 = vector.broadcast %175 : vector<8x1xf32> to vector<8x32xf32>
    %179 = vector.broadcast %177 : vector<1x32xf32> to vector<8x32xf32>
    %180 = arith.mulf %178, %179 : vector<8x32xf32>
    %181 = arith.maximumf %174, %180 : vector<8x32xf32>
    %182 = vector.extract_strided_slice %13 {offsets = [0, 24], sizes = [8, 1], strides = [1, 1]} : vector<8x128xf32> to vector<8x1xf32>
    %c0_63 = arith.constant 0 : index
    %c24 = arith.constant 24 : index
    %c0_64 = arith.constant 0 : index
    %183 = vector.load %arg3[%c0_63, %c24, %c0_64] : memref<1x128x32xf32, #tpu.memory_space<vmem>>, vector<1x1x32xf32>
    %184 = vector.shape_cast %183 : vector<1x1x32xf32> to vector<1x32xf32>
    %185 = vector.broadcast %182 : vector<8x1xf32> to vector<8x32xf32>
    %186 = vector.broadcast %184 : vector<1x32xf32> to vector<8x32xf32>
    %187 = arith.mulf %185, %186 : vector<8x32xf32>
    %188 = arith.maximumf %181, %187 : vector<8x32xf32>
    %189 = vector.extract_strided_slice %13 {offsets = [0, 25], sizes = [8, 1], strides = [1, 1]} : vector<8x128xf32> to vector<8x1xf32>
    %c0_65 = arith.constant 0 : index
    %c25 = arith.constant 25 : index
    %c0_66 = arith.constant 0 : index
    %190 = vector.load %arg3[%c0_65, %c25, %c0_66] : memref<1x128x32xf32, #tpu.memory_space<vmem>>, vector<1x1x32xf32>
    %191 = vector.shape_cast %190 : vector<1x1x32xf32> to vector<1x32xf32>
    %192 = vector.broadcast %189 : vector<8x1xf32> to vector<8x32xf32>
    %193 = vector.broadcast %191 : vector<1x32xf32> to vector<8x32xf32>
    %194 = arith.mulf %192, %193 : vector<8x32xf32>
    %195 = arith.maximumf %188, %194 : vector<8x32xf32>
    %196 = vector.extract_strided_slice %13 {offsets = [0, 26], sizes = [8, 1], strides = [1, 1]} : vector<8x128xf32> to vector<8x1xf32>
    %c0_67 = arith.constant 0 : index
    %c26 = arith.constant 26 : index
    %c0_68 = arith.constant 0 : index
    %197 = vector.load %arg3[%c0_67, %c26, %c0_68] : memref<1x128x32xf32, #tpu.memory_space<vmem>>, vector<1x1x32xf32>
    %198 = vector.shape_cast %197 : vector<1x1x32xf32> to vector<1x32xf32>
    %199 = vector.broadcast %196 : vector<8x1xf32> to vector<8x32xf32>
    %200 = vector.broadcast %198 : vector<1x32xf32> to vector<8x32xf32>
    %201 = arith.mulf %199, %200 : vector<8x32xf32>
    %202 = arith.maximumf %195, %201 : vector<8x32xf32>
    %203 = vector.extract_strided_slice %13 {offsets = [0, 27], sizes = [8, 1], strides = [1, 1]} : vector<8x128xf32> to vector<8x1xf32>
    %c0_69 = arith.constant 0 : index
    %c27 = arith.constant 27 : index
    %c0_70 = arith.constant 0 : index
    %204 = vector.load %arg3[%c0_69, %c27, %c0_70] : memref<1x128x32xf32, #tpu.memory_space<vmem>>, vector<1x1x32xf32>
    %205 = vector.shape_cast %204 : vector<1x1x32xf32> to vector<1x32xf32>
    %206 = vector.broadcast %203 : vector<8x1xf32> to vector<8x32xf32>
    %207 = vector.broadcast %205 : vector<1x32xf32> to vector<8x32xf32>
    %208 = arith.mulf %206, %207 : vector<8x32xf32>
    %209 = arith.maximumf %202, %208 : vector<8x32xf32>
    %210 = vector.extract_strided_slice %13 {offsets = [0, 28], sizes = [8, 1], strides = [1, 1]} : vector<8x128xf32> to vector<8x1xf32>
    %c0_71 = arith.constant 0 : index
    %c28 = arith.constant 28 : index
    %c0_72 = arith.constant 0 : index
    %211 = vector.load %arg3[%c0_71, %c28, %c0_72] : memref<1x128x32xf32, #tpu.memory_space<vmem>>, vector<1x1x32xf32>
    %212 = vector.shape_cast %211 : vector<1x1x32xf32> to vector<1x32xf32>
    %213 = vector.broadcast %210 : vector<8x1xf32> to vector<8x32xf32>
    %214 = vector.broadcast %212 : vector<1x32xf32> to vector<8x32xf32>
    %215 = arith.mulf %213, %214 : vector<8x32xf32>
    %216 = arith.maximumf %209, %215 : vector<8x32xf32>
    %217 = vector.extract_strided_slice %13 {offsets = [0, 29], sizes = [8, 1], strides = [1, 1]} : vector<8x128xf32> to vector<8x1xf32>
    %c0_73 = arith.constant 0 : index
    %c29 = arith.constant 29 : index
    %c0_74 = arith.constant 0 : index
    %218 = vector.load %arg3[%c0_73, %c29, %c0_74] : memref<1x128x32xf32, #tpu.memory_space<vmem>>, vector<1x1x32xf32>
    %219 = vector.shape_cast %218 : vector<1x1x32xf32> to vector<1x32xf32>
    %220 = vector.broadcast %217 : vector<8x1xf32> to vector<8x32xf32>
    %221 = vector.broadcast %219 : vector<1x32xf32> to vector<8x32xf32>
    %222 = arith.mulf %220, %221 : vector<8x32xf32>
    %223 = arith.maximumf %216, %222 : vector<8x32xf32>
    %224 = vector.extract_strided_slice %13 {offsets = [0, 30], sizes = [8, 1], strides = [1, 1]} : vector<8x128xf32> to vector<8x1xf32>
    %c0_75 = arith.constant 0 : index
    %c30 = arith.constant 30 : index
    %c0_76 = arith.constant 0 : index
    %225 = vector.load %arg3[%c0_75, %c30, %c0_76] : memref<1x128x32xf32, #tpu.memory_space<vmem>>, vector<1x1x32xf32>
    %226 = vector.shape_cast %225 : vector<1x1x32xf32> to vector<1x32xf32>
    %227 = vector.broadcast %224 : vector<8x1xf32> to vector<8x32xf32>
    %228 = vector.broadcast %226 : vector<1x32xf32> to vector<8x32xf32>
    %229 = arith.mulf %227, %228 : vector<8x32xf32>
    %230 = arith.maximumf %223, %229 : vector<8x32xf32>
    %231 = vector.extract_strided_slice %13 {offsets = [0, 31], sizes = [8, 1], strides = [1, 1]} : vector<8x128xf32> to vector<8x1xf32>
    %c0_77 = arith.constant 0 : index
    %c31 = arith.constant 31 : index
    %c0_78 = arith.constant 0 : index
    %232 = vector.load %arg3[%c0_77, %c31, %c0_78] : memref<1x128x32xf32, #tpu.memory_space<vmem>>, vector<1x1x32xf32>
    %233 = vector.shape_cast %232 : vector<1x1x32xf32> to vector<1x32xf32>
    %234 = vector.broadcast %231 : vector<8x1xf32> to vector<8x32xf32>
    %235 = vector.broadcast %233 : vector<1x32xf32> to vector<8x32xf32>
    %236 = arith.mulf %234, %235 : vector<8x32xf32>
    %237 = arith.maximumf %230, %236 : vector<8x32xf32>
    %238 = vector.extract_strided_slice %13 {offsets = [0, 32], sizes = [8, 1], strides = [1, 1]} : vector<8x128xf32> to vector<8x1xf32>
    %c0_79 = arith.constant 0 : index
    %c32 = arith.constant 32 : index
    %c0_80 = arith.constant 0 : index
    %239 = vector.load %arg3[%c0_79, %c32, %c0_80] : memref<1x128x32xf32, #tpu.memory_space<vmem>>, vector<1x1x32xf32>
    %240 = vector.shape_cast %239 : vector<1x1x32xf32> to vector<1x32xf32>
    %241 = vector.broadcast %238 : vector<8x1xf32> to vector<8x32xf32>
    %242 = vector.broadcast %240 : vector<1x32xf32> to vector<8x32xf32>
    %243 = arith.mulf %241, %242 : vector<8x32xf32>
    %244 = arith.maximumf %237, %243 : vector<8x32xf32>
    %245 = vector.extract_strided_slice %13 {offsets = [0, 33], sizes = [8, 1], strides = [1, 1]} : vector<8x128xf32> to vector<8x1xf32>
    %c0_81 = arith.constant 0 : index
    %c33 = arith.constant 33 : index
    %c0_82 = arith.constant 0 : index
    %246 = vector.load %arg3[%c0_81, %c33, %c0_82] : memref<1x128x32xf32, #tpu.memory_space<vmem>>, vector<1x1x32xf32>
    %247 = vector.shape_cast %246 : vector<1x1x32xf32> to vector<1x32xf32>
    %248 = vector.broadcast %245 : vector<8x1xf32> to vector<8x32xf32>
    %249 = vector.broadcast %247 : vector<1x32xf32> to vector<8x32xf32>
    %250 = arith.mulf %248, %249 : vector<8x32xf32>
    %251 = arith.maximumf %244, %250 : vector<8x32xf32>
    %252 = vector.extract_strided_slice %13 {offsets = [0, 34], sizes = [8, 1], strides = [1, 1]} : vector<8x128xf32> to vector<8x1xf32>
    %c0_83 = arith.constant 0 : index
    %c34 = arith.constant 34 : index
    %c0_84 = arith.constant 0 : index
    %253 = vector.load %arg3[%c0_83, %c34, %c0_84] : memref<1x128x32xf32, #tpu.memory_space<vmem>>, vector<1x1x32xf32>
    %254 = vector.shape_cast %253 : vector<1x1x32xf32> to vector<1x32xf32>
    %255 = vector.broadcast %252 : vector<8x1xf32> to vector<8x32xf32>
    %256 = vector.broadcast %254 : vector<1x32xf32> to vector<8x32xf32>
    %257 = arith.mulf %255, %256 : vector<8x32xf32>
    %258 = arith.maximumf %251, %257 : vector<8x32xf32>
    %259 = vector.extract_strided_slice %13 {offsets = [0, 35], sizes = [8, 1], strides = [1, 1]} : vector<8x128xf32> to vector<8x1xf32>
    %c0_85 = arith.constant 0 : index
    %c35 = arith.constant 35 : index
    %c0_86 = arith.constant 0 : index
    %260 = vector.load %arg3[%c0_85, %c35, %c0_86] : memref<1x128x32xf32, #tpu.memory_space<vmem>>, vector<1x1x32xf32>
    %261 = vector.shape_cast %260 : vector<1x1x32xf32> to vector<1x32xf32>
    %262 = vector.broadcast %259 : vector<8x1xf32> to vector<8x32xf32>
    %263 = vector.broadcast %261 : vector<1x32xf32> to vector<8x32xf32>
    %264 = arith.mulf %262, %263 : vector<8x32xf32>
    %265 = arith.maximumf %258, %264 : vector<8x32xf32>
    %266 = vector.extract_strided_slice %13 {offsets = [0, 36], sizes = [8, 1], strides = [1, 1]} : vector<8x128xf32> to vector<8x1xf32>
    %c0_87 = arith.constant 0 : index
    %c36 = arith.constant 36 : index
    %c0_88 = arith.constant 0 : index
    %267 = vector.load %arg3[%c0_87, %c36, %c0_88] : memref<1x128x32xf32, #tpu.memory_space<vmem>>, vector<1x1x32xf32>
    %268 = vector.shape_cast %267 : vector<1x1x32xf32> to vector<1x32xf32>
    %269 = vector.broadcast %266 : vector<8x1xf32> to vector<8x32xf32>
    %270 = vector.broadcast %268 : vector<1x32xf32> to vector<8x32xf32>
    %271 = arith.mulf %269, %270 : vector<8x32xf32>
    %272 = arith.maximumf %265, %271 : vector<8x32xf32>
    %273 = vector.extract_strided_slice %13 {offsets = [0, 37], sizes = [8, 1], strides = [1, 1]} : vector<8x128xf32> to vector<8x1xf32>
    %c0_89 = arith.constant 0 : index
    %c37 = arith.constant 37 : index
    %c0_90 = arith.constant 0 : index
    %274 = vector.load %arg3[%c0_89, %c37, %c0_90] : memref<1x128x32xf32, #tpu.memory_space<vmem>>, vector<1x1x32xf32>
    %275 = vector.shape_cast %274 : vector<1x1x32xf32> to vector<1x32xf32>
    %276 = vector.broadcast %273 : vector<8x1xf32> to vector<8x32xf32>
    %277 = vector.broadcast %275 : vector<1x32xf32> to vector<8x32xf32>
    %278 = arith.mulf %276, %277 : vector<8x32xf32>
    %279 = arith.maximumf %272, %278 : vector<8x32xf32>
    %280 = vector.extract_strided_slice %13 {offsets = [0, 38], sizes = [8, 1], strides = [1, 1]} : vector<8x128xf32> to vector<8x1xf32>
    %c0_91 = arith.constant 0 : index
    %c38 = arith.constant 38 : index
    %c0_92 = arith.constant 0 : index
    %281 = vector.load %arg3[%c0_91, %c38, %c0_92] : memref<1x128x32xf32, #tpu.memory_space<vmem>>, vector<1x1x32xf32>
    %282 = vector.shape_cast %281 : vector<1x1x32xf32> to vector<1x32xf32>
    %283 = vector.broadcast %280 : vector<8x1xf32> to vector<8x32xf32>
    %284 = vector.broadcast %282 : vector<1x32xf32> to vector<8x32xf32>
    %285 = arith.mulf %283, %284 : vector<8x32xf32>
    %286 = arith.maximumf %279, %285 : vector<8x32xf32>
    %287 = vector.extract_strided_slice %13 {offsets = [0, 39], sizes = [8, 1], strides = [1, 1]} : vector<8x128xf32> to vector<8x1xf32>
    %c0_93 = arith.constant 0 : index
    %c39 = arith.constant 39 : index
    %c0_94 = arith.constant 0 : index
    %288 = vector.load %arg3[%c0_93, %c39, %c0_94] : memref<1x128x32xf32, #tpu.memory_space<vmem>>, vector<1x1x32xf32>
    %289 = vector.shape_cast %288 : vector<1x1x32xf32> to vector<1x32xf32>
    %290 = vector.broadcast %287 : vector<8x1xf32> to vector<8x32xf32>
    %291 = vector.broadcast %289 : vector<1x32xf32> to vector<8x32xf32>
    %292 = arith.mulf %290, %291 : vector<8x32xf32>
    %293 = arith.maximumf %286, %292 : vector<8x32xf32>
    %294 = vector.extract_strided_slice %13 {offsets = [0, 40], sizes = [8, 1], strides = [1, 1]} : vector<8x128xf32> to vector<8x1xf32>
    %c0_95 = arith.constant 0 : index
    %c40 = arith.constant 40 : index
    %c0_96 = arith.constant 0 : index
    %295 = vector.load %arg3[%c0_95, %c40, %c0_96] : memref<1x128x32xf32, #tpu.memory_space<vmem>>, vector<1x1x32xf32>
    %296 = vector.shape_cast %295 : vector<1x1x32xf32> to vector<1x32xf32>
    %297 = vector.broadcast %294 : vector<8x1xf32> to vector<8x32xf32>
    %298 = vector.broadcast %296 : vector<1x32xf32> to vector<8x32xf32>
    %299 = arith.mulf %297, %298 : vector<8x32xf32>
    %300 = arith.maximumf %293, %299 : vector<8x32xf32>
    %301 = vector.extract_strided_slice %13 {offsets = [0, 41], sizes = [8, 1], strides = [1, 1]} : vector<8x128xf32> to vector<8x1xf32>
    %c0_97 = arith.constant 0 : index
    %c41 = arith.constant 41 : index
    %c0_98 = arith.constant 0 : index
    %302 = vector.load %arg3[%c0_97, %c41, %c0_98] : memref<1x128x32xf32, #tpu.memory_space<vmem>>, vector<1x1x32xf32>
    %303 = vector.shape_cast %302 : vector<1x1x32xf32> to vector<1x32xf32>
    %304 = vector.broadcast %301 : vector<8x1xf32> to vector<8x32xf32>
    %305 = vector.broadcast %303 : vector<1x32xf32> to vector<8x32xf32>
    %306 = arith.mulf %304, %305 : vector<8x32xf32>
    %307 = arith.maximumf %300, %306 : vector<8x32xf32>
    %308 = vector.extract_strided_slice %13 {offsets = [0, 42], sizes = [8, 1], strides = [1, 1]} : vector<8x128xf32> to vector<8x1xf32>
    %c0_99 = arith.constant 0 : index
    %c42 = arith.constant 42 : index
    %c0_100 = arith.constant 0 : index
    %309 = vector.load %arg3[%c0_99, %c42, %c0_100] : memref<1x128x32xf32, #tpu.memory_space<vmem>>, vector<1x1x32xf32>
    %310 = vector.shape_cast %309 : vector<1x1x32xf32> to vector<1x32xf32>
    %311 = vector.broadcast %308 : vector<8x1xf32> to vector<8x32xf32>
    %312 = vector.broadcast %310 : vector<1x32xf32> to vector<8x32xf32>
    %313 = arith.mulf %311, %312 : vector<8x32xf32>
    %314 = arith.maximumf %307, %313 : vector<8x32xf32>
    %315 = vector.extract_strided_slice %13 {offsets = [0, 43], sizes = [8, 1], strides = [1, 1]} : vector<8x128xf32> to vector<8x1xf32>
    %c0_101 = arith.constant 0 : index
    %c43 = arith.constant 43 : index
    %c0_102 = arith.constant 0 : index
    %316 = vector.load %arg3[%c0_101, %c43, %c0_102] : memref<1x128x32xf32, #tpu.memory_space<vmem>>, vector<1x1x32xf32>
    %317 = vector.shape_cast %316 : vector<1x1x32xf32> to vector<1x32xf32>
    %318 = vector.broadcast %315 : vector<8x1xf32> to vector<8x32xf32>
    %319 = vector.broadcast %317 : vector<1x32xf32> to vector<8x32xf32>
    %320 = arith.mulf %318, %319 : vector<8x32xf32>
    %321 = arith.maximumf %314, %320 : vector<8x32xf32>
    %322 = vector.extract_strided_slice %13 {offsets = [0, 44], sizes = [8, 1], strides = [1, 1]} : vector<8x128xf32> to vector<8x1xf32>
    %c0_103 = arith.constant 0 : index
    %c44 = arith.constant 44 : index
    %c0_104 = arith.constant 0 : index
    %323 = vector.load %arg3[%c0_103, %c44, %c0_104] : memref<1x128x32xf32, #tpu.memory_space<vmem>>, vector<1x1x32xf32>
    %324 = vector.shape_cast %323 : vector<1x1x32xf32> to vector<1x32xf32>
    %325 = vector.broadcast %322 : vector<8x1xf32> to vector<8x32xf32>
    %326 = vector.broadcast %324 : vector<1x32xf32> to vector<8x32xf32>
    %327 = arith.mulf %325, %326 : vector<8x32xf32>
    %328 = arith.maximumf %321, %327 : vector<8x32xf32>
    %329 = vector.extract_strided_slice %13 {offsets = [0, 45], sizes = [8, 1], strides = [1, 1]} : vector<8x128xf32> to vector<8x1xf32>
    %c0_105 = arith.constant 0 : index
    %c45 = arith.constant 45 : index
    %c0_106 = arith.constant 0 : index
    %330 = vector.load %arg3[%c0_105, %c45, %c0_106] : memref<1x128x32xf32, #tpu.memory_space<vmem>>, vector<1x1x32xf32>
    %331 = vector.shape_cast %330 : vector<1x1x32xf32> to vector<1x32xf32>
    %332 = vector.broadcast %329 : vector<8x1xf32> to vector<8x32xf32>
    %333 = vector.broadcast %331 : vector<1x32xf32> to vector<8x32xf32>
    %334 = arith.mulf %332, %333 : vector<8x32xf32>
    %335 = arith.maximumf %328, %334 : vector<8x32xf32>
    %336 = vector.extract_strided_slice %13 {offsets = [0, 46], sizes = [8, 1], strides = [1, 1]} : vector<8x128xf32> to vector<8x1xf32>
    %c0_107 = arith.constant 0 : index
    %c46 = arith.constant 46 : index
    %c0_108 = arith.constant 0 : index
    %337 = vector.load %arg3[%c0_107, %c46, %c0_108] : memref<1x128x32xf32, #tpu.memory_space<vmem>>, vector<1x1x32xf32>
    %338 = vector.shape_cast %337 : vector<1x1x32xf32> to vector<1x32xf32>
    %339 = vector.broadcast %336 : vector<8x1xf32> to vector<8x32xf32>
    %340 = vector.broadcast %338 : vector<1x32xf32> to vector<8x32xf32>
    %341 = arith.mulf %339, %340 : vector<8x32xf32>
    %342 = arith.maximumf %335, %341 : vector<8x32xf32>
    %343 = vector.extract_strided_slice %13 {offsets = [0, 47], sizes = [8, 1], strides = [1, 1]} : vector<8x128xf32> to vector<8x1xf32>
    %c0_109 = arith.constant 0 : index
    %c47 = arith.constant 47 : index
    %c0_110 = arith.constant 0 : index
    %344 = vector.load %arg3[%c0_109, %c47, %c0_110] : memref<1x128x32xf32, #tpu.memory_space<vmem>>, vector<1x1x32xf32>
    %345 = vector.shape_cast %344 : vector<1x1x32xf32> to vector<1x32xf32>
    %346 = vector.broadcast %343 : vector<8x1xf32> to vector<8x32xf32>
    %347 = vector.broadcast %345 : vector<1x32xf32> to vector<8x32xf32>
    %348 = arith.mulf %346, %347 : vector<8x32xf32>
    %349 = arith.maximumf %342, %348 : vector<8x32xf32>
    %350 = vector.extract_strided_slice %13 {offsets = [0, 48], sizes = [8, 1], strides = [1, 1]} : vector<8x128xf32> to vector<8x1xf32>
    %c0_111 = arith.constant 0 : index
    %c48 = arith.constant 48 : index
    %c0_112 = arith.constant 0 : index
    %351 = vector.load %arg3[%c0_111, %c48, %c0_112] : memref<1x128x32xf32, #tpu.memory_space<vmem>>, vector<1x1x32xf32>
    %352 = vector.shape_cast %351 : vector<1x1x32xf32> to vector<1x32xf32>
    %353 = vector.broadcast %350 : vector<8x1xf32> to vector<8x32xf32>
    %354 = vector.broadcast %352 : vector<1x32xf32> to vector<8x32xf32>
    %355 = arith.mulf %353, %354 : vector<8x32xf32>
    %356 = arith.maximumf %349, %355 : vector<8x32xf32>
    %357 = vector.extract_strided_slice %13 {offsets = [0, 49], sizes = [8, 1], strides = [1, 1]} : vector<8x128xf32> to vector<8x1xf32>
    %c0_113 = arith.constant 0 : index
    %c49 = arith.constant 49 : index
    %c0_114 = arith.constant 0 : index
    %358 = vector.load %arg3[%c0_113, %c49, %c0_114] : memref<1x128x32xf32, #tpu.memory_space<vmem>>, vector<1x1x32xf32>
    %359 = vector.shape_cast %358 : vector<1x1x32xf32> to vector<1x32xf32>
    %360 = vector.broadcast %357 : vector<8x1xf32> to vector<8x32xf32>
    %361 = vector.broadcast %359 : vector<1x32xf32> to vector<8x32xf32>
    %362 = arith.mulf %360, %361 : vector<8x32xf32>
    %363 = arith.maximumf %356, %362 : vector<8x32xf32>
    %364 = vector.extract_strided_slice %13 {offsets = [0, 50], sizes = [8, 1], strides = [1, 1]} : vector<8x128xf32> to vector<8x1xf32>
    %c0_115 = arith.constant 0 : index
    %c50 = arith.constant 50 : index
    %c0_116 = arith.constant 0 : index
    %365 = vector.load %arg3[%c0_115, %c50, %c0_116] : memref<1x128x32xf32, #tpu.memory_space<vmem>>, vector<1x1x32xf32>
    %366 = vector.shape_cast %365 : vector<1x1x32xf32> to vector<1x32xf32>
    %367 = vector.broadcast %364 : vector<8x1xf32> to vector<8x32xf32>
    %368 = vector.broadcast %366 : vector<1x32xf32> to vector<8x32xf32>
    %369 = arith.mulf %367, %368 : vector<8x32xf32>
    %370 = arith.maximumf %363, %369 : vector<8x32xf32>
    %371 = vector.extract_strided_slice %13 {offsets = [0, 51], sizes = [8, 1], strides = [1, 1]} : vector<8x128xf32> to vector<8x1xf32>
    %c0_117 = arith.constant 0 : index
    %c51 = arith.constant 51 : index
    %c0_118 = arith.constant 0 : index
    %372 = vector.load %arg3[%c0_117, %c51, %c0_118] : memref<1x128x32xf32, #tpu.memory_space<vmem>>, vector<1x1x32xf32>
    %373 = vector.shape_cast %372 : vector<1x1x32xf32> to vector<1x32xf32>
    %374 = vector.broadcast %371 : vector<8x1xf32> to vector<8x32xf32>
    %375 = vector.broadcast %373 : vector<1x32xf32> to vector<8x32xf32>
    %376 = arith.mulf %374, %375 : vector<8x32xf32>
    %377 = arith.maximumf %370, %376 : vector<8x32xf32>
    %378 = vector.extract_strided_slice %13 {offsets = [0, 52], sizes = [8, 1], strides = [1, 1]} : vector<8x128xf32> to vector<8x1xf32>
    %c0_119 = arith.constant 0 : index
    %c52 = arith.constant 52 : index
    %c0_120 = arith.constant 0 : index
    %379 = vector.load %arg3[%c0_119, %c52, %c0_120] : memref<1x128x32xf32, #tpu.memory_space<vmem>>, vector<1x1x32xf32>
    %380 = vector.shape_cast %379 : vector<1x1x32xf32> to vector<1x32xf32>
    %381 = vector.broadcast %378 : vector<8x1xf32> to vector<8x32xf32>
    %382 = vector.broadcast %380 : vector<1x32xf32> to vector<8x32xf32>
    %383 = arith.mulf %381, %382 : vector<8x32xf32>
    %384 = arith.maximumf %377, %383 : vector<8x32xf32>
    %385 = vector.extract_strided_slice %13 {offsets = [0, 53], sizes = [8, 1], strides = [1, 1]} : vector<8x128xf32> to vector<8x1xf32>
    %c0_121 = arith.constant 0 : index
    %c53 = arith.constant 53 : index
    %c0_122 = arith.constant 0 : index
    %386 = vector.load %arg3[%c0_121, %c53, %c0_122] : memref<1x128x32xf32, #tpu.memory_space<vmem>>, vector<1x1x32xf32>
    %387 = vector.shape_cast %386 : vector<1x1x32xf32> to vector<1x32xf32>
    %388 = vector.broadcast %385 : vector<8x1xf32> to vector<8x32xf32>
    %389 = vector.broadcast %387 : vector<1x32xf32> to vector<8x32xf32>
    %390 = arith.mulf %388, %389 : vector<8x32xf32>
    %391 = arith.maximumf %384, %390 : vector<8x32xf32>
    %392 = vector.extract_strided_slice %13 {offsets = [0, 54], sizes = [8, 1], strides = [1, 1]} : vector<8x128xf32> to vector<8x1xf32>
    %c0_123 = arith.constant 0 : index
    %c54 = arith.constant 54 : index
    %c0_124 = arith.constant 0 : index
    %393 = vector.load %arg3[%c0_123, %c54, %c0_124] : memref<1x128x32xf32, #tpu.memory_space<vmem>>, vector<1x1x32xf32>
    %394 = vector.shape_cast %393 : vector<1x1x32xf32> to vector<1x32xf32>
    %395 = vector.broadcast %392 : vector<8x1xf32> to vector<8x32xf32>
    %396 = vector.broadcast %394 : vector<1x32xf32> to vector<8x32xf32>
    %397 = arith.mulf %395, %396 : vector<8x32xf32>
    %398 = arith.maximumf %391, %397 : vector<8x32xf32>
    %399 = vector.extract_strided_slice %13 {offsets = [0, 55], sizes = [8, 1], strides = [1, 1]} : vector<8x128xf32> to vector<8x1xf32>
    %c0_125 = arith.constant 0 : index
    %c55 = arith.constant 55 : index
    %c0_126 = arith.constant 0 : index
    %400 = vector.load %arg3[%c0_125, %c55, %c0_126] : memref<1x128x32xf32, #tpu.memory_space<vmem>>, vector<1x1x32xf32>
    %401 = vector.shape_cast %400 : vector<1x1x32xf32> to vector<1x32xf32>
    %402 = vector.broadcast %399 : vector<8x1xf32> to vector<8x32xf32>
    %403 = vector.broadcast %401 : vector<1x32xf32> to vector<8x32xf32>
    %404 = arith.mulf %402, %403 : vector<8x32xf32>
    %405 = arith.maximumf %398, %404 : vector<8x32xf32>
    %406 = vector.extract_strided_slice %13 {offsets = [0, 56], sizes = [8, 1], strides = [1, 1]} : vector<8x128xf32> to vector<8x1xf32>
    %c0_127 = arith.constant 0 : index
    %c56 = arith.constant 56 : index
    %c0_128 = arith.constant 0 : index
    %407 = vector.load %arg3[%c0_127, %c56, %c0_128] : memref<1x128x32xf32, #tpu.memory_space<vmem>>, vector<1x1x32xf32>
    %408 = vector.shape_cast %407 : vector<1x1x32xf32> to vector<1x32xf32>
    %409 = vector.broadcast %406 : vector<8x1xf32> to vector<8x32xf32>
    %410 = vector.broadcast %408 : vector<1x32xf32> to vector<8x32xf32>
    %411 = arith.mulf %409, %410 : vector<8x32xf32>
    %412 = arith.maximumf %405, %411 : vector<8x32xf32>
    %413 = vector.extract_strided_slice %13 {offsets = [0, 57], sizes = [8, 1], strides = [1, 1]} : vector<8x128xf32> to vector<8x1xf32>
    %c0_129 = arith.constant 0 : index
    %c57 = arith.constant 57 : index
    %c0_130 = arith.constant 0 : index
    %414 = vector.load %arg3[%c0_129, %c57, %c0_130] : memref<1x128x32xf32, #tpu.memory_space<vmem>>, vector<1x1x32xf32>
    %415 = vector.shape_cast %414 : vector<1x1x32xf32> to vector<1x32xf32>
    %416 = vector.broadcast %413 : vector<8x1xf32> to vector<8x32xf32>
    %417 = vector.broadcast %415 : vector<1x32xf32> to vector<8x32xf32>
    %418 = arith.mulf %416, %417 : vector<8x32xf32>
    %419 = arith.maximumf %412, %418 : vector<8x32xf32>
    %420 = vector.extract_strided_slice %13 {offsets = [0, 58], sizes = [8, 1], strides = [1, 1]} : vector<8x128xf32> to vector<8x1xf32>
    %c0_131 = arith.constant 0 : index
    %c58 = arith.constant 58 : index
    %c0_132 = arith.constant 0 : index
    %421 = vector.load %arg3[%c0_131, %c58, %c0_132] : memref<1x128x32xf32, #tpu.memory_space<vmem>>, vector<1x1x32xf32>
    %422 = vector.shape_cast %421 : vector<1x1x32xf32> to vector<1x32xf32>
    %423 = vector.broadcast %420 : vector<8x1xf32> to vector<8x32xf32>
    %424 = vector.broadcast %422 : vector<1x32xf32> to vector<8x32xf32>
    %425 = arith.mulf %423, %424 : vector<8x32xf32>
    %426 = arith.maximumf %419, %425 : vector<8x32xf32>
    %427 = vector.extract_strided_slice %13 {offsets = [0, 59], sizes = [8, 1], strides = [1, 1]} : vector<8x128xf32> to vector<8x1xf32>
    %c0_133 = arith.constant 0 : index
    %c59 = arith.constant 59 : index
    %c0_134 = arith.constant 0 : index
    %428 = vector.load %arg3[%c0_133, %c59, %c0_134] : memref<1x128x32xf32, #tpu.memory_space<vmem>>, vector<1x1x32xf32>
    %429 = vector.shape_cast %428 : vector<1x1x32xf32> to vector<1x32xf32>
    %430 = vector.broadcast %427 : vector<8x1xf32> to vector<8x32xf32>
    %431 = vector.broadcast %429 : vector<1x32xf32> to vector<8x32xf32>
    %432 = arith.mulf %430, %431 : vector<8x32xf32>
    %433 = arith.maximumf %426, %432 : vector<8x32xf32>
    %434 = vector.extract_strided_slice %13 {offsets = [0, 60], sizes = [8, 1], strides = [1, 1]} : vector<8x128xf32> to vector<8x1xf32>
    %c0_135 = arith.constant 0 : index
    %c60 = arith.constant 60 : index
    %c0_136 = arith.constant 0 : index
    %435 = vector.load %arg3[%c0_135, %c60, %c0_136] : memref<1x128x32xf32, #tpu.memory_space<vmem>>, vector<1x1x32xf32>
    %436 = vector.shape_cast %435 : vector<1x1x32xf32> to vector<1x32xf32>
    %437 = vector.broadcast %434 : vector<8x1xf32> to vector<8x32xf32>
    %438 = vector.broadcast %436 : vector<1x32xf32> to vector<8x32xf32>
    %439 = arith.mulf %437, %438 : vector<8x32xf32>
    %440 = arith.maximumf %433, %439 : vector<8x32xf32>
    %441 = vector.extract_strided_slice %13 {offsets = [0, 61], sizes = [8, 1], strides = [1, 1]} : vector<8x128xf32> to vector<8x1xf32>
    %c0_137 = arith.constant 0 : index
    %c61 = arith.constant 61 : index
    %c0_138 = arith.constant 0 : index
    %442 = vector.load %arg3[%c0_137, %c61, %c0_138] : memref<1x128x32xf32, #tpu.memory_space<vmem>>, vector<1x1x32xf32>
    %443 = vector.shape_cast %442 : vector<1x1x32xf32> to vector<1x32xf32>
    %444 = vector.broadcast %441 : vector<8x1xf32> to vector<8x32xf32>
    %445 = vector.broadcast %443 : vector<1x32xf32> to vector<8x32xf32>
    %446 = arith.mulf %444, %445 : vector<8x32xf32>
    %447 = arith.maximumf %440, %446 : vector<8x32xf32>
    %448 = vector.extract_strided_slice %13 {offsets = [0, 62], sizes = [8, 1], strides = [1, 1]} : vector<8x128xf32> to vector<8x1xf32>
    %c0_139 = arith.constant 0 : index
    %c62 = arith.constant 62 : index
    %c0_140 = arith.constant 0 : index
    %449 = vector.load %arg3[%c0_139, %c62, %c0_140] : memref<1x128x32xf32, #tpu.memory_space<vmem>>, vector<1x1x32xf32>
    %450 = vector.shape_cast %449 : vector<1x1x32xf32> to vector<1x32xf32>
    %451 = vector.broadcast %448 : vector<8x1xf32> to vector<8x32xf32>
    %452 = vector.broadcast %450 : vector<1x32xf32> to vector<8x32xf32>
    %453 = arith.mulf %451, %452 : vector<8x32xf32>
    %454 = arith.maximumf %447, %453 : vector<8x32xf32>
    %455 = vector.extract_strided_slice %13 {offsets = [0, 63], sizes = [8, 1], strides = [1, 1]} : vector<8x128xf32> to vector<8x1xf32>
    %c0_141 = arith.constant 0 : index
    %c63 = arith.constant 63 : index
    %c0_142 = arith.constant 0 : index
    %456 = vector.load %arg3[%c0_141, %c63, %c0_142] : memref<1x128x32xf32, #tpu.memory_space<vmem>>, vector<1x1x32xf32>
    %457 = vector.shape_cast %456 : vector<1x1x32xf32> to vector<1x32xf32>
    %458 = vector.broadcast %455 : vector<8x1xf32> to vector<8x32xf32>
    %459 = vector.broadcast %457 : vector<1x32xf32> to vector<8x32xf32>
    %460 = arith.mulf %458, %459 : vector<8x32xf32>
    %461 = arith.maximumf %454, %460 : vector<8x32xf32>
    %462 = vector.extract_strided_slice %13 {offsets = [0, 64], sizes = [8, 1], strides = [1, 1]} : vector<8x128xf32> to vector<8x1xf32>
    %c0_143 = arith.constant 0 : index
    %c64 = arith.constant 64 : index
    %c0_144 = arith.constant 0 : index
    %463 = vector.load %arg3[%c0_143, %c64, %c0_144] : memref<1x128x32xf32, #tpu.memory_space<vmem>>, vector<1x1x32xf32>
    %464 = vector.shape_cast %463 : vector<1x1x32xf32> to vector<1x32xf32>
    %465 = vector.broadcast %462 : vector<8x1xf32> to vector<8x32xf32>
    %466 = vector.broadcast %464 : vector<1x32xf32> to vector<8x32xf32>
    %467 = arith.mulf %465, %466 : vector<8x32xf32>
    %468 = arith.maximumf %461, %467 : vector<8x32xf32>
    %469 = vector.extract_strided_slice %13 {offsets = [0, 65], sizes = [8, 1], strides = [1, 1]} : vector<8x128xf32> to vector<8x1xf32>
    %c0_145 = arith.constant 0 : index
    %c65 = arith.constant 65 : index
    %c0_146 = arith.constant 0 : index
    %470 = vector.load %arg3[%c0_145, %c65, %c0_146] : memref<1x128x32xf32, #tpu.memory_space<vmem>>, vector<1x1x32xf32>
    %471 = vector.shape_cast %470 : vector<1x1x32xf32> to vector<1x32xf32>
    %472 = vector.broadcast %469 : vector<8x1xf32> to vector<8x32xf32>
    %473 = vector.broadcast %471 : vector<1x32xf32> to vector<8x32xf32>
    %474 = arith.mulf %472, %473 : vector<8x32xf32>
    %475 = arith.maximumf %468, %474 : vector<8x32xf32>
    %476 = vector.extract_strided_slice %13 {offsets = [0, 66], sizes = [8, 1], strides = [1, 1]} : vector<8x128xf32> to vector<8x1xf32>
    %c0_147 = arith.constant 0 : index
    %c66 = arith.constant 66 : index
    %c0_148 = arith.constant 0 : index
    %477 = vector.load %arg3[%c0_147, %c66, %c0_148] : memref<1x128x32xf32, #tpu.memory_space<vmem>>, vector<1x1x32xf32>
    %478 = vector.shape_cast %477 : vector<1x1x32xf32> to vector<1x32xf32>
    %479 = vector.broadcast %476 : vector<8x1xf32> to vector<8x32xf32>
    %480 = vector.broadcast %478 : vector<1x32xf32> to vector<8x32xf32>
    %481 = arith.mulf %479, %480 : vector<8x32xf32>
    %482 = arith.maximumf %475, %481 : vector<8x32xf32>
    %483 = vector.extract_strided_slice %13 {offsets = [0, 67], sizes = [8, 1], strides = [1, 1]} : vector<8x128xf32> to vector<8x1xf32>
    %c0_149 = arith.constant 0 : index
    %c67 = arith.constant 67 : index
    %c0_150 = arith.constant 0 : index
    %484 = vector.load %arg3[%c0_149, %c67, %c0_150] : memref<1x128x32xf32, #tpu.memory_space<vmem>>, vector<1x1x32xf32>
    %485 = vector.shape_cast %484 : vector<1x1x32xf32> to vector<1x32xf32>
    %486 = vector.broadcast %483 : vector<8x1xf32> to vector<8x32xf32>
    %487 = vector.broadcast %485 : vector<1x32xf32> to vector<8x32xf32>
    %488 = arith.mulf %486, %487 : vector<8x32xf32>
    %489 = arith.maximumf %482, %488 : vector<8x32xf32>
    %490 = vector.extract_strided_slice %13 {offsets = [0, 68], sizes = [8, 1], strides = [1, 1]} : vector<8x128xf32> to vector<8x1xf32>
    %c0_151 = arith.constant 0 : index
    %c68 = arith.constant 68 : index
    %c0_152 = arith.constant 0 : index
    %491 = vector.load %arg3[%c0_151, %c68, %c0_152] : memref<1x128x32xf32, #tpu.memory_space<vmem>>, vector<1x1x32xf32>
    %492 = vector.shape_cast %491 : vector<1x1x32xf32> to vector<1x32xf32>
    %493 = vector.broadcast %490 : vector<8x1xf32> to vector<8x32xf32>
    %494 = vector.broadcast %492 : vector<1x32xf32> to vector<8x32xf32>
    %495 = arith.mulf %493, %494 : vector<8x32xf32>
    %496 = arith.maximumf %489, %495 : vector<8x32xf32>
    %497 = vector.extract_strided_slice %13 {offsets = [0, 69], sizes = [8, 1], strides = [1, 1]} : vector<8x128xf32> to vector<8x1xf32>
    %c0_153 = arith.constant 0 : index
    %c69 = arith.constant 69 : index
    %c0_154 = arith.constant 0 : index
    %498 = vector.load %arg3[%c0_153, %c69, %c0_154] : memref<1x128x32xf32, #tpu.memory_space<vmem>>, vector<1x1x32xf32>
    %499 = vector.shape_cast %498 : vector<1x1x32xf32> to vector<1x32xf32>
    %500 = vector.broadcast %497 : vector<8x1xf32> to vector<8x32xf32>
    %501 = vector.broadcast %499 : vector<1x32xf32> to vector<8x32xf32>
    %502 = arith.mulf %500, %501 : vector<8x32xf32>
    %503 = arith.maximumf %496, %502 : vector<8x32xf32>
    %504 = vector.extract_strided_slice %13 {offsets = [0, 70], sizes = [8, 1], strides = [1, 1]} : vector<8x128xf32> to vector<8x1xf32>
    %c0_155 = arith.constant 0 : index
    %c70 = arith.constant 70 : index
    %c0_156 = arith.constant 0 : index
    %505 = vector.load %arg3[%c0_155, %c70, %c0_156] : memref<1x128x32xf32, #tpu.memory_space<vmem>>, vector<1x1x32xf32>
    %506 = vector.shape_cast %505 : vector<1x1x32xf32> to vector<1x32xf32>
    %507 = vector.broadcast %504 : vector<8x1xf32> to vector<8x32xf32>
    %508 = vector.broadcast %506 : vector<1x32xf32> to vector<8x32xf32>
    %509 = arith.mulf %507, %508 : vector<8x32xf32>
    %510 = arith.maximumf %503, %509 : vector<8x32xf32>
    %511 = vector.extract_strided_slice %13 {offsets = [0, 71], sizes = [8, 1], strides = [1, 1]} : vector<8x128xf32> to vector<8x1xf32>
    %c0_157 = arith.constant 0 : index
    %c71 = arith.constant 71 : index
    %c0_158 = arith.constant 0 : index
    %512 = vector.load %arg3[%c0_157, %c71, %c0_158] : memref<1x128x32xf32, #tpu.memory_space<vmem>>, vector<1x1x32xf32>
    %513 = vector.shape_cast %512 : vector<1x1x32xf32> to vector<1x32xf32>
    %514 = vector.broadcast %511 : vector<8x1xf32> to vector<8x32xf32>
    %515 = vector.broadcast %513 : vector<1x32xf32> to vector<8x32xf32>
    %516 = arith.mulf %514, %515 : vector<8x32xf32>
    %517 = arith.maximumf %510, %516 : vector<8x32xf32>
    %518 = vector.extract_strided_slice %13 {offsets = [0, 72], sizes = [8, 1], strides = [1, 1]} : vector<8x128xf32> to vector<8x1xf32>
    %c0_159 = arith.constant 0 : index
    %c72 = arith.constant 72 : index
    %c0_160 = arith.constant 0 : index
    %519 = vector.load %arg3[%c0_159, %c72, %c0_160] : memref<1x128x32xf32, #tpu.memory_space<vmem>>, vector<1x1x32xf32>
    %520 = vector.shape_cast %519 : vector<1x1x32xf32> to vector<1x32xf32>
    %521 = vector.broadcast %518 : vector<8x1xf32> to vector<8x32xf32>
    %522 = vector.broadcast %520 : vector<1x32xf32> to vector<8x32xf32>
    %523 = arith.mulf %521, %522 : vector<8x32xf32>
    %524 = arith.maximumf %517, %523 : vector<8x32xf32>
    %525 = vector.extract_strided_slice %13 {offsets = [0, 73], sizes = [8, 1], strides = [1, 1]} : vector<8x128xf32> to vector<8x1xf32>
    %c0_161 = arith.constant 0 : index
    %c73 = arith.constant 73 : index
    %c0_162 = arith.constant 0 : index
    %526 = vector.load %arg3[%c0_161, %c73, %c0_162] : memref<1x128x32xf32, #tpu.memory_space<vmem>>, vector<1x1x32xf32>
    %527 = vector.shape_cast %526 : vector<1x1x32xf32> to vector<1x32xf32>
    %528 = vector.broadcast %525 : vector<8x1xf32> to vector<8x32xf32>
    %529 = vector.broadcast %527 : vector<1x32xf32> to vector<8x32xf32>
    %530 = arith.mulf %528, %529 : vector<8x32xf32>
    %531 = arith.maximumf %524, %530 : vector<8x32xf32>
    %532 = vector.extract_strided_slice %13 {offsets = [0, 74], sizes = [8, 1], strides = [1, 1]} : vector<8x128xf32> to vector<8x1xf32>
    %c0_163 = arith.constant 0 : index
    %c74 = arith.constant 74 : index
    %c0_164 = arith.constant 0 : index
    %533 = vector.load %arg3[%c0_163, %c74, %c0_164] : memref<1x128x32xf32, #tpu.memory_space<vmem>>, vector<1x1x32xf32>
    %534 = vector.shape_cast %533 : vector<1x1x32xf32> to vector<1x32xf32>
    %535 = vector.broadcast %532 : vector<8x1xf32> to vector<8x32xf32>
    %536 = vector.broadcast %534 : vector<1x32xf32> to vector<8x32xf32>
    %537 = arith.mulf %535, %536 : vector<8x32xf32>
    %538 = arith.maximumf %531, %537 : vector<8x32xf32>
    %539 = vector.extract_strided_slice %13 {offsets = [0, 75], sizes = [8, 1], strides = [1, 1]} : vector<8x128xf32> to vector<8x1xf32>
    %c0_165 = arith.constant 0 : index
    %c75 = arith.constant 75 : index
    %c0_166 = arith.constant 0 : index
    %540 = vector.load %arg3[%c0_165, %c75, %c0_166] : memref<1x128x32xf32, #tpu.memory_space<vmem>>, vector<1x1x32xf32>
    %541 = vector.shape_cast %540 : vector<1x1x32xf32> to vector<1x32xf32>
    %542 = vector.broadcast %539 : vector<8x1xf32> to vector<8x32xf32>
    %543 = vector.broadcast %541 : vector<1x32xf32> to vector<8x32xf32>
    %544 = arith.mulf %542, %543 : vector<8x32xf32>
    %545 = arith.maximumf %538, %544 : vector<8x32xf32>
    %546 = vector.extract_strided_slice %13 {offsets = [0, 76], sizes = [8, 1], strides = [1, 1]} : vector<8x128xf32> to vector<8x1xf32>
    %c0_167 = arith.constant 0 : index
    %c76 = arith.constant 76 : index
    %c0_168 = arith.constant 0 : index
    %547 = vector.load %arg3[%c0_167, %c76, %c0_168] : memref<1x128x32xf32, #tpu.memory_space<vmem>>, vector<1x1x32xf32>
    %548 = vector.shape_cast %547 : vector<1x1x32xf32> to vector<1x32xf32>
    %549 = vector.broadcast %546 : vector<8x1xf32> to vector<8x32xf32>
    %550 = vector.broadcast %548 : vector<1x32xf32> to vector<8x32xf32>
    %551 = arith.mulf %549, %550 : vector<8x32xf32>
    %552 = arith.maximumf %545, %551 : vector<8x32xf32>
    %553 = vector.extract_strided_slice %13 {offsets = [0, 77], sizes = [8, 1], strides = [1, 1]} : vector<8x128xf32> to vector<8x1xf32>
    %c0_169 = arith.constant 0 : index
    %c77 = arith.constant 77 : index
    %c0_170 = arith.constant 0 : index
    %554 = vector.load %arg3[%c0_169, %c77, %c0_170] : memref<1x128x32xf32, #tpu.memory_space<vmem>>, vector<1x1x32xf32>
    %555 = vector.shape_cast %554 : vector<1x1x32xf32> to vector<1x32xf32>
    %556 = vector.broadcast %553 : vector<8x1xf32> to vector<8x32xf32>
    %557 = vector.broadcast %555 : vector<1x32xf32> to vector<8x32xf32>
    %558 = arith.mulf %556, %557 : vector<8x32xf32>
    %559 = arith.maximumf %552, %558 : vector<8x32xf32>
    %560 = vector.extract_strided_slice %13 {offsets = [0, 78], sizes = [8, 1], strides = [1, 1]} : vector<8x128xf32> to vector<8x1xf32>
    %c0_171 = arith.constant 0 : index
    %c78 = arith.constant 78 : index
    %c0_172 = arith.constant 0 : index
    %561 = vector.load %arg3[%c0_171, %c78, %c0_172] : memref<1x128x32xf32, #tpu.memory_space<vmem>>, vector<1x1x32xf32>
    %562 = vector.shape_cast %561 : vector<1x1x32xf32> to vector<1x32xf32>
    %563 = vector.broadcast %560 : vector<8x1xf32> to vector<8x32xf32>
    %564 = vector.broadcast %562 : vector<1x32xf32> to vector<8x32xf32>
    %565 = arith.mulf %563, %564 : vector<8x32xf32>
    %566 = arith.maximumf %559, %565 : vector<8x32xf32>
    %567 = vector.extract_strided_slice %13 {offsets = [0, 79], sizes = [8, 1], strides = [1, 1]} : vector<8x128xf32> to vector<8x1xf32>
    %c0_173 = arith.constant 0 : index
    %c79 = arith.constant 79 : index
    %c0_174 = arith.constant 0 : index
    %568 = vector.load %arg3[%c0_173, %c79, %c0_174] : memref<1x128x32xf32, #tpu.memory_space<vmem>>, vector<1x1x32xf32>
    %569 = vector.shape_cast %568 : vector<1x1x32xf32> to vector<1x32xf32>
    %570 = vector.broadcast %567 : vector<8x1xf32> to vector<8x32xf32>
    %571 = vector.broadcast %569 : vector<1x32xf32> to vector<8x32xf32>
    %572 = arith.mulf %570, %571 : vector<8x32xf32>
    %573 = arith.maximumf %566, %572 : vector<8x32xf32>
    %574 = vector.extract_strided_slice %13 {offsets = [0, 80], sizes = [8, 1], strides = [1, 1]} : vector<8x128xf32> to vector<8x1xf32>
    %c0_175 = arith.constant 0 : index
    %c80 = arith.constant 80 : index
    %c0_176 = arith.constant 0 : index
    %575 = vector.load %arg3[%c0_175, %c80, %c0_176] : memref<1x128x32xf32, #tpu.memory_space<vmem>>, vector<1x1x32xf32>
    %576 = vector.shape_cast %575 : vector<1x1x32xf32> to vector<1x32xf32>
    %577 = vector.broadcast %574 : vector<8x1xf32> to vector<8x32xf32>
    %578 = vector.broadcast %576 : vector<1x32xf32> to vector<8x32xf32>
    %579 = arith.mulf %577, %578 : vector<8x32xf32>
    %580 = arith.maximumf %573, %579 : vector<8x32xf32>
    %581 = vector.extract_strided_slice %13 {offsets = [0, 81], sizes = [8, 1], strides = [1, 1]} : vector<8x128xf32> to vector<8x1xf32>
    %c0_177 = arith.constant 0 : index
    %c81 = arith.constant 81 : index
    %c0_178 = arith.constant 0 : index
    %582 = vector.load %arg3[%c0_177, %c81, %c0_178] : memref<1x128x32xf32, #tpu.memory_space<vmem>>, vector<1x1x32xf32>
    %583 = vector.shape_cast %582 : vector<1x1x32xf32> to vector<1x32xf32>
    %584 = vector.broadcast %581 : vector<8x1xf32> to vector<8x32xf32>
    %585 = vector.broadcast %583 : vector<1x32xf32> to vector<8x32xf32>
    %586 = arith.mulf %584, %585 : vector<8x32xf32>
    %587 = arith.maximumf %580, %586 : vector<8x32xf32>
    %588 = vector.extract_strided_slice %13 {offsets = [0, 82], sizes = [8, 1], strides = [1, 1]} : vector<8x128xf32> to vector<8x1xf32>
    %c0_179 = arith.constant 0 : index
    %c82 = arith.constant 82 : index
    %c0_180 = arith.constant 0 : index
    %589 = vector.load %arg3[%c0_179, %c82, %c0_180] : memref<1x128x32xf32, #tpu.memory_space<vmem>>, vector<1x1x32xf32>
    %590 = vector.shape_cast %589 : vector<1x1x32xf32> to vector<1x32xf32>
    %591 = vector.broadcast %588 : vector<8x1xf32> to vector<8x32xf32>
    %592 = vector.broadcast %590 : vector<1x32xf32> to vector<8x32xf32>
    %593 = arith.mulf %591, %592 : vector<8x32xf32>
    %594 = arith.maximumf %587, %593 : vector<8x32xf32>
    %595 = vector.extract_strided_slice %13 {offsets = [0, 83], sizes = [8, 1], strides = [1, 1]} : vector<8x128xf32> to vector<8x1xf32>
    %c0_181 = arith.constant 0 : index
    %c83 = arith.constant 83 : index
    %c0_182 = arith.constant 0 : index
    %596 = vector.load %arg3[%c0_181, %c83, %c0_182] : memref<1x128x32xf32, #tpu.memory_space<vmem>>, vector<1x1x32xf32>
    %597 = vector.shape_cast %596 : vector<1x1x32xf32> to vector<1x32xf32>
    %598 = vector.broadcast %595 : vector<8x1xf32> to vector<8x32xf32>
    %599 = vector.broadcast %597 : vector<1x32xf32> to vector<8x32xf32>
    %600 = arith.mulf %598, %599 : vector<8x32xf32>
    %601 = arith.maximumf %594, %600 : vector<8x32xf32>
    %602 = vector.extract_strided_slice %13 {offsets = [0, 84], sizes = [8, 1], strides = [1, 1]} : vector<8x128xf32> to vector<8x1xf32>
    %c0_183 = arith.constant 0 : index
    %c84 = arith.constant 84 : index
    %c0_184 = arith.constant 0 : index
    %603 = vector.load %arg3[%c0_183, %c84, %c0_184] : memref<1x128x32xf32, #tpu.memory_space<vmem>>, vector<1x1x32xf32>
    %604 = vector.shape_cast %603 : vector<1x1x32xf32> to vector<1x32xf32>
    %605 = vector.broadcast %602 : vector<8x1xf32> to vector<8x32xf32>
    %606 = vector.broadcast %604 : vector<1x32xf32> to vector<8x32xf32>
    %607 = arith.mulf %605, %606 : vector<8x32xf32>
    %608 = arith.maximumf %601, %607 : vector<8x32xf32>
    %609 = vector.extract_strided_slice %13 {offsets = [0, 85], sizes = [8, 1], strides = [1, 1]} : vector<8x128xf32> to vector<8x1xf32>
    %c0_185 = arith.constant 0 : index
    %c85 = arith.constant 85 : index
    %c0_186 = arith.constant 0 : index
    %610 = vector.load %arg3[%c0_185, %c85, %c0_186] : memref<1x128x32xf32, #tpu.memory_space<vmem>>, vector<1x1x32xf32>
    %611 = vector.shape_cast %610 : vector<1x1x32xf32> to vector<1x32xf32>
    %612 = vector.broadcast %609 : vector<8x1xf32> to vector<8x32xf32>
    %613 = vector.broadcast %611 : vector<1x32xf32> to vector<8x32xf32>
    %614 = arith.mulf %612, %613 : vector<8x32xf32>
    %615 = arith.maximumf %608, %614 : vector<8x32xf32>
    %616 = vector.extract_strided_slice %13 {offsets = [0, 86], sizes = [8, 1], strides = [1, 1]} : vector<8x128xf32> to vector<8x1xf32>
    %c0_187 = arith.constant 0 : index
    %c86 = arith.constant 86 : index
    %c0_188 = arith.constant 0 : index
    %617 = vector.load %arg3[%c0_187, %c86, %c0_188] : memref<1x128x32xf32, #tpu.memory_space<vmem>>, vector<1x1x32xf32>
    %618 = vector.shape_cast %617 : vector<1x1x32xf32> to vector<1x32xf32>
    %619 = vector.broadcast %616 : vector<8x1xf32> to vector<8x32xf32>
    %620 = vector.broadcast %618 : vector<1x32xf32> to vector<8x32xf32>
    %621 = arith.mulf %619, %620 : vector<8x32xf32>
    %622 = arith.maximumf %615, %621 : vector<8x32xf32>
    %623 = vector.extract_strided_slice %13 {offsets = [0, 87], sizes = [8, 1], strides = [1, 1]} : vector<8x128xf32> to vector<8x1xf32>
    %c0_189 = arith.constant 0 : index
    %c87 = arith.constant 87 : index
    %c0_190 = arith.constant 0 : index
    %624 = vector.load %arg3[%c0_189, %c87, %c0_190] : memref<1x128x32xf32, #tpu.memory_space<vmem>>, vector<1x1x32xf32>
    %625 = vector.shape_cast %624 : vector<1x1x32xf32> to vector<1x32xf32>
    %626 = vector.broadcast %623 : vector<8x1xf32> to vector<8x32xf32>
    %627 = vector.broadcast %625 : vector<1x32xf32> to vector<8x32xf32>
    %628 = arith.mulf %626, %627 : vector<8x32xf32>
    %629 = arith.maximumf %622, %628 : vector<8x32xf32>
    %630 = vector.extract_strided_slice %13 {offsets = [0, 88], sizes = [8, 1], strides = [1, 1]} : vector<8x128xf32> to vector<8x1xf32>
    %c0_191 = arith.constant 0 : index
    %c88 = arith.constant 88 : index
    %c0_192 = arith.constant 0 : index
    %631 = vector.load %arg3[%c0_191, %c88, %c0_192] : memref<1x128x32xf32, #tpu.memory_space<vmem>>, vector<1x1x32xf32>
    %632 = vector.shape_cast %631 : vector<1x1x32xf32> to vector<1x32xf32>
    %633 = vector.broadcast %630 : vector<8x1xf32> to vector<8x32xf32>
    %634 = vector.broadcast %632 : vector<1x32xf32> to vector<8x32xf32>
    %635 = arith.mulf %633, %634 : vector<8x32xf32>
    %636 = arith.maximumf %629, %635 : vector<8x32xf32>
    %637 = vector.extract_strided_slice %13 {offsets = [0, 89], sizes = [8, 1], strides = [1, 1]} : vector<8x128xf32> to vector<8x1xf32>
    %c0_193 = arith.constant 0 : index
    %c89 = arith.constant 89 : index
    %c0_194 = arith.constant 0 : index
    %638 = vector.load %arg3[%c0_193, %c89, %c0_194] : memref<1x128x32xf32, #tpu.memory_space<vmem>>, vector<1x1x32xf32>
    %639 = vector.shape_cast %638 : vector<1x1x32xf32> to vector<1x32xf32>
    %640 = vector.broadcast %637 : vector<8x1xf32> to vector<8x32xf32>
    %641 = vector.broadcast %639 : vector<1x32xf32> to vector<8x32xf32>
    %642 = arith.mulf %640, %641 : vector<8x32xf32>
    %643 = arith.maximumf %636, %642 : vector<8x32xf32>
    %644 = vector.extract_strided_slice %13 {offsets = [0, 90], sizes = [8, 1], strides = [1, 1]} : vector<8x128xf32> to vector<8x1xf32>
    %c0_195 = arith.constant 0 : index
    %c90 = arith.constant 90 : index
    %c0_196 = arith.constant 0 : index
    %645 = vector.load %arg3[%c0_195, %c90, %c0_196] : memref<1x128x32xf32, #tpu.memory_space<vmem>>, vector<1x1x32xf32>
    %646 = vector.shape_cast %645 : vector<1x1x32xf32> to vector<1x32xf32>
    %647 = vector.broadcast %644 : vector<8x1xf32> to vector<8x32xf32>
    %648 = vector.broadcast %646 : vector<1x32xf32> to vector<8x32xf32>
    %649 = arith.mulf %647, %648 : vector<8x32xf32>
    %650 = arith.maximumf %643, %649 : vector<8x32xf32>
    %651 = vector.extract_strided_slice %13 {offsets = [0, 91], sizes = [8, 1], strides = [1, 1]} : vector<8x128xf32> to vector<8x1xf32>
    %c0_197 = arith.constant 0 : index
    %c91 = arith.constant 91 : index
    %c0_198 = arith.constant 0 : index
    %652 = vector.load %arg3[%c0_197, %c91, %c0_198] : memref<1x128x32xf32, #tpu.memory_space<vmem>>, vector<1x1x32xf32>
    %653 = vector.shape_cast %652 : vector<1x1x32xf32> to vector<1x32xf32>
    %654 = vector.broadcast %651 : vector<8x1xf32> to vector<8x32xf32>
    %655 = vector.broadcast %653 : vector<1x32xf32> to vector<8x32xf32>
    %656 = arith.mulf %654, %655 : vector<8x32xf32>
    %657 = arith.maximumf %650, %656 : vector<8x32xf32>
    %658 = vector.extract_strided_slice %13 {offsets = [0, 92], sizes = [8, 1], strides = [1, 1]} : vector<8x128xf32> to vector<8x1xf32>
    %c0_199 = arith.constant 0 : index
    %c92 = arith.constant 92 : index
    %c0_200 = arith.constant 0 : index
    %659 = vector.load %arg3[%c0_199, %c92, %c0_200] : memref<1x128x32xf32, #tpu.memory_space<vmem>>, vector<1x1x32xf32>
    %660 = vector.shape_cast %659 : vector<1x1x32xf32> to vector<1x32xf32>
    %661 = vector.broadcast %658 : vector<8x1xf32> to vector<8x32xf32>
    %662 = vector.broadcast %660 : vector<1x32xf32> to vector<8x32xf32>
    %663 = arith.mulf %661, %662 : vector<8x32xf32>
    %664 = arith.maximumf %657, %663 : vector<8x32xf32>
    %665 = vector.extract_strided_slice %13 {offsets = [0, 93], sizes = [8, 1], strides = [1, 1]} : vector<8x128xf32> to vector<8x1xf32>
    %c0_201 = arith.constant 0 : index
    %c93 = arith.constant 93 : index
    %c0_202 = arith.constant 0 : index
    %666 = vector.load %arg3[%c0_201, %c93, %c0_202] : memref<1x128x32xf32, #tpu.memory_space<vmem>>, vector<1x1x32xf32>
    %667 = vector.shape_cast %666 : vector<1x1x32xf32> to vector<1x32xf32>
    %668 = vector.broadcast %665 : vector<8x1xf32> to vector<8x32xf32>
    %669 = vector.broadcast %667 : vector<1x32xf32> to vector<8x32xf32>
    %670 = arith.mulf %668, %669 : vector<8x32xf32>
    %671 = arith.maximumf %664, %670 : vector<8x32xf32>
    %672 = vector.extract_strided_slice %13 {offsets = [0, 94], sizes = [8, 1], strides = [1, 1]} : vector<8x128xf32> to vector<8x1xf32>
    %c0_203 = arith.constant 0 : index
    %c94 = arith.constant 94 : index
    %c0_204 = arith.constant 0 : index
    %673 = vector.load %arg3[%c0_203, %c94, %c0_204] : memref<1x128x32xf32, #tpu.memory_space<vmem>>, vector<1x1x32xf32>
    %674 = vector.shape_cast %673 : vector<1x1x32xf32> to vector<1x32xf32>
    %675 = vector.broadcast %672 : vector<8x1xf32> to vector<8x32xf32>
    %676 = vector.broadcast %674 : vector<1x32xf32> to vector<8x32xf32>
    %677 = arith.mulf %675, %676 : vector<8x32xf32>
    %678 = arith.maximumf %671, %677 : vector<8x32xf32>
    %679 = vector.extract_strided_slice %13 {offsets = [0, 95], sizes = [8, 1], strides = [1, 1]} : vector<8x128xf32> to vector<8x1xf32>
    %c0_205 = arith.constant 0 : index
    %c95 = arith.constant 95 : index
    %c0_206 = arith.constant 0 : index
    %680 = vector.load %arg3[%c0_205, %c95, %c0_206] : memref<1x128x32xf32, #tpu.memory_space<vmem>>, vector<1x1x32xf32>
    %681 = vector.shape_cast %680 : vector<1x1x32xf32> to vector<1x32xf32>
    %682 = vector.broadcast %679 : vector<8x1xf32> to vector<8x32xf32>
    %683 = vector.broadcast %681 : vector<1x32xf32> to vector<8x32xf32>
    %684 = arith.mulf %682, %683 : vector<8x32xf32>
    %685 = arith.maximumf %678, %684 : vector<8x32xf32>
    %686 = vector.extract_strided_slice %13 {offsets = [0, 96], sizes = [8, 1], strides = [1, 1]} : vector<8x128xf32> to vector<8x1xf32>
    %c0_207 = arith.constant 0 : index
    %c96 = arith.constant 96 : index
    %c0_208 = arith.constant 0 : index
    %687 = vector.load %arg3[%c0_207, %c96, %c0_208] : memref<1x128x32xf32, #tpu.memory_space<vmem>>, vector<1x1x32xf32>
    %688 = vector.shape_cast %687 : vector<1x1x32xf32> to vector<1x32xf32>
    %689 = vector.broadcast %686 : vector<8x1xf32> to vector<8x32xf32>
    %690 = vector.broadcast %688 : vector<1x32xf32> to vector<8x32xf32>
    %691 = arith.mulf %689, %690 : vector<8x32xf32>
    %692 = arith.maximumf %685, %691 : vector<8x32xf32>
    %693 = vector.extract_strided_slice %13 {offsets = [0, 97], sizes = [8, 1], strides = [1, 1]} : vector<8x128xf32> to vector<8x1xf32>
    %c0_209 = arith.constant 0 : index
    %c97 = arith.constant 97 : index
    %c0_210 = arith.constant 0 : index
    %694 = vector.load %arg3[%c0_209, %c97, %c0_210] : memref<1x128x32xf32, #tpu.memory_space<vmem>>, vector<1x1x32xf32>
    %695 = vector.shape_cast %694 : vector<1x1x32xf32> to vector<1x32xf32>
    %696 = vector.broadcast %693 : vector<8x1xf32> to vector<8x32xf32>
    %697 = vector.broadcast %695 : vector<1x32xf32> to vector<8x32xf32>
    %698 = arith.mulf %696, %697 : vector<8x32xf32>
    %699 = arith.maximumf %692, %698 : vector<8x32xf32>
    %700 = vector.extract_strided_slice %13 {offsets = [0, 98], sizes = [8, 1], strides = [1, 1]} : vector<8x128xf32> to vector<8x1xf32>
    %c0_211 = arith.constant 0 : index
    %c98 = arith.constant 98 : index
    %c0_212 = arith.constant 0 : index
    %701 = vector.load %arg3[%c0_211, %c98, %c0_212] : memref<1x128x32xf32, #tpu.memory_space<vmem>>, vector<1x1x32xf32>
    %702 = vector.shape_cast %701 : vector<1x1x32xf32> to vector<1x32xf32>
    %703 = vector.broadcast %700 : vector<8x1xf32> to vector<8x32xf32>
    %704 = vector.broadcast %702 : vector<1x32xf32> to vector<8x32xf32>
    %705 = arith.mulf %703, %704 : vector<8x32xf32>
    %706 = arith.maximumf %699, %705 : vector<8x32xf32>
    %707 = vector.extract_strided_slice %13 {offsets = [0, 99], sizes = [8, 1], strides = [1, 1]} : vector<8x128xf32> to vector<8x1xf32>
    %c0_213 = arith.constant 0 : index
    %c99 = arith.constant 99 : index
    %c0_214 = arith.constant 0 : index
    %708 = vector.load %arg3[%c0_213, %c99, %c0_214] : memref<1x128x32xf32, #tpu.memory_space<vmem>>, vector<1x1x32xf32>
    %709 = vector.shape_cast %708 : vector<1x1x32xf32> to vector<1x32xf32>
    %710 = vector.broadcast %707 : vector<8x1xf32> to vector<8x32xf32>
    %711 = vector.broadcast %709 : vector<1x32xf32> to vector<8x32xf32>
    %712 = arith.mulf %710, %711 : vector<8x32xf32>
    %713 = arith.maximumf %706, %712 : vector<8x32xf32>
    %714 = vector.extract_strided_slice %13 {offsets = [0, 100], sizes = [8, 1], strides = [1, 1]} : vector<8x128xf32> to vector<8x1xf32>
    %c0_215 = arith.constant 0 : index
    %c100 = arith.constant 100 : index
    %c0_216 = arith.constant 0 : index
    %715 = vector.load %arg3[%c0_215, %c100, %c0_216] : memref<1x128x32xf32, #tpu.memory_space<vmem>>, vector<1x1x32xf32>
    %716 = vector.shape_cast %715 : vector<1x1x32xf32> to vector<1x32xf32>
    %717 = vector.broadcast %714 : vector<8x1xf32> to vector<8x32xf32>
    %718 = vector.broadcast %716 : vector<1x32xf32> to vector<8x32xf32>
    %719 = arith.mulf %717, %718 : vector<8x32xf32>
    %720 = arith.maximumf %713, %719 : vector<8x32xf32>
    %721 = vector.extract_strided_slice %13 {offsets = [0, 101], sizes = [8, 1], strides = [1, 1]} : vector<8x128xf32> to vector<8x1xf32>
    %c0_217 = arith.constant 0 : index
    %c101 = arith.constant 101 : index
    %c0_218 = arith.constant 0 : index
    %722 = vector.load %arg3[%c0_217, %c101, %c0_218] : memref<1x128x32xf32, #tpu.memory_space<vmem>>, vector<1x1x32xf32>
    %723 = vector.shape_cast %722 : vector<1x1x32xf32> to vector<1x32xf32>
    %724 = vector.broadcast %721 : vector<8x1xf32> to vector<8x32xf32>
    %725 = vector.broadcast %723 : vector<1x32xf32> to vector<8x32xf32>
    %726 = arith.mulf %724, %725 : vector<8x32xf32>
    %727 = arith.maximumf %720, %726 : vector<8x32xf32>
    %728 = vector.extract_strided_slice %13 {offsets = [0, 102], sizes = [8, 1], strides = [1, 1]} : vector<8x128xf32> to vector<8x1xf32>
    %c0_219 = arith.constant 0 : index
    %c102 = arith.constant 102 : index
    %c0_220 = arith.constant 0 : index
    %729 = vector.load %arg3[%c0_219, %c102, %c0_220] : memref<1x128x32xf32, #tpu.memory_space<vmem>>, vector<1x1x32xf32>
    %730 = vector.shape_cast %729 : vector<1x1x32xf32> to vector<1x32xf32>
    %731 = vector.broadcast %728 : vector<8x1xf32> to vector<8x32xf32>
    %732 = vector.broadcast %730 : vector<1x32xf32> to vector<8x32xf32>
    %733 = arith.mulf %731, %732 : vector<8x32xf32>
    %734 = arith.maximumf %727, %733 : vector<8x32xf32>
    %735 = vector.extract_strided_slice %13 {offsets = [0, 103], sizes = [8, 1], strides = [1, 1]} : vector<8x128xf32> to vector<8x1xf32>
    %c0_221 = arith.constant 0 : index
    %c103 = arith.constant 103 : index
    %c0_222 = arith.constant 0 : index
    %736 = vector.load %arg3[%c0_221, %c103, %c0_222] : memref<1x128x32xf32, #tpu.memory_space<vmem>>, vector<1x1x32xf32>
    %737 = vector.shape_cast %736 : vector<1x1x32xf32> to vector<1x32xf32>
    %738 = vector.broadcast %735 : vector<8x1xf32> to vector<8x32xf32>
    %739 = vector.broadcast %737 : vector<1x32xf32> to vector<8x32xf32>
    %740 = arith.mulf %738, %739 : vector<8x32xf32>
    %741 = arith.maximumf %734, %740 : vector<8x32xf32>
    %742 = vector.extract_strided_slice %13 {offsets = [0, 104], sizes = [8, 1], strides = [1, 1]} : vector<8x128xf32> to vector<8x1xf32>
    %c0_223 = arith.constant 0 : index
    %c104 = arith.constant 104 : index
    %c0_224 = arith.constant 0 : index
    %743 = vector.load %arg3[%c0_223, %c104, %c0_224] : memref<1x128x32xf32, #tpu.memory_space<vmem>>, vector<1x1x32xf32>
    %744 = vector.shape_cast %743 : vector<1x1x32xf32> to vector<1x32xf32>
    %745 = vector.broadcast %742 : vector<8x1xf32> to vector<8x32xf32>
    %746 = vector.broadcast %744 : vector<1x32xf32> to vector<8x32xf32>
    %747 = arith.mulf %745, %746 : vector<8x32xf32>
    %748 = arith.maximumf %741, %747 : vector<8x32xf32>
    %749 = vector.extract_strided_slice %13 {offsets = [0, 105], sizes = [8, 1], strides = [1, 1]} : vector<8x128xf32> to vector<8x1xf32>
    %c0_225 = arith.constant 0 : index
    %c105 = arith.constant 105 : index
    %c0_226 = arith.constant 0 : index
    %750 = vector.load %arg3[%c0_225, %c105, %c0_226] : memref<1x128x32xf32, #tpu.memory_space<vmem>>, vector<1x1x32xf32>
    %751 = vector.shape_cast %750 : vector<1x1x32xf32> to vector<1x32xf32>
    %752 = vector.broadcast %749 : vector<8x1xf32> to vector<8x32xf32>
    %753 = vector.broadcast %751 : vector<1x32xf32> to vector<8x32xf32>
    %754 = arith.mulf %752, %753 : vector<8x32xf32>
    %755 = arith.maximumf %748, %754 : vector<8x32xf32>
    %756 = vector.extract_strided_slice %13 {offsets = [0, 106], sizes = [8, 1], strides = [1, 1]} : vector<8x128xf32> to vector<8x1xf32>
    %c0_227 = arith.constant 0 : index
    %c106 = arith.constant 106 : index
    %c0_228 = arith.constant 0 : index
    %757 = vector.load %arg3[%c0_227, %c106, %c0_228] : memref<1x128x32xf32, #tpu.memory_space<vmem>>, vector<1x1x32xf32>
    %758 = vector.shape_cast %757 : vector<1x1x32xf32> to vector<1x32xf32>
    %759 = vector.broadcast %756 : vector<8x1xf32> to vector<8x32xf32>
    %760 = vector.broadcast %758 : vector<1x32xf32> to vector<8x32xf32>
    %761 = arith.mulf %759, %760 : vector<8x32xf32>
    %762 = arith.maximumf %755, %761 : vector<8x32xf32>
    %763 = vector.extract_strided_slice %13 {offsets = [0, 107], sizes = [8, 1], strides = [1, 1]} : vector<8x128xf32> to vector<8x1xf32>
    %c0_229 = arith.constant 0 : index
    %c107 = arith.constant 107 : index
    %c0_230 = arith.constant 0 : index
    %764 = vector.load %arg3[%c0_229, %c107, %c0_230] : memref<1x128x32xf32, #tpu.memory_space<vmem>>, vector<1x1x32xf32>
    %765 = vector.shape_cast %764 : vector<1x1x32xf32> to vector<1x32xf32>
    %766 = vector.broadcast %763 : vector<8x1xf32> to vector<8x32xf32>
    %767 = vector.broadcast %765 : vector<1x32xf32> to vector<8x32xf32>
    %768 = arith.mulf %766, %767 : vector<8x32xf32>
    %769 = arith.maximumf %762, %768 : vector<8x32xf32>
    %770 = vector.extract_strided_slice %13 {offsets = [0, 108], sizes = [8, 1], strides = [1, 1]} : vector<8x128xf32> to vector<8x1xf32>
    %c0_231 = arith.constant 0 : index
    %c108 = arith.constant 108 : index
    %c0_232 = arith.constant 0 : index
    %771 = vector.load %arg3[%c0_231, %c108, %c0_232] : memref<1x128x32xf32, #tpu.memory_space<vmem>>, vector<1x1x32xf32>
    %772 = vector.shape_cast %771 : vector<1x1x32xf32> to vector<1x32xf32>
    %773 = vector.broadcast %770 : vector<8x1xf32> to vector<8x32xf32>
    %774 = vector.broadcast %772 : vector<1x32xf32> to vector<8x32xf32>
    %775 = arith.mulf %773, %774 : vector<8x32xf32>
    %776 = arith.maximumf %769, %775 : vector<8x32xf32>
    %777 = vector.extract_strided_slice %13 {offsets = [0, 109], sizes = [8, 1], strides = [1, 1]} : vector<8x128xf32> to vector<8x1xf32>
    %c0_233 = arith.constant 0 : index
    %c109 = arith.constant 109 : index
    %c0_234 = arith.constant 0 : index
    %778 = vector.load %arg3[%c0_233, %c109, %c0_234] : memref<1x128x32xf32, #tpu.memory_space<vmem>>, vector<1x1x32xf32>
    %779 = vector.shape_cast %778 : vector<1x1x32xf32> to vector<1x32xf32>
    %780 = vector.broadcast %777 : vector<8x1xf32> to vector<8x32xf32>
    %781 = vector.broadcast %779 : vector<1x32xf32> to vector<8x32xf32>
    %782 = arith.mulf %780, %781 : vector<8x32xf32>
    %783 = arith.maximumf %776, %782 : vector<8x32xf32>
    %784 = vector.extract_strided_slice %13 {offsets = [0, 110], sizes = [8, 1], strides = [1, 1]} : vector<8x128xf32> to vector<8x1xf32>
    %c0_235 = arith.constant 0 : index
    %c110 = arith.constant 110 : index
    %c0_236 = arith.constant 0 : index
    %785 = vector.load %arg3[%c0_235, %c110, %c0_236] : memref<1x128x32xf32, #tpu.memory_space<vmem>>, vector<1x1x32xf32>
    %786 = vector.shape_cast %785 : vector<1x1x32xf32> to vector<1x32xf32>
    %787 = vector.broadcast %784 : vector<8x1xf32> to vector<8x32xf32>
    %788 = vector.broadcast %786 : vector<1x32xf32> to vector<8x32xf32>
    %789 = arith.mulf %787, %788 : vector<8x32xf32>
    %790 = arith.maximumf %783, %789 : vector<8x32xf32>
    %791 = vector.extract_strided_slice %13 {offsets = [0, 111], sizes = [8, 1], strides = [1, 1]} : vector<8x128xf32> to vector<8x1xf32>
    %c0_237 = arith.constant 0 : index
    %c111 = arith.constant 111 : index
    %c0_238 = arith.constant 0 : index
    %792 = vector.load %arg3[%c0_237, %c111, %c0_238] : memref<1x128x32xf32, #tpu.memory_space<vmem>>, vector<1x1x32xf32>
    %793 = vector.shape_cast %792 : vector<1x1x32xf32> to vector<1x32xf32>
    %794 = vector.broadcast %791 : vector<8x1xf32> to vector<8x32xf32>
    %795 = vector.broadcast %793 : vector<1x32xf32> to vector<8x32xf32>
    %796 = arith.mulf %794, %795 : vector<8x32xf32>
    %797 = arith.maximumf %790, %796 : vector<8x32xf32>
    %798 = vector.extract_strided_slice %13 {offsets = [0, 112], sizes = [8, 1], strides = [1, 1]} : vector<8x128xf32> to vector<8x1xf32>
    %c0_239 = arith.constant 0 : index
    %c112 = arith.constant 112 : index
    %c0_240 = arith.constant 0 : index
    %799 = vector.load %arg3[%c0_239, %c112, %c0_240] : memref<1x128x32xf32, #tpu.memory_space<vmem>>, vector<1x1x32xf32>
    %800 = vector.shape_cast %799 : vector<1x1x32xf32> to vector<1x32xf32>
    %801 = vector.broadcast %798 : vector<8x1xf32> to vector<8x32xf32>
    %802 = vector.broadcast %800 : vector<1x32xf32> to vector<8x32xf32>
    %803 = arith.mulf %801, %802 : vector<8x32xf32>
    %804 = arith.maximumf %797, %803 : vector<8x32xf32>
    %805 = vector.extract_strided_slice %13 {offsets = [0, 113], sizes = [8, 1], strides = [1, 1]} : vector<8x128xf32> to vector<8x1xf32>
    %c0_241 = arith.constant 0 : index
    %c113 = arith.constant 113 : index
    %c0_242 = arith.constant 0 : index
    %806 = vector.load %arg3[%c0_241, %c113, %c0_242] : memref<1x128x32xf32, #tpu.memory_space<vmem>>, vector<1x1x32xf32>
    %807 = vector.shape_cast %806 : vector<1x1x32xf32> to vector<1x32xf32>
    %808 = vector.broadcast %805 : vector<8x1xf32> to vector<8x32xf32>
    %809 = vector.broadcast %807 : vector<1x32xf32> to vector<8x32xf32>
    %810 = arith.mulf %808, %809 : vector<8x32xf32>
    %811 = arith.maximumf %804, %810 : vector<8x32xf32>
    %812 = vector.extract_strided_slice %13 {offsets = [0, 114], sizes = [8, 1], strides = [1, 1]} : vector<8x128xf32> to vector<8x1xf32>
    %c0_243 = arith.constant 0 : index
    %c114 = arith.constant 114 : index
    %c0_244 = arith.constant 0 : index
    %813 = vector.load %arg3[%c0_243, %c114, %c0_244] : memref<1x128x32xf32, #tpu.memory_space<vmem>>, vector<1x1x32xf32>
    %814 = vector.shape_cast %813 : vector<1x1x32xf32> to vector<1x32xf32>
    %815 = vector.broadcast %812 : vector<8x1xf32> to vector<8x32xf32>
    %816 = vector.broadcast %814 : vector<1x32xf32> to vector<8x32xf32>
    %817 = arith.mulf %815, %816 : vector<8x32xf32>
    %818 = arith.maximumf %811, %817 : vector<8x32xf32>
    %819 = vector.extract_strided_slice %13 {offsets = [0, 115], sizes = [8, 1], strides = [1, 1]} : vector<8x128xf32> to vector<8x1xf32>
    %c0_245 = arith.constant 0 : index
    %c115 = arith.constant 115 : index
    %c0_246 = arith.constant 0 : index
    %820 = vector.load %arg3[%c0_245, %c115, %c0_246] : memref<1x128x32xf32, #tpu.memory_space<vmem>>, vector<1x1x32xf32>
    %821 = vector.shape_cast %820 : vector<1x1x32xf32> to vector<1x32xf32>
    %822 = vector.broadcast %819 : vector<8x1xf32> to vector<8x32xf32>
    %823 = vector.broadcast %821 : vector<1x32xf32> to vector<8x32xf32>
    %824 = arith.mulf %822, %823 : vector<8x32xf32>
    %825 = arith.maximumf %818, %824 : vector<8x32xf32>
    %826 = vector.extract_strided_slice %13 {offsets = [0, 116], sizes = [8, 1], strides = [1, 1]} : vector<8x128xf32> to vector<8x1xf32>
    %c0_247 = arith.constant 0 : index
    %c116 = arith.constant 116 : index
    %c0_248 = arith.constant 0 : index
    %827 = vector.load %arg3[%c0_247, %c116, %c0_248] : memref<1x128x32xf32, #tpu.memory_space<vmem>>, vector<1x1x32xf32>
    %828 = vector.shape_cast %827 : vector<1x1x32xf32> to vector<1x32xf32>
    %829 = vector.broadcast %826 : vector<8x1xf32> to vector<8x32xf32>
    %830 = vector.broadcast %828 : vector<1x32xf32> to vector<8x32xf32>
    %831 = arith.mulf %829, %830 : vector<8x32xf32>
    %832 = arith.maximumf %825, %831 : vector<8x32xf32>
    %833 = vector.extract_strided_slice %13 {offsets = [0, 117], sizes = [8, 1], strides = [1, 1]} : vector<8x128xf32> to vector<8x1xf32>
    %c0_249 = arith.constant 0 : index
    %c117 = arith.constant 117 : index
    %c0_250 = arith.constant 0 : index
    %834 = vector.load %arg3[%c0_249, %c117, %c0_250] : memref<1x128x32xf32, #tpu.memory_space<vmem>>, vector<1x1x32xf32>
    %835 = vector.shape_cast %834 : vector<1x1x32xf32> to vector<1x32xf32>
    %836 = vector.broadcast %833 : vector<8x1xf32> to vector<8x32xf32>
    %837 = vector.broadcast %835 : vector<1x32xf32> to vector<8x32xf32>
    %838 = arith.mulf %836, %837 : vector<8x32xf32>
    %839 = arith.maximumf %832, %838 : vector<8x32xf32>
    %840 = vector.extract_strided_slice %13 {offsets = [0, 118], sizes = [8, 1], strides = [1, 1]} : vector<8x128xf32> to vector<8x1xf32>
    %c0_251 = arith.constant 0 : index
    %c118 = arith.constant 118 : index
    %c0_252 = arith.constant 0 : index
    %841 = vector.load %arg3[%c0_251, %c118, %c0_252] : memref<1x128x32xf32, #tpu.memory_space<vmem>>, vector<1x1x32xf32>
    %842 = vector.shape_cast %841 : vector<1x1x32xf32> to vector<1x32xf32>
    %843 = vector.broadcast %840 : vector<8x1xf32> to vector<8x32xf32>
    %844 = vector.broadcast %842 : vector<1x32xf32> to vector<8x32xf32>
    %845 = arith.mulf %843, %844 : vector<8x32xf32>
    %846 = arith.maximumf %839, %845 : vector<8x32xf32>
    %847 = vector.extract_strided_slice %13 {offsets = [0, 119], sizes = [8, 1], strides = [1, 1]} : vector<8x128xf32> to vector<8x1xf32>
    %c0_253 = arith.constant 0 : index
    %c119 = arith.constant 119 : index
    %c0_254 = arith.constant 0 : index
    %848 = vector.load %arg3[%c0_253, %c119, %c0_254] : memref<1x128x32xf32, #tpu.memory_space<vmem>>, vector<1x1x32xf32>
    %849 = vector.shape_cast %848 : vector<1x1x32xf32> to vector<1x32xf32>
    %850 = vector.broadcast %847 : vector<8x1xf32> to vector<8x32xf32>
    %851 = vector.broadcast %849 : vector<1x32xf32> to vector<8x32xf32>
    %852 = arith.mulf %850, %851 : vector<8x32xf32>
    %853 = arith.maximumf %846, %852 : vector<8x32xf32>
    %854 = vector.extract_strided_slice %13 {offsets = [0, 120], sizes = [8, 1], strides = [1, 1]} : vector<8x128xf32> to vector<8x1xf32>
    %c0_255 = arith.constant 0 : index
    %c120 = arith.constant 120 : index
    %c0_256 = arith.constant 0 : index
    %855 = vector.load %arg3[%c0_255, %c120, %c0_256] : memref<1x128x32xf32, #tpu.memory_space<vmem>>, vector<1x1x32xf32>
    %856 = vector.shape_cast %855 : vector<1x1x32xf32> to vector<1x32xf32>
    %857 = vector.broadcast %854 : vector<8x1xf32> to vector<8x32xf32>
    %858 = vector.broadcast %856 : vector<1x32xf32> to vector<8x32xf32>
    %859 = arith.mulf %857, %858 : vector<8x32xf32>
    %860 = arith.maximumf %853, %859 : vector<8x32xf32>
    %861 = vector.extract_strided_slice %13 {offsets = [0, 121], sizes = [8, 1], strides = [1, 1]} : vector<8x128xf32> to vector<8x1xf32>
    %c0_257 = arith.constant 0 : index
    %c121 = arith.constant 121 : index
    %c0_258 = arith.constant 0 : index
    %862 = vector.load %arg3[%c0_257, %c121, %c0_258] : memref<1x128x32xf32, #tpu.memory_space<vmem>>, vector<1x1x32xf32>
    %863 = vector.shape_cast %862 : vector<1x1x32xf32> to vector<1x32xf32>
    %864 = vector.broadcast %861 : vector<8x1xf32> to vector<8x32xf32>
    %865 = vector.broadcast %863 : vector<1x32xf32> to vector<8x32xf32>
    %866 = arith.mulf %864, %865 : vector<8x32xf32>
    %867 = arith.maximumf %860, %866 : vector<8x32xf32>
    %868 = vector.extract_strided_slice %13 {offsets = [0, 122], sizes = [8, 1], strides = [1, 1]} : vector<8x128xf32> to vector<8x1xf32>
    %c0_259 = arith.constant 0 : index
    %c122 = arith.constant 122 : index
    %c0_260 = arith.constant 0 : index
    %869 = vector.load %arg3[%c0_259, %c122, %c0_260] : memref<1x128x32xf32, #tpu.memory_space<vmem>>, vector<1x1x32xf32>
    %870 = vector.shape_cast %869 : vector<1x1x32xf32> to vector<1x32xf32>
    %871 = vector.broadcast %868 : vector<8x1xf32> to vector<8x32xf32>
    %872 = vector.broadcast %870 : vector<1x32xf32> to vector<8x32xf32>
    %873 = arith.mulf %871, %872 : vector<8x32xf32>
    %874 = arith.maximumf %867, %873 : vector<8x32xf32>
    %875 = vector.extract_strided_slice %13 {offsets = [0, 123], sizes = [8, 1], strides = [1, 1]} : vector<8x128xf32> to vector<8x1xf32>
    %c0_261 = arith.constant 0 : index
    %c123 = arith.constant 123 : index
    %c0_262 = arith.constant 0 : index
    %876 = vector.load %arg3[%c0_261, %c123, %c0_262] : memref<1x128x32xf32, #tpu.memory_space<vmem>>, vector<1x1x32xf32>
    %877 = vector.shape_cast %876 : vector<1x1x32xf32> to vector<1x32xf32>
    %878 = vector.broadcast %875 : vector<8x1xf32> to vector<8x32xf32>
    %879 = vector.broadcast %877 : vector<1x32xf32> to vector<8x32xf32>
    %880 = arith.mulf %878, %879 : vector<8x32xf32>
    %881 = arith.maximumf %874, %880 : vector<8x32xf32>
    %882 = vector.extract_strided_slice %13 {offsets = [0, 124], sizes = [8, 1], strides = [1, 1]} : vector<8x128xf32> to vector<8x1xf32>
    %c0_263 = arith.constant 0 : index
    %c124 = arith.constant 124 : index
    %c0_264 = arith.constant 0 : index
    %883 = vector.load %arg3[%c0_263, %c124, %c0_264] : memref<1x128x32xf32, #tpu.memory_space<vmem>>, vector<1x1x32xf32>
    %884 = vector.shape_cast %883 : vector<1x1x32xf32> to vector<1x32xf32>
    %885 = vector.broadcast %882 : vector<8x1xf32> to vector<8x32xf32>
    %886 = vector.broadcast %884 : vector<1x32xf32> to vector<8x32xf32>
    %887 = arith.mulf %885, %886 : vector<8x32xf32>
    %888 = arith.maximumf %881, %887 : vector<8x32xf32>
    %889 = vector.extract_strided_slice %13 {offsets = [0, 125], sizes = [8, 1], strides = [1, 1]} : vector<8x128xf32> to vector<8x1xf32>
    %c0_265 = arith.constant 0 : index
    %c125 = arith.constant 125 : index
    %c0_266 = arith.constant 0 : index
    %890 = vector.load %arg3[%c0_265, %c125, %c0_266] : memref<1x128x32xf32, #tpu.memory_space<vmem>>, vector<1x1x32xf32>
    %891 = vector.shape_cast %890 : vector<1x1x32xf32> to vector<1x32xf32>
    %892 = vector.broadcast %889 : vector<8x1xf32> to vector<8x32xf32>
    %893 = vector.broadcast %891 : vector<1x32xf32> to vector<8x32xf32>
    %894 = arith.mulf %892, %893 : vector<8x32xf32>
    %895 = arith.maximumf %888, %894 : vector<8x32xf32>
    %896 = vector.extract_strided_slice %13 {offsets = [0, 126], sizes = [8, 1], strides = [1, 1]} : vector<8x128xf32> to vector<8x1xf32>
    %c0_267 = arith.constant 0 : index
    %c126 = arith.constant 126 : index
    %c0_268 = arith.constant 0 : index
    %897 = vector.load %arg3[%c0_267, %c126, %c0_268] : memref<1x128x32xf32, #tpu.memory_space<vmem>>, vector<1x1x32xf32>
    %898 = vector.shape_cast %897 : vector<1x1x32xf32> to vector<1x32xf32>
    %899 = vector.broadcast %896 : vector<8x1xf32> to vector<8x32xf32>
    %900 = vector.broadcast %898 : vector<1x32xf32> to vector<8x32xf32>
    %901 = arith.mulf %899, %900 : vector<8x32xf32>
    %902 = arith.maximumf %895, %901 : vector<8x32xf32>
    %903 = vector.extract_strided_slice %13 {offsets = [0, 127], sizes = [8, 1], strides = [1, 1]} : vector<8x128xf32> to vector<8x1xf32>
    %c0_269 = arith.constant 0 : index
    %c127 = arith.constant 127 : index
    %c0_270 = arith.constant 0 : index
    %904 = vector.load %arg3[%c0_269, %c127, %c0_270] : memref<1x128x32xf32, #tpu.memory_space<vmem>>, vector<1x1x32xf32>
    %905 = vector.shape_cast %904 : vector<1x1x32xf32> to vector<1x32xf32>
    %906 = vector.broadcast %903 : vector<8x1xf32> to vector<8x32xf32>
    %907 = vector.broadcast %905 : vector<1x32xf32> to vector<8x32xf32>
    %908 = arith.mulf %906, %907 : vector<8x32xf32>
    %909 = arith.maximumf %902, %908 : vector<8x32xf32>
    %c0_271 = arith.constant 0 : index
    %c0_272 = arith.constant 0 : index
    %910 = vector.load %arg8[%c0_271, %c0_272] : memref<8x32xf32, #tpu.memory_space<vmem>>, vector<8x32xf32>
    %911 = arith.maximumf %910, %909 : vector<8x32xf32>
    %c0_273 = arith.constant 0 : index
    %c0_274 = arith.constant 0 : index
    %912 = vector.load %arg8[%c0_273, %c0_274] : memref<8x32xf32, #tpu.memory_space<vmem>>, vector<8x32xf32>
    tpu.vector_store %arg8[%c0_273, %c0_274], %911 {strides = array<i32>} : memref<8x32xf32, #tpu.memory_space<vmem>>, vector<8x32xf32>,
    %c1_i32 = arith.constant 1 : i32
    %913 = arith.cmpi eq, %arg2, %c1_i32 : i32
    %914 = arith.extui %913 : i1 to i32
    %c0_i32_275 = arith.constant 0 : i32
    %915 = arith.cmpi ne, %914, %c0_i32_275 : i32
    scf.if %915 {
      %c0_276 = arith.constant 0 : index
      %c0_277 = arith.constant 0 : index
      %c0_278 = arith.constant 0 : index
      %916 = vector.load %arg5[%c0_276, %c0_277, %c0_278] : memref<1x8x1xf32, #tpu.memory_space<vmem>>, vector<1x8x1xf32>
      %917 = vector.shape_cast %916 : vector<1x8x1xf32> to vector<8x1xf32>
      %918 = tpu.reciprocal %917 : vector<8x1xf32> -> vector<8x1xf32>
      %c0_279 = arith.constant 0 : index
      %c0_280 = arith.constant 0 : index
      %919 = vector.load %arg8[%c0_279, %c0_280] : memref<8x32xf32, #tpu.memory_space<vmem>>, vector<8x32xf32>
      %c0_281 = arith.constant 0 : index
      %c0_282 = arith.constant 0 : index
      %c0_283 = arith.constant 0 : index
      %920 = vector.load %arg6[%c0_281, %c0_282, %c0_283] : memref<1x8x32xf32, #tpu.memory_space<vmem>>, vector<1x8x32xf32>
      %921 = vector.shape_cast %920 : vector<1x8x32xf32> to vector<8x32xf32>
      %922 = vector.shape_cast %919 : vector<8x32xf32> to vector<1x8x32xf32>
      tpu.vector_store %arg6[%c0_281, %c0_282, %c0_283], %922 {strides = array<i32>} : memref<1x8x32xf32, #tpu.memory_space<vmem>>, vector<1x8x32xf32>,
      %c0_284 = arith.constant 0 : index
      %c0_285 = arith.constant 0 : index
      %923 = vector.load %arg9[%c0_284, %c0_285] : memref<8x32xf32, #tpu.memory_space<vmem>>, vector<8x32xf32>
      %924 = vector.broadcast %918 : vector<8x1xf32> to vector<8x32xf32>
      %925 = arith.mulf %923, %924 : vector<8x32xf32>
      %c0_286 = arith.constant 0 : index
      %c0_287 = arith.constant 0 : index
      %c0_288 = arith.constant 0 : index
      %926 = vector.load %arg7[%c0_286, %c0_287, %c0_288] : memref<1x8x32xf32, #tpu.memory_space<vmem>>, vector<1x8x32xf32>
      %927 = vector.shape_cast %926 : vector<1x8x32xf32> to vector<8x32xf32>
      %928 = vector.shape_cast %925 : vector<8x32xf32> to vector<1x8x32xf32>
      tpu.vector_store %arg7[%c0_286, %c0_287, %c0_288], %928 {strides = array<i32>} : memref<1x8x32xf32, #tpu.memory_space<vmem>>, vector<1x8x32xf32>,
    } else {
    }
    return
  }
  func.func @transform_0(%arg0: i32, %arg1: i32, %arg2: i32) -> (i32, i32, i32) {
    %c0_i32 = arith.constant 0 : i32
    %c0_i32_0 = arith.constant 0 : i32
    return %arg0, %arg2, %c0_i32 : i32, i32, i32
  }
  func.func @transform_1(%arg0: i32, %arg1: i32, %arg2: i32) -> (i32, i32, i32) {
    %c0_i32 = arith.constant 0 : i32
    return %arg0, %arg1, %arg2 : i32, i32, i32
  }
  func.func @transform_2(%arg0: i32, %arg1: i32, %arg2: i32) -> (i32, i32, i32) {
    %c0_i32 = arith.constant 0 : i32
    %c0_i32_0 = arith.constant 0 : i32
    return %arg0, %arg1, %c0_i32 : i32, i32, i32
  }
  func.func @transform_3(%arg0: i32, %arg1: i32, %arg2: i32) -> (i32, i32, i32) {
    %c0_i32 = arith.constant 0 : i32
    %c0_i32_0 = arith.constant 0 : i32
    return %arg0, %arg1, %c0_i32 : i32, i32, i32
  }
  func.func @transform_4(%arg0: i32, %arg1: i32, %arg2: i32) -> (i32, i32, i32) {
    %c0_i32 = arith.constant 0 : i32
    %c0_i32_0 = arith.constant 0 : i32
    return %arg0, %arg1, %c0_i32 : i32, i32, i32
  }
}

</mosaic_0001>

<llo_original>
// kernel: tpu_custom_call.1
$region0: #{tpu_custom_call.1}
  #allocation0 [shape = 'u32[]', space=smem, size = 0x4, offset = 0x4, fixed_abs, tag = 'smem constant byte address 0x4 - core index']
  #allocation1 [shape = 'u32[144,128]{1,0:T(1,128)}', space=vmem, size = 0x12000, scoped, tag = 'internal scratch']
  #allocation2 [shape = 'f32[8,32]{1,0:T(8,128)}', space=vmem, size = 0x1000, scoped, tag = 'scratch operand']
  #allocation3 [shape = 'f32[8,32]{1,0:T(8,128)}', space=vmem, size = 0x1000, scoped, tag = 'scratch operand']
  %s0 = inlined_call_operand.vmem [shape: f32[2,256,32], index: 0, kind: input, shape index: {}]
  %s1 = inlined_call_operand.vmem [shape: f32[2,8,256], index: 1, kind: input, shape index: {}]
  %s2 = inlined_call_operand.vmem [shape: f32[2,8,1], index: 2, kind: input, shape index: {}]
  %s3 = inlined_call_operand.hbm [shape: f32[2,8,32], index: 3, kind: output, shape index: {0}]
  %s4 = inlined_call_operand.hbm [shape: f32[2,8,32], index: 4, kind: output, shape index: {1}]
  %5 = xla_tuple %s3, %s4
  %s6 = sld [smem:[#allocation0]]
  $region61: #{tpu_custom_call.1} parent=0
    _
  %s8 = ssub.s32 1, %s6
  %s9 = scalar_select 0, %s8, %s6
  $region1: #{tpu_custom_call.1} parent=0
    #allocation4 [shape = 'u8[8192]{0}', space=vmem, size = 0x2000, scoped, tag = 'output window, operand 0']
    #allocation5 [shape = 's32[2]{0}', space=sflag, size = 0x8, scoped, tag = 'scoped memory for tpu_custom_call.1']
    #allocation6 [shape = 'u8[8192]{0}', space=vmem, size = 0x2000, scoped, tag = 'output window, operand 1']
    #allocation7 [shape = 's32[2]{0}', space=sflag, size = 0x8, scoped, tag = 'scoped memory for tpu_custom_call.1']
    %10 = vsyncpa [#allocation5], 0
    %s11 = scalar_lea.sflag [#allocation5], 1
    %12 = vsyncpa %s11, 0
    %13 = vsyncpa [#allocation7], 0
    %s14 = scalar_lea.sflag [#allocation7], 1
    %15 = vsyncpa %s14, 0
    loop: start=0, step=1, limit=6
    $region2: #{tpu_custom_call.1} parent=1 // loop_pre_header
      _
    $region3: #{tpu_custom_call.1} parent=1 // loop_header
      %s17 = sphi 0, %s21
      %p18 = scmp.ge.s32.totalorder %s17, 6
      %s24 = sphi 0, %s43
      %s25 = sphi 0, %s39
      %s26 = sphi 0, %s35
      %s27 = sphi 0, %s24
      %s28 = sphi 0, %s25
      %s29 = sphi 0, %s26
      %s30 = sphi 0, %s27
      %s31 = sphi 0, %s28
      %s32 = sphi 0, %s29
      %s48 = sphi 0, %s50
      %s51 = sphi 0, %s48
      %s52 = sphi 0, %s51
      %s68 = sphi 0, %s52
      %s78 = sphi 0, %s80
      %s81 = sphi 0, %s78
      %s82 = sphi 0, %s81
      %s98 = sphi 0, %s82
      %s106 = sphi 0, %s108
      %s109 = sphi 0, %s106
      %s110 = sphi 0, %s109
      %s126 = sphi 0, %s110
      %s134 = sphi 0, %s136
      %s137 = sphi 0, %s134
      %s138 = sphi 0, %s137
      %s154 = sphi 0, %s138
      %s162 = sphi 0, %s164
      %s165 = sphi 0, %s162
      %s166 = sphi 0, %s165
      %s182 = sphi 0, %s166
    $region4: #{tpu_custom_call.1} parent=1 // loop_header_branch
      %20 = sbr.rel (%p18) target = $region8
    $region5: #{tpu_custom_call.1} parent=1 // loop_body
      %s22 = ssub.s32 %s17, 1
      %s23 = ssub.s32 %s17, 2
      %s33 = sadd.s32 1, %s26
      %p34 = scmp.ge.s32.totalorder %s33, 2
      %s35 = scalar_select %p34, 0, %s33
      %s36 = sadd.s32 1, %s25
      %s37 = scalar_select %p34, %s36, %s25
      %p38 = scmp.ge.s32.totalorder %s37, 1
      %s39 = scalar_select %p38, 0, %s37
      %s40 = sadd.s32 1, %s24
      %s41 = scalar_select %p38, %s40, %s24
      %p42 = scmp.ge.s32.totalorder %s41, 2
      %s43 = scalar_select %p42, 0, %s41
      %s44 = ssub.s32 %s24, %s43
      %s45 = ssub.s32 %s26, %s35
      %s46 = sor.u32 %s44, %s45
      %p47 = scmp.eq.s32.totalorder %s46, 0
      %s49 = sadd.s32 %s48, 1
      %s50 = scalar_select %p47, %s48, %s49
      %p53 = pneg %p47
      %p54 = scmp.eq.s32.totalorder %s17, 3
      %p55 = por %p53, %p54
      %p56 = scmp.ne.s32.totalorder %s48, %s51
      %p57 = scmp.eq.s32.totalorder %s17, 0
      %p58 = por %p56, %p57
      %p59 = scmp.ne.s32.totalorder %s48, %s51
      %p60 = scmp.eq.s32.totalorder %s22, 3
      %p61 = por %p59, %p60
      %p62 = scmp.ne.s32.totalorder %s51, %s52
      %p63 = scmp.eq.s32.totalorder %s22, 0
      %p64 = por %p62, %p63
      %p65 = scmp.ne.s32.totalorder %s51, %s52
      %p66 = scmp.eq.s32.totalorder %s23, 3
      %p67 = por %p65, %p66
      %p69 = scmp.ne.s32.totalorder %s52, %s68
      %p70 = scmp.eq.s32.totalorder %s23, 0
      %p71 = por %p69, %p70
      %s72 = ssub.s32 %s24, %s43
      %s73 = ssub.s32 %s25, %s39
      %s74 = sor.u32 %s72, %s73
      %s75 = ssub.s32 %s26, %s35
      %s76 = sor.u32 %s74, %s75
      %p77 = scmp.eq.s32.totalorder %s76, 0
      %s79 = sadd.s32 %s78, 1
      %s80 = scalar_select %p77, %s78, %s79
      %p83 = pneg %p77
      %p84 = scmp.eq.s32.totalorder %s17, 3
      %p85 = por %p83, %p84
      %p86 = scmp.ne.s32.totalorder %s78, %s81
      %p87 = scmp.eq.s32.totalorder %s17, 0
      %p88 = por %p86, %p87
      %p89 = scmp.ne.s32.totalorder %s78, %s81
      %p90 = scmp.eq.s32.totalorder %s22, 3
      %p91 = por %p89, %p90
      %p92 = scmp.ne.s32.totalorder %s81, %s82
      %p93 = scmp.eq.s32.totalorder %s22, 0
      %p94 = por %p92, %p93
      %p95 = scmp.ne.s32.totalorder %s81, %s82
      %p96 = scmp.eq.s32.totalorder %s23, 3
      %p97 = por %p95, %p96
      %p99 = scmp.ne.s32.totalorder %s82, %s98
      %p100 = scmp.eq.s32.totalorder %s23, 0
      %p101 = por %p99, %p100
      %s102 = ssub.s32 %s24, %s43
      %s103 = ssub.s32 %s25, %s39
      %s104 = sor.u32 %s102, %s103
      %p105 = scmp.eq.s32.totalorder %s104, 0
      %s107 = sadd.s32 %s106, 1
      %s108 = scalar_select %p105, %s106, %s107
      %p111 = pneg %p105
      %p112 = scmp.eq.s32.totalorder %s17, 3
      %p113 = por %p111, %p112
      %p114 = scmp.ne.s32.totalorder %s106, %s109
      %p115 = scmp.eq.s32.totalorder %s17, 0
      %p116 = por %p114, %p115
      %p117 = scmp.ne.s32.totalorder %s106, %s109
      %p118 = scmp.eq.s32.totalorder %s22, 3
      %p119 = por %p117, %p118
      %p120 = scmp.ne.s32.totalorder %s109, %s110
      %p121 = scmp.eq.s32.totalorder %s22, 0
      %p122 = por %p120, %p121
      %p123 = scmp.ne.s32.totalorder %s109, %s110
      %p124 = scmp.eq.s32.totalorder %s23, 3
      %p125 = por %p123, %p124
      %p127 = scmp.ne.s32.totalorder %s110, %s126
      %p128 = scmp.eq.s32.totalorder %s23, 0
      %p129 = por %p127, %p128
      %s130 = ssub.s32 %s24, %s43
      %s131 = ssub.s32 %s25, %s39
      %s132 = sor.u32 %s130, %s131
      %p133 = scmp.eq.s32.totalorder %s132, 0
      %s135 = sadd.s32 %s134, 1
      %s136 = scalar_select %p133, %s134, %s135
      %p139 = pneg %p133
      %p140 = scmp.eq.s32.totalorder %s17, 3
      %p141 = por %p139, %p140
      %p142 = scmp.ne.s32.totalorder %s134, %s137
      %p143 = scmp.eq.s32.totalorder %s17, 0
      %p144 = por %p142, %p143
      %p145 = scmp.ne.s32.totalorder %s134, %s137
      %p146 = scmp.eq.s32.totalorder %s22, 3
      %p147 = por %p145, %p146
      %p148 = scmp.ne.s32.totalorder %s137, %s138
      %p149 = scmp.eq.s32.totalorder %s22, 0
      %p150 = por %p148, %p149
      %p151 = scmp.ne.s32.totalorder %s137, %s138
      %p152 = scmp.eq.s32.totalorder %s23, 3
      %p153 = por %p151, %p152
      %p155 = scmp.ne.s32.totalorder %s138, %s154
      %p156 = scmp.eq.s32.totalorder %s23, 0
      %p157 = por %p155, %p156
      %s158 = ssub.s32 %s24, %s43
      %s159 = ssub.s32 %s25, %s39
      %s160 = sor.u32 %s158, %s159
      %p161 = scmp.eq.s32.totalorder %s160, 0
      %s163 = sadd.s32 %s162, 1
      %s164 = scalar_select %p161, %s162, %s163
      %p167 = pneg %p161
      %p168 = scmp.eq.s32.totalorder %s17, 3
      %p169 = por %p167, %p168
      %p170 = scmp.ne.s32.totalorder %s162, %s165
      %p171 = scmp.eq.s32.totalorder %s17, 0
      %p172 = por %p170, %p171
      %p173 = scmp.ne.s32.totalorder %s162, %s165
      %p174 = scmp.eq.s32.totalorder %s22, 3
      %p175 = por %p173, %p174
      %p176 = scmp.ne.s32.totalorder %s165, %s166
      %p177 = scmp.eq.s32.totalorder %s22, 0
      %p178 = por %p176, %p177
      %p179 = scmp.ne.s32.totalorder %s165, %s166
      %p180 = scmp.eq.s32.totalorder %s23, 3
      %p181 = por %p179, %p180
      %p183 = scmp.ne.s32.totalorder %s166, %s182
      %p184 = scmp.eq.s32.totalorder %s23, 0
      %p185 = por %p183, %p184
      %p186 = scmp.le.s32.totalorder 1, %s17
      %p187 = scmp.lt.s32.totalorder %s17, 5
      %p188 = pnand %p186, %p187
      %p189 = pneg %p188
      // Predicated region
      $region9: #{tpu_custom_call.1} parent=5 // pred_check
        _
      $region10: #{tpu_custom_call.1} parent=5 // pred_check_branch
        %191 = sbr.rel (%p188) target = $region12
      $region11: #{tpu_custom_call.1} parent=5 // pred_region
        %s192 = ssub.s32 %s17, 1
      $region12: #{tpu_custom_call.1} parent=5 // pred_fallthru
        _
      %p193 = scmp.lt.s32.totalorder %s17, 4
      // Predicated region
      $region13: #{tpu_custom_call.1} parent=5 // pred_check
        %p194 = pneg %p193
      $region14: #{tpu_custom_call.1} parent=5 // pred_check_branch
        %196 = sbr.rel (%p194) target = $region16
      $region15: #{tpu_custom_call.1} parent=5 // pred_region
        // Predicated region
        $region17: #{tpu_custom_call.1} parent=15 // pred_check
          %p197 = pneg %p58
        $region18: #{tpu_custom_call.1} parent=15 // pred_check_branch
          %199 = sbr.rel (%p197) target = $region20
        $region19: #{tpu_custom_call.1} parent=15 // pred_region
          %s200 = smul.u32 16, %s26
          %p201 = scmp.lt.s32.totalorder %s24, 1
          %s202 = scalar_select %p201, %s24, 1
          %p203 = scmp.lt.s32.totalorder %s200, 31
          %s204 = scalar_select %p203, %s200, 31
          %s205 = smul.addr %s202, 32
          %s206 = sadd.s32 %s204, %s205
          %s207 = smul.addr %s206, 8
          %s208 = scalar_lea.vmem %s0, %s207
          %s209 = smul.u32 16, %s26
        $region20: #{tpu_custom_call.1} parent=15 // pred_fallthru
          _
        // Predicated region
        $region21: #{tpu_custom_call.1} parent=15 // pred_check
          %p210 = pneg %p88
        $region22: #{tpu_custom_call.1} parent=15 // pred_check_branch
          %212 = sbr.rel (%p210) target = $region24
        $region23: #{tpu_custom_call.1} parent=15 // pred_region
          %p213 = scmp.lt.s32.totalorder %s24, 1
          %s214 = scalar_select %p213, %s24, 1
          %p215 = scmp.lt.s32.totalorder %s25, 0
          %s216 = scalar_select %p215, %s25, 0
          %p217 = scmp.lt.s32.totalorder %s26, 1
          %s218 = scalar_select %p217, %s26, 1
          %s219 = smul.addr %s216, 2
          %s220 = sadd.s32 %s218, %s219
          %s221 = smul.addr %s214, 2
          %s222 = sadd.s32 %s220, %s221
          %s223 = smul.addr %s222, 8
          %s224 = scalar_lea.vmem %s1, %s223
        $region24: #{tpu_custom_call.1} parent=15 // pred_fallthru
          _
        // Predicated region
        $region25: #{tpu_custom_call.1} parent=15 // pred_check
          %p225 = pneg %p116
        $region26: #{tpu_custom_call.1} parent=15 // pred_check_branch
          %227 = sbr.rel (%p225) target = $region28
        $region27: #{tpu_custom_call.1} parent=15 // pred_region
          %p228 = scmp.lt.s32.totalorder %s24, 1
          %s229 = scalar_select %p228, %s24, 1
          %p230 = scmp.lt.s32.totalorder %s25, 0
          %s231 = scalar_select %p230, %s25, 0
          %s232 = sadd.s32 %s231, %s229
          %s233 = smul.addr %s232, 8
          %s234 = scalar_lea.vmem %s2, %s233
        $region28: #{tpu_custom_call.1} parent=15 // pred_fallthru
          _
      $region16: #{tpu_custom_call.1} parent=5 // pred_fallthru
        _
      %p235 = scmp.le.s32.totalorder 1, %s17
      %p236 = scmp.lt.s32.totalorder %s17, 5
      %p237 = pnand %p235, %p236
      %p238 = pneg %p237
      // Predicated region
      $region29: #{tpu_custom_call.1} parent=5 // pred_check
        _
      $region30: #{tpu_custom_call.1} parent=5 // pred_check_branch
        %240 = sbr.rel (%p237) target = $region32
      $region31: #{tpu_custom_call.1} parent=5 // pred_region
        %s241 = ssub.s32 %s17, 1
        %s242 = smul.u32 16, %s29
        %p243 = scmp.lt.s32.totalorder %s27, 1
        %s244 = scalar_select %p243, %s27, 1
        %p245 = scmp.lt.s32.totalorder %s242, 31
        %s246 = scalar_select %p245, %s242, 31
        %s247 = smul.addr %s244, 32
        %s248 = sadd.s32 %s246, %s247
        %s249 = smul.addr %s248, 8
        %s250 = scalar_lea.vmem %s0, %s249
        %p251 = pneg %p64
        %p252 = pneg %p61
        %p253 = scmp.lt.s32.totalorder %s27, 1
        %s254 = scalar_select %p253, %s27, 1
        %p255 = scmp.lt.s32.totalorder %s28, 0
        %s256 = scalar_select %p255, %s28, 0
        %p257 = scmp.lt.s32.totalorder %s29, 1
        %s258 = scalar_select %p257, %s29, 1
        %s259 = smul.addr %s256, 2
        %s260 = sadd.s32 %s258, %s259
        %s261 = smul.addr %s254, 2
        %s262 = sadd.s32 %s260, %s261
        %s263 = smul.addr %s262, 8
        %s264 = scalar_lea.vmem %s1, %s263
        %p265 = pneg %p94
        %p266 = pneg %p91
        %p267 = scmp.lt.s32.totalorder %s27, 1
        %s268 = scalar_select %p267, %s27, 1
        %p269 = scmp.lt.s32.totalorder %s28, 0
        %s270 = scalar_select %p269, %s28, 0
        %s271 = sadd.s32 %s270, %s268
        %s272 = smul.addr %s271, 8
        %s273 = scalar_lea.vmem %s2, %s272
        %p274 = pneg %p122
        %p275 = pneg %p119
        %p276 = pneg %p150
        %p277 = pneg %p147
        %s278 = sand.u32 %s137, 1
        %s279 = scalar_lea.sflag [#allocation5], %s278
        %s280 = sand.u32 %s137, 1
        %s281 = smul.addr %s280, 8
        %s282 = scalar_lea.vmem [#allocation4], %s281
        %p283 = pneg %p178
        %p284 = pneg %p175
        %s285 = sand.u32 %s165, 1
        %s286 = scalar_lea.sflag [#allocation7], %s285
        %s287 = sand.u32 %s165, 1
        %s288 = smul.addr %s287, 8
        %s289 = scalar_lea.vmem [#allocation6], %s288
        %s290 = smul.u32 16, %s29
        %p291 = scmp.lt.s32.totalorder %s27, 1
        %s292 = scalar_select %p291, %s27, 1
        %p293 = scmp.lt.s32.totalorder %s290, 31
        %s294 = scalar_select %p293, %s290, 31
        %s295 = smul.addr %s292, 32
        %s296 = sadd.s32 %s294, %s295
        %s297 = smul.addr %s296, 8
        %s298 = scalar_lea.vmem %s0, %s297
        %s299 = smul.u32 16, %s29
        %p300 = scmp.lt.s32.totalorder %s27, 1
        %s301 = scalar_select %p300, %s27, 1
        %p302 = scmp.lt.s32.totalorder %s28, 0
        %s303 = scalar_select %p302, %s28, 0
        %p304 = scmp.lt.s32.totalorder %s29, 1
        %s305 = scalar_select %p304, %s29, 1
        %s306 = smul.addr %s303, 2
        %s307 = sadd.s32 %s305, %s306
        %s308 = smul.addr %s301, 2
        %s309 = sadd.s32 %s307, %s308
        %s310 = smul.addr %s309, 8
        %s311 = scalar_lea.vmem %s1, %s310
        %p312 = scmp.lt.s32.totalorder %s27, 1
        %s313 = scalar_select %p312, %s27, 1
        %p314 = scmp.lt.s32.totalorder %s28, 0
        %s315 = scalar_select %p314, %s28, 0
        %s316 = sadd.s32 %s315, %s313
        %s317 = smul.addr %s316, 8
        %s318 = scalar_lea.vmem %s2, %s317
        %p319 = scmp.eq.s32.totalorder %s29, 0
        // Predicated region
        $region33: #{tpu_custom_call.1} parent=31 // pred_check
          %p320 = pneg %p319
        $region34: #{tpu_custom_call.1} parent=31 // pred_check_branch
          %322 = sbr.rel (%p320) target = $region36
        $region35: #{tpu_custom_call.1} parent=31 // pred_region
          %vm323 = vcmask 261120
          %324 = vst.msk [vmem:[#allocation2] sm:$0xff] %vm323, -inf
          %325 = vst.msk [vmem:[#allocation3] sm:$0xff] %vm323, 0.0
        $region36: #{tpu_custom_call.1} parent=31 // pred_fallthru
          _
        %v326 = vld [vmem:[#allocation3] sm:$0xff]
        %v327 = vld [vmem:[%s311] sm:$0xff]
        %v328 = vld [vmem:[%s298] sm:$0xff]
        %v329 = vld [vmem:[%s298 + $0x8] sm:$0xff]
        %v330 = vld [vmem:[%s298 + $0x10] sm:$0xff]
        %v331 = vld [vmem:[%s298 + $0x18] sm:$0xff]
        %v332 = vld [vmem:[%s298 + $0x20] sm:$0xff]
        %v333 = vld [vmem:[%s298 + $0x28] sm:$0xff]
        %v334 = vld [vmem:[%s298 + $0x30] sm:$0xff]
        %v335 = vld [vmem:[%s298 + $0x38] sm:$0xff]
        %v336 = vld [vmem:[%s298 + $0x40] sm:$0xff]
        %v337 = vld [vmem:[%s298 + $0x48] sm:$0xff]
        %v338 = vld [vmem:[%s298 + $0x50] sm:$0xff]
        %v339 = vld [vmem:[%s298 + $0x58] sm:$0xff]
        %v340 = vld [vmem:[%s298 + $0x60] sm:$0xff]
        %v341 = vld [vmem:[%s298 + $0x68] sm:$0xff]
        %v342 = vld [vmem:[%s298 + $0x70] sm:$0xff]
        %v343 = vld [vmem:[%s298 + $0x78] sm:$0xff]
        %344 = vmatprep.subr.mxu0 0.0
        %345 = vmatpush1.msra.mxu0 %v328
        %346 = vmatprep.subr.mxu0 0.0
        %347 = vmatpush1.msra.mxu0 %v329
        %348 = vmatprep.subr.mxu0 0.0
        %349 = vmatpush1.msra.mxu0 %v330
        %350 = vmatprep.subr.mxu0 0.0
        %351 = vmatpush1.msra.mxu0 %v331
        %352 = vmatprep.subr.mxu0 0.0
        %353 = vmatpush1.msra.mxu0 %v332
        %354 = vmatprep.subr.mxu0 0.0
        %355 = vmatpush1.msra.mxu0 %v333
        %356 = vmatprep.subr.mxu0 0.0
        %357 = vmatpush1.msra.mxu0 %v334
        %358 = vmatprep.subr.mxu0 0.0
        %359 = vmatpush1.msra.mxu0 %v335
        %360 = vmatprep.subr.mxu0 0.0
        %361 = vmatpush1.msra.mxu0 %v336
        %362 = vmatprep.subr.mxu0 0.0
        %363 = vmatpush1.msra.mxu0 %v337
        %364 = vmatprep.subr.mxu0 0.0
        %365 = vmatpush1.msra.mxu0 %v338
        %366 = vmatprep.subr.mxu0 0.0
        %367 = vmatpush1.msra.mxu0 %v339
        %368 = vmatprep.subr.mxu0 0.0
        %369 = vmatpush1.msra.mxu0 %v340
        %370 = vmatprep.subr.mxu0 0.0
        %371 = vmatpush1.msra.mxu0 %v341
        %372 = vmatprep.subr.mxu0 0.0
        %373 = vmatpush1.msra.mxu0 %v342
        %374 = vmatprep.subr.mxu0 0.0
        %375 = vmatpush1.msra.mxu0 %v343
        %376 = vmatprep.subr.mxu0 0.0
        %377 = vmatpush1.msra.mxu0 0.0
        %378 = vmatprep.subr.mxu0 0.0
        %379 = vmatpush1.msra.mxu0 0.0
        %380 = vmatprep.subr.mxu0 0.0
        %381 = vmatpush1.msra.mxu0 0.0
        %382 = vmatprep.subr.mxu0 0.0
        %383 = vmatpush1.msra.mxu0 0.0
        %384 = vmatprep.subr.mxu0 0.0
        %385 = vmatpush1.msra.mxu0 0.0
        %386 = vmatprep.subr.mxu0 0.0
        %387 = vmatpush1.msra.mxu0 0.0
        %388 = vmatprep.subr.mxu0 0.0
        %389 = vmatpush1.msra.mxu0 0.0
        %390 = vmatprep.subr.mxu0 0.0
        %391 = vmatpush1.msra.mxu0 0.0
        %392 = vmatprep.subr.mxu0 0.0
        %393 = vmatpush1.msra.mxu0 0.0
        %394 = vmatprep.subr.mxu0 0.0
        %395 = vmatpush1.msra.mxu0 0.0
        %396 = vmatprep.subr.mxu0 0.0
        %397 = vmatpush1.msra.mxu0 0.0
        %398 = vmatprep.subr.mxu0 0.0
        %399 = vmatpush1.msra.mxu0 0.0
        %400 = vmatprep.subr.mxu0 0.0
        %401 = vmatpush1.msra.mxu0 0.0
        %402 = vmatprep.subr.mxu0 0.0
        %403 = vmatpush1.msra.mxu0 0.0
        %404 = vmatprep.subr.mxu0 0.0
        %405 = vmatpush1.msra.mxu0 0.0
        %406 = vmatprep.subr.mxu0 0.0
        %407 = vmatpush1.msra.mxu0 0.0
        %408 = vmatprep.mubr.f32.mxu0 0.0
        %409 = vmatmul.mubr.f32.gmra.mrb[0].mxu0 %v327
        %v410 = vpop.f32.mrb[0].mxu0
        %v411 = vadd.f32 0.0, %v410
        %v412 = vpop.f32.mrb[0].mxu0
        %413 = vdwg.mxu0
        %v414 = vadd.f32 %v326, %v411
        %vm415 = vcmask 261120
        %416 = vst.msk [vmem:[#allocation3] sm:$0xff] %vm415, %v414
        %v417 = vld [vmem:[%s311] sm:$0xff]
        %v418 = vld [vmem:[%s298] sm:$0x1]
        %420 = vset.pattern.permute.xlu0 0
        %421 = vperm.xlu0 %420, %v417
        %v422 = vpop.permute.xlu0 %421
        %v424 = vlaneseq
        %v425 = vshrl.u32 %v424, 7
        %v426 = vsub.s32 0, %v425
        %v427 = vrot.slane %v418, %v426
        %v428 = vmul.f32 %v422, %v427
        %v429 = vld [vmem:[%s298 + $0x1] sm:$0x1]
        %430 = vset.pattern.permute.xlu0 1
        %431 = vperm.xlu0 %430, %v417
        %v432 = vpop.permute.xlu0 %431
        %v434 = vlaneseq
        %v435 = vshrl.u32 %v434, 7
        %v436 = vsub.s32 0, %v435
        %v437 = vrot.slane %v429, %v436
        %v438 = vmul.f32 %v432, %v437
        %v439 = vmax.f32 %v428, %v438
        %v440 = vld [vmem:[%s298 + $0x2] sm:$0x1]
        %441 = vset.pattern.permute.xlu0 2
        %442 = vperm.xlu0 %441, %v417
        %v443 = vpop.permute.xlu0 %442
        %v445 = vlaneseq
        %v446 = vshrl.u32 %v445, 7
        %v447 = vsub.s32 0, %v446
        %v448 = vrot.slane %v440, %v447
        %v449 = vmul.f32 %v443, %v448
        %v450 = vmax.f32 %v439, %v449
        %v451 = vld [vmem:[%s298 + $0x3] sm:$0x1]
        %452 = vset.pattern.permute.xlu0 3
        %453 = vperm.xlu0 %452, %v417
        %v454 = vpop.permute.xlu0 %453
        %v456 = vlaneseq
        %v457 = vshrl.u32 %v456, 7
        %v458 = vsub.s32 0, %v457
        %v459 = vrot.slane %v451, %v458
        %v460 = vmul.f32 %v454, %v459
        %v461 = vmax.f32 %v450, %v460
        %v462 = vld [vmem:[%s298 + $0x4] sm:$0x1]
        %463 = vset.pattern.permute.xlu0 4
        %464 = vperm.xlu0 %463, %v417
        %v465 = vpop.permute.xlu0 %464
        %v467 = vlaneseq
        %v468 = vshrl.u32 %v467, 7
        %v469 = vsub.s32 0, %v468
        %v470 = vrot.slane %v462, %v469
        %v471 = vmul.f32 %v465, %v470
        %v472 = vmax.f32 %v461, %v471
        %v473 = vld [vmem:[%s298 + $0x5] sm:$0x1]
        %474 = vset.pattern.permute.xlu0 5
        %475 = vperm.xlu0 %474, %v417
        %v476 = vpop.permute.xlu0 %475
        %v478 = vlaneseq
        %v479 = vshrl.u32 %v478, 7
        %v480 = vsub.s32 0, %v479
        %v481 = vrot.slane %v473, %v480
        %v482 = vmul.f32 %v476, %v481
        %v483 = vmax.f32 %v472, %v482
        %v484 = vld [vmem:[%s298 + $0x6] sm:$0x1]
        %485 = vset.pattern.permute.xlu0 6
        %486 = vperm.xlu0 %485, %v417
        %v487 = vpop.permute.xlu0 %486
        %v489 = vlaneseq
        %v490 = vshrl.u32 %v489, 7
        %v491 = vsub.s32 0, %v490
        %v492 = vrot.slane %v484, %v491
        %v493 = vmul.f32 %v487, %v492
        %v494 = vmax.f32 %v483, %v493
        %v495 = vld [vmem:[%s298 + $0x7] sm:$0x1]
        %496 = vset.pattern.permute.xlu0 7
        %497 = vperm.xlu0 %496, %v417
        %v498 = vpop.permute.xlu0 %497
        %v500 = vlaneseq
        %v501 = vshrl.u32 %v500, 7
        %v502 = vsub.s32 0, %v501
        %v503 = vrot.slane %v495, %v502
        %v504 = vmul.f32 %v498, %v503
        %v505 = vmax.f32 %v494, %v504
        %v506 = vld [vmem:[%s298 + $0x8] sm:$0x1]
        %507 = vset.pattern.permute.xlu0 8
        %508 = vperm.xlu0 %507, %v417
        %v509 = vpop.permute.xlu0 %508
        %v511 = vlaneseq
        %v512 = vshrl.u32 %v511, 7
        %v513 = vsub.s32 0, %v512
        %v514 = vrot.slane %v506, %v513
        %v515 = vmul.f32 %v509, %v514
        %v516 = vmax.f32 %v505, %v515
        %v517 = vld [vmem:[%s298 + $0x9] sm:$0x1]
        %518 = vset.pattern.permute.xlu0 9
        %519 = vperm.xlu0 %518, %v417
        %v520 = vpop.permute.xlu0 %519
        %v522 = vlaneseq
        %v523 = vshrl.u32 %v522, 7
        %v524 = vsub.s32 0, %v523
        %v525 = vrot.slane %v517, %v524
        %v526 = vmul.f32 %v520, %v525
        %v527 = vmax.f32 %v516, %v526
        %v528 = vld [vmem:[%s298 + $0xa] sm:$0x1]
        %529 = vset.pattern.permute.xlu0 10
        %530 = vperm.xlu0 %529, %v417
        %v531 = vpop.permute.xlu0 %530
        %v533 = vlaneseq
        %v534 = vshrl.u32 %v533, 7
        %v535 = vsub.s32 0, %v534
        %v536 = vrot.slane %v528, %v535
        %v537 = vmul.f32 %v531, %v536
        %v538 = vmax.f32 %v527, %v537
        %v539 = vld [vmem:[%s298 + $0xb] sm:$0x1]
        %540 = vset.pattern.permute.xlu0 11
        %541 = vperm.xlu0 %540, %v417
        %v542 = vpop.permute.xlu0 %541
        %v544 = vlaneseq
        %v545 = vshrl.u32 %v544, 7
        %v546 = vsub.s32 0, %v545
        %v547 = vrot.slane %v539, %v546
        %v548 = vmul.f32 %v542, %v547
        %v549 = vmax.f32 %v538, %v548
        %v550 = vld [vmem:[%s298 + $0xc] sm:$0x1]
        %551 = vset.pattern.permute.xlu0 12
        %552 = vperm.xlu0 %551, %v417
        %v553 = vpop.permute.xlu0 %552
        %v555 = vlaneseq
        %v556 = vshrl.u32 %v555, 7
        %v557 = vsub.s32 0, %v556
        %v558 = vrot.slane %v550, %v557
        %v559 = vmul.f32 %v553, %v558
        %v560 = vmax.f32 %v549, %v559
        %v561 = vld [vmem:[%s298 + $0xd] sm:$0x1]
        %562 = vset.pattern.permute.xlu0 13
        %563 = vperm.xlu0 %562, %v417
        %v564 = vpop.permute.xlu0 %563
        %v566 = vlaneseq
        %v567 = vshrl.u32 %v566, 7
        %v568 = vsub.s32 0, %v567
        %v569 = vrot.slane %v561, %v568
        %v570 = vmul.f32 %v564, %v569
        %v571 = vmax.f32 %v560, %v570
        %v572 = vld [vmem:[%s298 + $0xe] sm:$0x1]
        %573 = vset.pattern.permute.xlu0 14
        %574 = vperm.xlu0 %573, %v417
        %v575 = vpop.permute.xlu0 %574
        %v577 = vlaneseq
        %v578 = vshrl.u32 %v577, 7
        %v579 = vsub.s32 0, %v578
        %v580 = vrot.slane %v572, %v579
        %v581 = vmul.f32 %v575, %v580
        %v582 = vmax.f32 %v571, %v581
        %v583 = vld [vmem:[%s298 + $0xf] sm:$0x1]
        %584 = vset.pattern.permute.xlu0 15
        %585 = vperm.xlu0 %584, %v417
        %v586 = vpop.permute.xlu0 %585
        %v588 = vlaneseq
        %v589 = vshrl.u32 %v588, 7
        %v590 = vsub.s32 0, %v589
        %v591 = vrot.slane %v583, %v590
        %v592 = vmul.f32 %v586, %v591
        %v593 = vmax.f32 %v582, %v592
        %v594 = vld [vmem:[%s298 + $0x10] sm:$0x1]
        %595 = vset.pattern.permute.xlu0 16
        %596 = vperm.xlu0 %595, %v417
        %v597 = vpop.permute.xlu0 %596
        %v599 = vlaneseq
        %v600 = vshrl.u32 %v599, 7
        %v601 = vsub.s32 0, %v600
        %v602 = vrot.slane %v594, %v601
        %v603 = vmul.f32 %v597, %v602
        %v604 = vmax.f32 %v593, %v603
        %v605 = vld [vmem:[%s298 + $0x11] sm:$0x1]
        %606 = vset.pattern.permute.xlu0 17
        %607 = vperm.xlu0 %606, %v417
        %v608 = vpop.permute.xlu0 %607
        %v610 = vlaneseq
        %v611 = vshrl.u32 %v610, 7
        %v612 = vsub.s32 0, %v611
        %v613 = vrot.slane %v605, %v612
        %v614 = vmul.f32 %v608, %v613
        %v615 = vmax.f32 %v604, %v614
        %v616 = vld [vmem:[%s298 + $0x12] sm:$0x1]
        %617 = vset.pattern.permute.xlu0 18
        %618 = vperm.xlu0 %617, %v417
        %v619 = vpop.permute.xlu0 %618
        %v621 = vlaneseq
        %v622 = vshrl.u32 %v621, 7
        %v623 = vsub.s32 0, %v622
        %v624 = vrot.slane %v616, %v623
        %v625 = vmul.f32 %v619, %v624
        %v626 = vmax.f32 %v615, %v625
        %v627 = vld [vmem:[%s298 + $0x13] sm:$0x1]
        %628 = vset.pattern.permute.xlu0 19
        %629 = vperm.xlu0 %628, %v417
        %v630 = vpop.permute.xlu0 %629
        %v632 = vlaneseq
        %v633 = vshrl.u32 %v632, 7
        %v634 = vsub.s32 0, %v633
        %v635 = vrot.slane %v627, %v634
        %v636 = vmul.f32 %v630, %v635
        %v637 = vmax.f32 %v626, %v636
        %v638 = vld [vmem:[%s298 + $0x14] sm:$0x1]
        %639 = vset.pattern.permute.xlu0 20
        %640 = vperm.xlu0 %639, %v417
        %v641 = vpop.permute.xlu0 %640
        %v643 = vlaneseq
        %v644 = vshrl.u32 %v643, 7
        %v645 = vsub.s32 0, %v644
        %v646 = vrot.slane %v638, %v645
        %v647 = vmul.f32 %v641, %v646
        %v648 = vmax.f32 %v637, %v647
        %v649 = vld [vmem:[%s298 + $0x15] sm:$0x1]
        %650 = vset.pattern.permute.xlu0 21
        %651 = vperm.xlu0 %650, %v417
        %v652 = vpop.permute.xlu0 %651
        %v654 = vlaneseq
        %v655 = vshrl.u32 %v654, 7
        %v656 = vsub.s32 0, %v655
        %v657 = vrot.slane %v649, %v656
        %v658 = vmul.f32 %v652, %v657
        %v659 = vmax.f32 %v648, %v658
        %v660 = vld [vmem:[%s298 + $0x16] sm:$0x1]
        %661 = vset.pattern.permute.xlu0 22
        %662 = vperm.xlu0 %661, %v417
        %v663 = vpop.permute.xlu0 %662
        %v665 = vlaneseq
        %v666 = vshrl.u32 %v665, 7
        %v667 = vsub.s32 0, %v666
        %v668 = vrot.slane %v660, %v667
        %v669 = vmul.f32 %v663, %v668
        %v670 = vmax.f32 %v659, %v669
        %v671 = vld [vmem:[%s298 + $0x17] sm:$0x1]
        %672 = vset.pattern.permute.xlu0 23
        %673 = vperm.xlu0 %672, %v417
        %v674 = vpop.permute.xlu0 %673
        %v676 = vlaneseq
        %v677 = vshrl.u32 %v676, 7
        %v678 = vsub.s32 0, %v677
        %v679 = vrot.slane %v671, %v678
        %v680 = vmul.f32 %v674, %v679
        %v681 = vmax.f32 %v670, %v680
        %v682 = vld [vmem:[%s298 + $0x18] sm:$0x1]
        %683 = vset.pattern.permute.xlu0 24
        %684 = vperm.xlu0 %683, %v417
        %v685 = vpop.permute.xlu0 %684
        %v687 = vlaneseq
        %v688 = vshrl.u32 %v687, 7
        %v689 = vsub.s32 0, %v688
        %v690 = vrot.slane %v682, %v689
        %v691 = vmul.f32 %v685, %v690
        %v692 = vmax.f32 %v681, %v691
        %v693 = vld [vmem:[%s298 + $0x19] sm:$0x1]
        %694 = vset.pattern.permute.xlu0 25
        %695 = vperm.xlu0 %694, %v417
        %v696 = vpop.permute.xlu0 %695
        %v698 = vlaneseq
        %v699 = vshrl.u32 %v698, 7
        %v700 = vsub.s32 0, %v699
        %v701 = vrot.slane %v693, %v700
        %v702 = vmul.f32 %v696, %v701
        %v703 = vmax.f32 %v692, %v702
        %v704 = vld [vmem:[%s298 + $0x1a] sm:$0x1]
        %705 = vset.pattern.permute.xlu0 26
        %706 = vperm.xlu0 %705, %v417
        %v707 = vpop.permute.xlu0 %706
        %v709 = vlaneseq
        %v710 = vshrl.u32 %v709, 7
        %v711 = vsub.s32 0, %v710
        %v712 = vrot.slane %v704, %v711
        %v713 = vmul.f32 %v707, %v712
        %v714 = vmax.f32 %v703, %v713
        %v715 = vld [vmem:[%s298 + $0x1b] sm:$0x1]
        %716 = vset.pattern.permute.xlu0 27
        %717 = vperm.xlu0 %716, %v417
        %v718 = vpop.permute.xlu0 %717
        %v720 = vlaneseq
        %v721 = vshrl.u32 %v720, 7
        %v722 = vsub.s32 0, %v721
        %v723 = vrot.slane %v715, %v722
        %v724 = vmul.f32 %v718, %v723
        %v725 = vmax.f32 %v714, %v724
        %v726 = vld [vmem:[%s298 + $0x1c] sm:$0x1]
        %727 = vset.pattern.permute.xlu0 28
        %728 = vperm.xlu0 %727, %v417
        %v729 = vpop.permute.xlu0 %728
        %v731 = vlaneseq
        %v732 = vshrl.u32 %v731, 7
        %v733 = vsub.s32 0, %v732
        %v734 = vrot.slane %v726, %v733
        %v735 = vmul.f32 %v729, %v734
        %v736 = vmax.f32 %v725, %v735
        %v737 = vld [vmem:[%s298 + $0x1d] sm:$0x1]
        %738 = vset.pattern.permute.xlu0 29
        %739 = vperm.xlu0 %738, %v417
        %v740 = vpop.permute.xlu0 %739
        %v742 = vlaneseq
        %v743 = vshrl.u32 %v742, 7
        %v744 = vsub.s32 0, %v743
        %v745 = vrot.slane %v737, %v744
        %v746 = vmul.f32 %v740, %v745
        %v747 = vmax.f32 %v736, %v746
        %v748 = vld [vmem:[%s298 + $0x1e] sm:$0x1]
        %749 = vset.pattern.permute.xlu0 30
        %750 = vperm.xlu0 %749, %v417
        %v751 = vpop.permute.xlu0 %750
        %v753 = vlaneseq
        %v754 = vshrl.u32 %v753, 7
        %v755 = vsub.s32 0, %v754
        %v756 = vrot.slane %v748, %v755
        %v757 = vmul.f32 %v751, %v756
        %v758 = vmax.f32 %v747, %v757
        %v759 = vld [vmem:[%s298 + $0x1f] sm:$0x1]
        %760 = vset.pattern.permute.xlu0 31
        %761 = vperm.xlu0 %760, %v417
        %v762 = vpop.permute.xlu0 %761
        %v764 = vlaneseq
        %v765 = vshrl.u32 %v764, 7
        %v766 = vsub.s32 0, %v765
        %v767 = vrot.slane %v759, %v766
        %v768 = vmul.f32 %v762, %v767
        %v769 = vmax.f32 %v758, %v768
        %v770 = vld [vmem:[%s298 + $0x20] sm:$0x1]
        %771 = vset.pattern.permute.xlu0 32
        %772 = vperm.xlu0 %771, %v417
        %v773 = vpop.permute.xlu0 %772
        %v775 = vlaneseq
        %v776 = vshrl.u32 %v775, 7
        %v777 = vsub.s32 0, %v776
        %v778 = vrot.slane %v770, %v777
        %v779 = vmul.f32 %v773, %v778
        %v780 = vmax.f32 %v769, %v779
        %v781 = vld [vmem:[%s298 + $0x21] sm:$0x1]
        %782 = vset.pattern.permute.xlu0 33
        %783 = vperm.xlu0 %782, %v417
        %v784 = vpop.permute.xlu0 %783
        %v786 = vlaneseq
        %v787 = vshrl.u32 %v786, 7
        %v788 = vsub.s32 0, %v787
        %v789 = vrot.slane %v781, %v788
        %v790 = vmul.f32 %v784, %v789
        %v791 = vmax.f32 %v780, %v790
        %v792 = vld [vmem:[%s298 + $0x22] sm:$0x1]
        %793 = vset.pattern.permute.xlu0 34
        %794 = vperm.xlu0 %793, %v417
        %v795 = vpop.permute.xlu0 %794
        %v797 = vlaneseq
        %v798 = vshrl.u32 %v797, 7
        %v799 = vsub.s32 0, %v798
        %v800 = vrot.slane %v792, %v799
        %v801 = vmul.f32 %v795, %v800
        %v802 = vmax.f32 %v791, %v801
        %v803 = vld [vmem:[%s298 + $0x23] sm:$0x1]
        %804 = vset.pattern.permute.xlu0 35
        %805 = vperm.xlu0 %804, %v417
        %v806 = vpop.permute.xlu0 %805
        %v808 = vlaneseq
        %v809 = vshrl.u32 %v808, 7
        %v810 = vsub.s32 0, %v809
        %v811 = vrot.slane %v803, %v810
        %v812 = vmul.f32 %v806, %v811
        %v813 = vmax.f32 %v802, %v812
        %v814 = vld [vmem:[%s298 + $0x24] sm:$0x1]
        %815 = vset.pattern.permute.xlu0 36
        %816 = vperm.xlu0 %815, %v417
        %v817 = vpop.permute.xlu0 %816
        %v819 = vlaneseq
        %v820 = vshrl.u32 %v819, 7
        %v821 = vsub.s32 0, %v820
        %v822 = vrot.slane %v814, %v821
        %v823 = vmul.f32 %v817, %v822
        %v824 = vmax.f32 %v813, %v823
        %v825 = vld [vmem:[%s298 + $0x25] sm:$0x1]
        %826 = vset.pattern.permute.xlu0 37
        %827 = vperm.xlu0 %826, %v417
        %v828 = vpop.permute.xlu0 %827
        %v830 = vlaneseq
        %v831 = vshrl.u32 %v830, 7
        %v832 = vsub.s32 0, %v831
        %v833 = vrot.slane %v825, %v832
        %v834 = vmul.f32 %v828, %v833
        %v835 = vmax.f32 %v824, %v834
        %v836 = vld [vmem:[%s298 + $0x26] sm:$0x1]
        %837 = vset.pattern.permute.xlu0 38
        %838 = vperm.xlu0 %837, %v417
        %v839 = vpop.permute.xlu0 %838
        %v841 = vlaneseq
        %v842 = vshrl.u32 %v841, 7
        %v843 = vsub.s32 0, %v842
        %v844 = vrot.slane %v836, %v843
        %v845 = vmul.f32 %v839, %v844
        %v846 = vmax.f32 %v835, %v845
        %v847 = vld [vmem:[%s298 + $0x27] sm:$0x1]
        %848 = vset.pattern.permute.xlu0 39
        %849 = vperm.xlu0 %848, %v417
        %v850 = vpop.permute.xlu0 %849
        %v852 = vlaneseq
        %v853 = vshrl.u32 %v852, 7
        %v854 = vsub.s32 0, %v853
        %v855 = vrot.slane %v847, %v854
        %v856 = vmul.f32 %v850, %v855
        %v857 = vmax.f32 %v846, %v856
        %v858 = vld [vmem:[%s298 + $0x28] sm:$0x1]
        %859 = vset.pattern.permute.xlu0 40
        %860 = vperm.xlu0 %859, %v417
        %v861 = vpop.permute.xlu0 %860
        %v863 = vlaneseq
        %v864 = vshrl.u32 %v863, 7
        %v865 = vsub.s32 0, %v864
        %v866 = vrot.slane %v858, %v865
        %v867 = vmul.f32 %v861, %v866
        %v868 = vmax.f32 %v857, %v867
        %v869 = vld [vmem:[%s298 + $0x29] sm:$0x1]
        %870 = vset.pattern.permute.xlu0 41
        %871 = vperm.xlu0 %870, %v417
        %v872 = vpop.permute.xlu0 %871
        %v874 = vlaneseq
        %v875 = vshrl.u32 %v874, 7
        %v876 = vsub.s32 0, %v875
        %v877 = vrot.slane %v869, %v876
        %v878 = vmul.f32 %v872, %v877
        %v879 = vmax.f32 %v868, %v878
        %v880 = vld [vmem:[%s298 + $0x2a] sm:$0x1]
        %881 = vset.pattern.permute.xlu0 42
        %882 = vperm.xlu0 %881, %v417
        %v883 = vpop.permute.xlu0 %882
        %v885 = vlaneseq
        %v886 = vshrl.u32 %v885, 7
        %v887 = vsub.s32 0, %v886
        %v888 = vrot.slane %v880, %v887
        %v889 = vmul.f32 %v883, %v888
        %v890 = vmax.f32 %v879, %v889
        %v891 = vld [vmem:[%s298 + $0x2b] sm:$0x1]
        %892 = vset.pattern.permute.xlu0 43
        %893 = vperm.xlu0 %892, %v417
        %v894 = vpop.permute.xlu0 %893
        %v896 = vlaneseq
        %v897 = vshrl.u32 %v896, 7
        %v898 = vsub.s32 0, %v897
        %v899 = vrot.slane %v891, %v898
        %v900 = vmul.f32 %v894, %v899
        %v901 = vmax.f32 %v890, %v900
        %v902 = vld [vmem:[%s298 + $0x2c] sm:$0x1]
        %903 = vset.pattern.permute.xlu0 44
        %904 = vperm.xlu0 %903, %v417
        %v905 = vpop.permute.xlu0 %904
        %v907 = vlaneseq
        %v908 = vshrl.u32 %v907, 7
        %v909 = vsub.s32 0, %v908
        %v910 = vrot.slane %v902, %v909
        %v911 = vmul.f32 %v905, %v910
        %v912 = vmax.f32 %v901, %v911
        %v913 = vld [vmem:[%s298 + $0x2d] sm:$0x1]
        %914 = vset.pattern.permute.xlu0 45
        %915 = vperm.xlu0 %914, %v417
        %v916 = vpop.permute.xlu0 %915
        %v918 = vlaneseq
        %v919 = vshrl.u32 %v918, 7
        %v920 = vsub.s32 0, %v919
        %v921 = vrot.slane %v913, %v920
        %v922 = vmul.f32 %v916, %v921
        %v923 = vmax.f32 %v912, %v922
        %v924 = vld [vmem:[%s298 + $0x2e] sm:$0x1]
        %925 = vset.pattern.permute.xlu0 46
        %926 = vperm.xlu0 %925, %v417
        %v927 = vpop.permute.xlu0 %926
        %v929 = vlaneseq
        %v930 = vshrl.u32 %v929, 7
        %v931 = vsub.s32 0, %v930
        %v932 = vrot.slane %v924, %v931
        %v933 = vmul.f32 %v927, %v932
        %v934 = vmax.f32 %v923, %v933
        %v935 = vld [vmem:[%s298 + $0x2f] sm:$0x1]
        %936 = vset.pattern.permute.xlu0 47
        %937 = vperm.xlu0 %936, %v417
        %v938 = vpop.permute.xlu0 %937
        %v940 = vlaneseq
        %v941 = vshrl.u32 %v940, 7
        %v942 = vsub.s32 0, %v941
        %v943 = vrot.slane %v935, %v942
        %v944 = vmul.f32 %v938, %v943
        %v945 = vmax.f32 %v934, %v944
        %v946 = vld [vmem:[%s298 + $0x30] sm:$0x1]
        %947 = vset.pattern.permute.xlu0 48
        %948 = vperm.xlu0 %947, %v417
        %v949 = vpop.permute.xlu0 %948
        %v951 = vlaneseq
        %v952 = vshrl.u32 %v951, 7
        %v953 = vsub.s32 0, %v952
        %v954 = vrot.slane %v946, %v953
        %v955 = vmul.f32 %v949, %v954
        %v956 = vmax.f32 %v945, %v955
        %v957 = vld [vmem:[%s298 + $0x31] sm:$0x1]
        %958 = vset.pattern.permute.xlu0 49
        %959 = vperm.xlu0 %958, %v417
        %v960 = vpop.permute.xlu0 %959
        %v962 = vlaneseq
        %v963 = vshrl.u32 %v962, 7
        %v964 = vsub.s32 0, %v963
        %v965 = vrot.slane %v957, %v964
        %v966 = vmul.f32 %v960, %v965
        %v967 = vmax.f32 %v956, %v966
        %v968 = vld [vmem:[%s298 + $0x32] sm:$0x1]
        %969 = vset.pattern.permute.xlu0 50
        %970 = vperm.xlu0 %969, %v417
        %v971 = vpop.permute.xlu0 %970
        %v973 = vlaneseq
        %v974 = vshrl.u32 %v973, 7
        %v975 = vsub.s32 0, %v974
        %v976 = vrot.slane %v968, %v975
        %v977 = vmul.f32 %v971, %v976
        %v978 = vmax.f32 %v967, %v977
        %v979 = vld [vmem:[%s298 + $0x33] sm:$0x1]
        %980 = vset.pattern.permute.xlu0 51
        %981 = vperm.xlu0 %980, %v417
        %v982 = vpop.permute.xlu0 %981
        %v984 = vlaneseq
        %v985 = vshrl.u32 %v984, 7
        %v986 = vsub.s32 0, %v985
        %v987 = vrot.slane %v979, %v986
        %v988 = vmul.f32 %v982, %v987
        %v989 = vmax.f32 %v978, %v988
        %v990 = vld [vmem:[%s298 + $0x34] sm:$0x1]
        %991 = vset.pattern.permute.xlu0 52
        %992 = vperm.xlu0 %991, %v417
        %v993 = vpop.permute.xlu0 %992
        %v995 = vlaneseq
        %v996 = vshrl.u32 %v995, 7
        %v997 = vsub.s32 0, %v996
        %v998 = vrot.slane %v990, %v997
        %v999 = vmul.f32 %v993, %v998
        %v1000 = vmax.f32 %v989, %v999
        %v1001 = vld [vmem:[%s298 + $0x35] sm:$0x1]
        %1002 = vset.pattern.permute.xlu0 53
        %1003 = vperm.xlu0 %1002, %v417
        %v1004 = vpop.permute.xlu0 %1003
        %v1006 = vlaneseq
        %v1007 = vshrl.u32 %v1006, 7
        %v1008 = vsub.s32 0, %v1007
        %v1009 = vrot.slane %v1001, %v1008
        %v1010 = vmul.f32 %v1004, %v1009
        %v1011 = vmax.f32 %v1000, %v1010
        %v1012 = vld [vmem:[%s298 + $0x36] sm:$0x1]
        %1013 = vset.pattern.permute.xlu0 54
        %1014 = vperm.xlu0 %1013, %v417
        %v1015 = vpop.permute.xlu0 %1014
        %v1017 = vlaneseq
        %v1018 = vshrl.u32 %v1017, 7
        %v1019 = vsub.s32 0, %v1018
        %v1020 = vrot.slane %v1012, %v1019
        %v1021 = vmul.f32 %v1015, %v1020
        %v1022 = vmax.f32 %v1011, %v1021
        %v1023 = vld [vmem:[%s298 + $0x37] sm:$0x1]
        %1024 = vset.pattern.permute.xlu0 55
        %1025 = vperm.xlu0 %1024, %v417
        %v1026 = vpop.permute.xlu0 %1025
        %v1028 = vlaneseq
        %v1029 = vshrl.u32 %v1028, 7
        %v1030 = vsub.s32 0, %v1029
        %v1031 = vrot.slane %v1023, %v1030
        %v1032 = vmul.f32 %v1026, %v1031
        %v1033 = vmax.f32 %v1022, %v1032
        %v1034 = vld [vmem:[%s298 + $0x38] sm:$0x1]
        %1035 = vset.pattern.permute.xlu0 56
        %1036 = vperm.xlu0 %1035, %v417
        %v1037 = vpop.permute.xlu0 %1036
        %v1039 = vlaneseq
        %v1040 = vshrl.u32 %v1039, 7
        %v1041 = vsub.s32 0, %v1040
        %v1042 = vrot.slane %v1034, %v1041
        %v1043 = vmul.f32 %v1037, %v1042
        %v1044 = vmax.f32 %v1033, %v1043
        %v1045 = vld [vmem:[%s298 + $0x39] sm:$0x1]
        %1046 = vset.pattern.permute.xlu0 57
        %1047 = vperm.xlu0 %1046, %v417
        %v1048 = vpop.permute.xlu0 %1047
        %v1050 = vlaneseq
        %v1051 = vshrl.u32 %v1050, 7
        %v1052 = vsub.s32 0, %v1051
        %v1053 = vrot.slane %v1045, %v1052
        %v1054 = vmul.f32 %v1048, %v1053
        %v1055 = vmax.f32 %v1044, %v1054
        %v1056 = vld [vmem:[%s298 + $0x3a] sm:$0x1]
        %1057 = vset.pattern.permute.xlu0 58
        %1058 = vperm.xlu0 %1057, %v417
        %v1059 = vpop.permute.xlu0 %1058
        %v1061 = vlaneseq
        %v1062 = vshrl.u32 %v1061, 7
        %v1063 = vsub.s32 0, %v1062
        %v1064 = vrot.slane %v1056, %v1063
        %v1065 = vmul.f32 %v1059, %v1064
        %v1066 = vmax.f32 %v1055, %v1065
        %v1067 = vld [vmem:[%s298 + $0x3b] sm:$0x1]
        %1068 = vset.pattern.permute.xlu0 59
        %1069 = vperm.xlu0 %1068, %v417
        %v1070 = vpop.permute.xlu0 %1069
        %v1072 = vlaneseq
        %v1073 = vshrl.u32 %v1072, 7
        %v1074 = vsub.s32 0, %v1073
        %v1075 = vrot.slane %v1067, %v1074
        %v1076 = vmul.f32 %v1070, %v1075
        %v1077 = vmax.f32 %v1066, %v1076
        %v1078 = vld [vmem:[%s298 + $0x3c] sm:$0x1]
        %1079 = vset.pattern.permute.xlu0 60
        %1080 = vperm.xlu0 %1079, %v417
        %v1081 = vpop.permute.xlu0 %1080
        %v1083 = vlaneseq
        %v1084 = vshrl.u32 %v1083, 7
        %v1085 = vsub.s32 0, %v1084
        %v1086 = vrot.slane %v1078, %v1085
        %v1087 = vmul.f32 %v1081, %v1086
        %v1088 = vmax.f32 %v1077, %v1087
        %v1089 = vld [vmem:[%s298 + $0x3d] sm:$0x1]
        %1090 = vset.pattern.permute.xlu0 61
        %1091 = vperm.xlu0 %1090, %v417
        %v1092 = vpop.permute.xlu0 %1091
        %v1094 = vlaneseq
        %v1095 = vshrl.u32 %v1094, 7
        %v1096 = vsub.s32 0, %v1095
        %v1097 = vrot.slane %v1089, %v1096
        %v1098 = vmul.f32 %v1092, %v1097
        %v1099 = vmax.f32 %v1088, %v1098
        %v1100 = vld [vmem:[%s298 + $0x3e] sm:$0x1]
        %1101 = vset.pattern.permute.xlu0 62
        %1102 = vperm.xlu0 %1101, %v417
        %v1103 = vpop.permute.xlu0 %1102
        %v1105 = vlaneseq
        %v1106 = vshrl.u32 %v1105, 7
        %v1107 = vsub.s32 0, %v1106
        %v1108 = vrot.slane %v1100, %v1107
        %v1109 = vmul.f32 %v1103, %v1108
        %v1110 = vmax.f32 %v1099, %v1109
        %v1111 = vld [vmem:[%s298 + $0x3f] sm:$0x1]
        %1112 = vset.pattern.permute.xlu0 63
        %1113 = vperm.xlu0 %1112, %v417
        %v1114 = vpop.permute.xlu0 %1113
        %v1116 = vlaneseq
        %v1117 = vshrl.u32 %v1116, 7
        %v1118 = vsub.s32 0, %v1117
        %v1119 = vrot.slane %v1111, %v1118
        %v1120 = vmul.f32 %v1114, %v1119
        %v1121 = vmax.f32 %v1110, %v1120
        %v1122 = vld [vmem:[%s298 + $0x40] sm:$0x1]
        %1123 = vset.pattern.permute.xlu0 64
        %1124 = vperm.xlu0 %1123, %v417
        %v1125 = vpop.permute.xlu0 %1124
        %v1127 = vlaneseq
        %v1128 = vshrl.u32 %v1127, 7
        %v1129 = vsub.s32 0, %v1128
        %v1130 = vrot.slane %v1122, %v1129
        %v1131 = vmul.f32 %v1125, %v1130
        %v1132 = vmax.f32 %v1121, %v1131
        %v1133 = vld [vmem:[%s298 + $0x41] sm:$0x1]
        %1134 = vset.pattern.permute.xlu0 65
        %1135 = vperm.xlu0 %1134, %v417
        %v1136 = vpop.permute.xlu0 %1135
        %v1138 = vlaneseq
        %v1139 = vshrl.u32 %v1138, 7
        %v1140 = vsub.s32 0, %v1139
        %v1141 = vrot.slane %v1133, %v1140
        %v1142 = vmul.f32 %v1136, %v1141
        %v1143 = vmax.f32 %v1132, %v1142
        %v1144 = vld [vmem:[%s298 + $0x42] sm:$0x1]
        %1145 = vset.pattern.permute.xlu0 66
        %1146 = vperm.xlu0 %1145, %v417
        %v1147 = vpop.permute.xlu0 %1146
        %v1149 = vlaneseq
        %v1150 = vshrl.u32 %v1149, 7
        %v1151 = vsub.s32 0, %v1150
        %v1152 = vrot.slane %v1144, %v1151
        %v1153 = vmul.f32 %v1147, %v1152
        %v1154 = vmax.f32 %v1143, %v1153
        %v1155 = vld [vmem:[%s298 + $0x43] sm:$0x1]
        %1156 = vset.pattern.permute.xlu0 67
        %1157 = vperm.xlu0 %1156, %v417
        %v1158 = vpop.permute.xlu0 %1157
        %v1160 = vlaneseq
        %v1161 = vshrl.u32 %v1160, 7
        %v1162 = vsub.s32 0, %v1161
        %v1163 = vrot.slane %v1155, %v1162
        %v1164 = vmul.f32 %v1158, %v1163
        %v1165 = vmax.f32 %v1154, %v1164
        %v1166 = vld [vmem:[%s298 + $0x44] sm:$0x1]
        %1167 = vset.pattern.permute.xlu0 68
        %1168 = vperm.xlu0 %1167, %v417
        %v1169 = vpop.permute.xlu0 %1168
        %v1171 = vlaneseq
        %v1172 = vshrl.u32 %v1171, 7
        %v1173 = vsub.s32 0, %v1172
        %v1174 = vrot.slane %v1166, %v1173
        %v1175 = vmul.f32 %v1169, %v1174
        %v1176 = vmax.f32 %v1165, %v1175
        %v1177 = vld [vmem:[%s298 + $0x45] sm:$0x1]
        %1178 = vset.pattern.permute.xlu0 69
        %1179 = vperm.xlu0 %1178, %v417
        %v1180 = vpop.permute.xlu0 %1179
        %v1182 = vlaneseq
        %v1183 = vshrl.u32 %v1182, 7
        %v1184 = vsub.s32 0, %v1183
        %v1185 = vrot.slane %v1177, %v1184
        %v1186 = vmul.f32 %v1180, %v1185
        %v1187 = vmax.f32 %v1176, %v1186
        %v1188 = vld [vmem:[%s298 + $0x46] sm:$0x1]
        %1189 = vset.pattern.permute.xlu0 70
        %1190 = vperm.xlu0 %1189, %v417
        %v1191 = vpop.permute.xlu0 %1190
        %v1193 = vlaneseq
        %v1194 = vshrl.u32 %v1193, 7
        %v1195 = vsub.s32 0, %v1194
        %v1196 = vrot.slane %v1188, %v1195
        %v1197 = vmul.f32 %v1191, %v1196
        %v1198 = vmax.f32 %v1187, %v1197
        %v1199 = vld [vmem:[%s298 + $0x47] sm:$0x1]
        %1200 = vset.pattern.permute.xlu0 71
        %1201 = vperm.xlu0 %1200, %v417
        %v1202 = vpop.permute.xlu0 %1201
        %v1204 = vlaneseq
        %v1205 = vshrl.u32 %v1204, 7
        %v1206 = vsub.s32 0, %v1205
        %v1207 = vrot.slane %v1199, %v1206
        %v1208 = vmul.f32 %v1202, %v1207
        %v1209 = vmax.f32 %v1198, %v1208
        %v1210 = vld [vmem:[%s298 + $0x48] sm:$0x1]
        %1211 = vset.pattern.permute.xlu0 72
        %1212 = vperm.xlu0 %1211, %v417
        %v1213 = vpop.permute.xlu0 %1212
        %v1215 = vlaneseq
        %v1216 = vshrl.u32 %v1215, 7
        %v1217 = vsub.s32 0, %v1216
        %v1218 = vrot.slane %v1210, %v1217
        %v1219 = vmul.f32 %v1213, %v1218
        %v1220 = vmax.f32 %v1209, %v1219
        %v1221 = vld [vmem:[%s298 + $0x49] sm:$0x1]
        %1222 = vset.pattern.permute.xlu0 73
        %1223 = vperm.xlu0 %1222, %v417
        %v1224 = vpop.permute.xlu0 %1223
        %v1226 = vlaneseq
        %v1227 = vshrl.u32 %v1226, 7
        %v1228 = vsub.s32 0, %v1227
        %v1229 = vrot.slane %v1221, %v1228
        %v1230 = vmul.f32 %v1224, %v1229
        %v1231 = vmax.f32 %v1220, %v1230
        %v1232 = vld [vmem:[%s298 + $0x4a] sm:$0x1]
        %1233 = vset.pattern.permute.xlu0 74
        %1234 = vperm.xlu0 %1233, %v417
        %v1235 = vpop.permute.xlu0 %1234
        %v1237 = vlaneseq
        %v1238 = vshrl.u32 %v1237, 7
        %v1239 = vsub.s32 0, %v1238
        %v1240 = vrot.slane %v1232, %v1239
        %v1241 = vmul.f32 %v1235, %v1240
        %v1242 = vmax.f32 %v1231, %v1241
        %v1243 = vld [vmem:[%s298 + $0x4b] sm:$0x1]
        %1244 = vset.pattern.permute.xlu0 75
        %1245 = vperm.xlu0 %1244, %v417
        %v1246 = vpop.permute.xlu0 %1245
        %v1248 = vlaneseq
        %v1249 = vshrl.u32 %v1248, 7
        %v1250 = vsub.s32 0, %v1249
        %v1251 = vrot.slane %v1243, %v1250
        %v1252 = vmul.f32 %v1246, %v1251
        %v1253 = vmax.f32 %v1242, %v1252
        %v1254 = vld [vmem:[%s298 + $0x4c] sm:$0x1]
        %1255 = vset.pattern.permute.xlu0 76
        %1256 = vperm.xlu0 %1255, %v417
        %v1257 = vpop.permute.xlu0 %1256
        %v1259 = vlaneseq
        %v1260 = vshrl.u32 %v1259, 7
        %v1261 = vsub.s32 0, %v1260
        %v1262 = vrot.slane %v1254, %v1261
        %v1263 = vmul.f32 %v1257, %v1262
        %v1264 = vmax.f32 %v1253, %v1263
        %v1265 = vld [vmem:[%s298 + $0x4d] sm:$0x1]
        %1266 = vset.pattern.permute.xlu0 77
        %1267 = vperm.xlu0 %1266, %v417
        %v1268 = vpop.permute.xlu0 %1267
        %v1270 = vlaneseq
        %v1271 = vshrl.u32 %v1270, 7
        %v1272 = vsub.s32 0, %v1271
        %v1273 = vrot.slane %v1265, %v1272
        %v1274 = vmul.f32 %v1268, %v1273
        %v1275 = vmax.f32 %v1264, %v1274
        %v1276 = vld [vmem:[%s298 + $0x4e] sm:$0x1]
        %1277 = vset.pattern.permute.xlu0 78
        %1278 = vperm.xlu0 %1277, %v417
        %v1279 = vpop.permute.xlu0 %1278
        %v1281 = vlaneseq
        %v1282 = vshrl.u32 %v1281, 7
        %v1283 = vsub.s32 0, %v1282
        %v1284 = vrot.slane %v1276, %v1283
        %v1285 = vmul.f32 %v1279, %v1284
        %v1286 = vmax.f32 %v1275, %v1285
        %v1287 = vld [vmem:[%s298 + $0x4f] sm:$0x1]
        %1288 = vset.pattern.permute.xlu0 79
        %1289 = vperm.xlu0 %1288, %v417
        %v1290 = vpop.permute.xlu0 %1289
        %v1292 = vlaneseq
        %v1293 = vshrl.u32 %v1292, 7
        %v1294 = vsub.s32 0, %v1293
        %v1295 = vrot.slane %v1287, %v1294
        %v1296 = vmul.f32 %v1290, %v1295
        %v1297 = vmax.f32 %v1286, %v1296
        %v1298 = vld [vmem:[%s298 + $0x50] sm:$0x1]
        %1299 = vset.pattern.permute.xlu0 80
        %1300 = vperm.xlu0 %1299, %v417
        %v1301 = vpop.permute.xlu0 %1300
        %v1303 = vlaneseq
        %v1304 = vshrl.u32 %v1303, 7
        %v1305 = vsub.s32 0, %v1304
        %v1306 = vrot.slane %v1298, %v1305
        %v1307 = vmul.f32 %v1301, %v1306
        %v1308 = vmax.f32 %v1297, %v1307
        %v1309 = vld [vmem:[%s298 + $0x51] sm:$0x1]
        %1310 = vset.pattern.permute.xlu0 81
        %1311 = vperm.xlu0 %1310, %v417
        %v1312 = vpop.permute.xlu0 %1311
        %v1314 = vlaneseq
        %v1315 = vshrl.u32 %v1314, 7
        %v1316 = vsub.s32 0, %v1315
        %v1317 = vrot.slane %v1309, %v1316
        %v1318 = vmul.f32 %v1312, %v1317
        %v1319 = vmax.f32 %v1308, %v1318
        %v1320 = vld [vmem:[%s298 + $0x52] sm:$0x1]
        %1321 = vset.pattern.permute.xlu0 82
        %1322 = vperm.xlu0 %1321, %v417
        %v1323 = vpop.permute.xlu0 %1322
        %v1325 = vlaneseq
        %v1326 = vshrl.u32 %v1325, 7
        %v1327 = vsub.s32 0, %v1326
        %v1328 = vrot.slane %v1320, %v1327
        %v1329 = vmul.f32 %v1323, %v1328
        %v1330 = vmax.f32 %v1319, %v1329
        %v1331 = vld [vmem:[%s298 + $0x53] sm:$0x1]
        %1332 = vset.pattern.permute.xlu0 83
        %1333 = vperm.xlu0 %1332, %v417
        %v1334 = vpop.permute.xlu0 %1333
        %v1336 = vlaneseq
        %v1337 = vshrl.u32 %v1336, 7
        %v1338 = vsub.s32 0, %v1337
        %v1339 = vrot.slane %v1331, %v1338
        %v1340 = vmul.f32 %v1334, %v1339
        %v1341 = vmax.f32 %v1330, %v1340
        %v1342 = vld [vmem:[%s298 + $0x54] sm:$0x1]
        %1343 = vset.pattern.permute.xlu0 84
        %1344 = vperm.xlu0 %1343, %v417
        %v1345 = vpop.permute.xlu0 %1344
        %v1347 = vlaneseq
        %v1348 = vshrl.u32 %v1347, 7
        %v1349 = vsub.s32 0, %v1348
        %v1350 = vrot.slane %v1342, %v1349
        %v1351 = vmul.f32 %v1345, %v1350
        %v1352 = vmax.f32 %v1341, %v1351
        %v1353 = vld [vmem:[%s298 + $0x55] sm:$0x1]
        %1354 = vset.pattern.permute.xlu0 85
        %1355 = vperm.xlu0 %1354, %v417
        %v1356 = vpop.permute.xlu0 %1355
        %v1358 = vlaneseq
        %v1359 = vshrl.u32 %v1358, 7
        %v1360 = vsub.s32 0, %v1359
        %v1361 = vrot.slane %v1353, %v1360
        %v1362 = vmul.f32 %v1356, %v1361
        %v1363 = vmax.f32 %v1352, %v1362
        %v1364 = vld [vmem:[%s298 + $0x56] sm:$0x1]
        %1365 = vset.pattern.permute.xlu0 86
        %1366 = vperm.xlu0 %1365, %v417
        %v1367 = vpop.permute.xlu0 %1366
        %v1369 = vlaneseq
        %v1370 = vshrl.u32 %v1369, 7
        %v1371 = vsub.s32 0, %v1370
        %v1372 = vrot.slane %v1364, %v1371
        %v1373 = vmul.f32 %v1367, %v1372
        %v1374 = vmax.f32 %v1363, %v1373
        %v1375 = vld [vmem:[%s298 + $0x57] sm:$0x1]
        %1376 = vset.pattern.permute.xlu0 87
        %1377 = vperm.xlu0 %1376, %v417
        %v1378 = vpop.permute.xlu0 %1377
        %v1380 = vlaneseq
        %v1381 = vshrl.u32 %v1380, 7
        %v1382 = vsub.s32 0, %v1381
        %v1383 = vrot.slane %v1375, %v1382
        %v1384 = vmul.f32 %v1378, %v1383
        %v1385 = vmax.f32 %v1374, %v1384
        %v1386 = vld [vmem:[%s298 + $0x58] sm:$0x1]
        %1387 = vset.pattern.permute.xlu0 88
        %1388 = vperm.xlu0 %1387, %v417
        %v1389 = vpop.permute.xlu0 %1388
        %v1391 = vlaneseq
        %v1392 = vshrl.u32 %v1391, 7
        %v1393 = vsub.s32 0, %v1392
        %v1394 = vrot.slane %v1386, %v1393
        %v1395 = vmul.f32 %v1389, %v1394
        %v1396 = vmax.f32 %v1385, %v1395
        %v1397 = vld [vmem:[%s298 + $0x59] sm:$0x1]
        %1398 = vset.pattern.permute.xlu0 89
        %1399 = vperm.xlu0 %1398, %v417
        %v1400 = vpop.permute.xlu0 %1399
        %v1402 = vlaneseq
        %v1403 = vshrl.u32 %v1402, 7
        %v1404 = vsub.s32 0, %v1403
        %v1405 = vrot.slane %v1397, %v1404
        %v1406 = vmul.f32 %v1400, %v1405
        %v1407 = vmax.f32 %v1396, %v1406
        %v1408 = vld [vmem:[%s298 + $0x5a] sm:$0x1]
        %1409 = vset.pattern.permute.xlu0 90
        %1410 = vperm.xlu0 %1409, %v417
        %v1411 = vpop.permute.xlu0 %1410
        %v1413 = vlaneseq
        %v1414 = vshrl.u32 %v1413, 7
        %v1415 = vsub.s32 0, %v1414
        %v1416 = vrot.slane %v1408, %v1415
        %v1417 = vmul.f32 %v1411, %v1416
        %v1418 = vmax.f32 %v1407, %v1417
        %v1419 = vld [vmem:[%s298 + $0x5b] sm:$0x1]
        %1420 = vset.pattern.permute.xlu0 91
        %1421 = vperm.xlu0 %1420, %v417
        %v1422 = vpop.permute.xlu0 %1421
        %v1424 = vlaneseq
        %v1425 = vshrl.u32 %v1424, 7
        %v1426 = vsub.s32 0, %v1425
        %v1427 = vrot.slane %v1419, %v1426
        %v1428 = vmul.f32 %v1422, %v1427
        %v1429 = vmax.f32 %v1418, %v1428
        %v1430 = vld [vmem:[%s298 + $0x5c] sm:$0x1]
        %1431 = vset.pattern.permute.xlu0 92
        %1432 = vperm.xlu0 %1431, %v417
        %v1433 = vpop.permute.xlu0 %1432
        %v1435 = vlaneseq
        %v1436 = vshrl.u32 %v1435, 7
        %v1437 = vsub.s32 0, %v1436
        %v1438 = vrot.slane %v1430, %v1437
        %v1439 = vmul.f32 %v1433, %v1438
        %v1440 = vmax.f32 %v1429, %v1439
        %v1441 = vld [vmem:[%s298 + $0x5d] sm:$0x1]
        %1442 = vset.pattern.permute.xlu0 93
        %1443 = vperm.xlu0 %1442, %v417
        %v1444 = vpop.permute.xlu0 %1443
        %v1446 = vlaneseq
        %v1447 = vshrl.u32 %v1446, 7
        %v1448 = vsub.s32 0, %v1447
        %v1449 = vrot.slane %v1441, %v1448
        %v1450 = vmul.f32 %v1444, %v1449
        %v1451 = vmax.f32 %v1440, %v1450
        %v1452 = vld [vmem:[%s298 + $0x5e] sm:$0x1]
        %1453 = vset.pattern.permute.xlu0 94
        %1454 = vperm.xlu0 %1453, %v417
        %v1455 = vpop.permute.xlu0 %1454
        %v1457 = vlaneseq
        %v1458 = vshrl.u32 %v1457, 7
        %v1459 = vsub.s32 0, %v1458
        %v1460 = vrot.slane %v1452, %v1459
        %v1461 = vmul.f32 %v1455, %v1460
        %v1462 = vmax.f32 %v1451, %v1461
        %v1463 = vld [vmem:[%s298 + $0x5f] sm:$0x1]
        %1464 = vset.pattern.permute.xlu0 95
        %1465 = vperm.xlu0 %1464, %v417
        %v1466 = vpop.permute.xlu0 %1465
        %v1468 = vlaneseq
        %v1469 = vshrl.u32 %v1468, 7
        %v1470 = vsub.s32 0, %v1469
        %v1471 = vrot.slane %v1463, %v1470
        %v1472 = vmul.f32 %v1466, %v1471
        %v1473 = vmax.f32 %v1462, %v1472
        %v1474 = vld [vmem:[%s298 + $0x60] sm:$0x1]
        %1475 = vset.pattern.permute.xlu0 96
        %1476 = vperm.xlu0 %1475, %v417
        %v1477 = vpop.permute.xlu0 %1476
        %v1479 = vlaneseq
        %v1480 = vshrl.u32 %v1479, 7
        %v1481 = vsub.s32 0, %v1480
        %v1482 = vrot.slane %v1474, %v1481
        %v1483 = vmul.f32 %v1477, %v1482
        %v1484 = vmax.f32 %v1473, %v1483
        %v1485 = vld [vmem:[%s298 + $0x61] sm:$0x1]
        %1486 = vset.pattern.permute.xlu0 97
        %1487 = vperm.xlu0 %1486, %v417
        %v1488 = vpop.permute.xlu0 %1487
        %v1490 = vlaneseq
        %v1491 = vshrl.u32 %v1490, 7
        %v1492 = vsub.s32 0, %v1491
        %v1493 = vrot.slane %v1485, %v1492
        %v1494 = vmul.f32 %v1488, %v1493
        %v1495 = vmax.f32 %v1484, %v1494
        %v1496 = vld [vmem:[%s298 + $0x62] sm:$0x1]
        %1497 = vset.pattern.permute.xlu0 98
        %1498 = vperm.xlu0 %1497, %v417
        %v1499 = vpop.permute.xlu0 %1498
        %v1501 = vlaneseq
        %v1502 = vshrl.u32 %v1501, 7
        %v1503 = vsub.s32 0, %v1502
        %v1504 = vrot.slane %v1496, %v1503
        %v1505 = vmul.f32 %v1499, %v1504
        %v1506 = vmax.f32 %v1495, %v1505
        %v1507 = vld [vmem:[%s298 + $0x63] sm:$0x1]
        %1508 = vset.pattern.permute.xlu0 99
        %1509 = vperm.xlu0 %1508, %v417
        %v1510 = vpop.permute.xlu0 %1509
        %v1512 = vlaneseq
        %v1513 = vshrl.u32 %v1512, 7
        %v1514 = vsub.s32 0, %v1513
        %v1515 = vrot.slane %v1507, %v1514
        %v1516 = vmul.f32 %v1510, %v1515
        %v1517 = vmax.f32 %v1506, %v1516
        %v1518 = vld [vmem:[%s298 + $0x64] sm:$0x1]
        %1519 = vset.pattern.permute.xlu0 100
        %1520 = vperm.xlu0 %1519, %v417
        %v1521 = vpop.permute.xlu0 %1520
        %v1523 = vlaneseq
        %v1524 = vshrl.u32 %v1523, 7
        %v1525 = vsub.s32 0, %v1524
        %v1526 = vrot.slane %v1518, %v1525
        %v1527 = vmul.f32 %v1521, %v1526
        %v1528 = vmax.f32 %v1517, %v1527
        %v1529 = vld [vmem:[%s298 + $0x65] sm:$0x1]
        %1530 = vset.pattern.permute.xlu0 101
        %1531 = vperm.xlu0 %1530, %v417
        %v1532 = vpop.permute.xlu0 %1531
        %v1534 = vlaneseq
        %v1535 = vshrl.u32 %v1534, 7
        %v1536 = vsub.s32 0, %v1535
        %v1537 = vrot.slane %v1529, %v1536
        %v1538 = vmul.f32 %v1532, %v1537
        %v1539 = vmax.f32 %v1528, %v1538
        %v1540 = vld [vmem:[%s298 + $0x66] sm:$0x1]
        %1541 = vset.pattern.permute.xlu0 102
        %1542 = vperm.xlu0 %1541, %v417
        %v1543 = vpop.permute.xlu0 %1542
        %v1545 = vlaneseq
        %v1546 = vshrl.u32 %v1545, 7
        %v1547 = vsub.s32 0, %v1546
        %v1548 = vrot.slane %v1540, %v1547
        %v1549 = vmul.f32 %v1543, %v1548
        %v1550 = vmax.f32 %v1539, %v1549
        %v1551 = vld [vmem:[%s298 + $0x67] sm:$0x1]
        %1552 = vset.pattern.permute.xlu0 103
        %1553 = vperm.xlu0 %1552, %v417
        %v1554 = vpop.permute.xlu0 %1553
        %v1556 = vlaneseq
        %v1557 = vshrl.u32 %v1556, 7
        %v1558 = vsub.s32 0, %v1557
        %v1559 = vrot.slane %v1551, %v1558
        %v1560 = vmul.f32 %v1554, %v1559
        %v1561 = vmax.f32 %v1550, %v1560
        %v1562 = vld [vmem:[%s298 + $0x68] sm:$0x1]
        %1563 = vset.pattern.permute.xlu0 104
        %1564 = vperm.xlu0 %1563, %v417
        %v1565 = vpop.permute.xlu0 %1564
        %v1567 = vlaneseq
        %v1568 = vshrl.u32 %v1567, 7
        %v1569 = vsub.s32 0, %v1568
        %v1570 = vrot.slane %v1562, %v1569
        %v1571 = vmul.f32 %v1565, %v1570
        %v1572 = vmax.f32 %v1561, %v1571
        %v1573 = vld [vmem:[%s298 + $0x69] sm:$0x1]
        %1574 = vset.pattern.permute.xlu0 105
        %1575 = vperm.xlu0 %1574, %v417
        %v1576 = vpop.permute.xlu0 %1575
        %v1578 = vlaneseq
        %v1579 = vshrl.u32 %v1578, 7
        %v1580 = vsub.s32 0, %v1579
        %v1581 = vrot.slane %v1573, %v1580
        %v1582 = vmul.f32 %v1576, %v1581
        %v1583 = vmax.f32 %v1572, %v1582
        %v1584 = vld [vmem:[%s298 + $0x6a] sm:$0x1]
        %1585 = vset.pattern.permute.xlu0 106
        %1586 = vperm.xlu0 %1585, %v417
        %v1587 = vpop.permute.xlu0 %1586
        %v1589 = vlaneseq
        %v1590 = vshrl.u32 %v1589, 7
        %v1591 = vsub.s32 0, %v1590
        %v1592 = vrot.slane %v1584, %v1591
        %v1593 = vmul.f32 %v1587, %v1592
        %v1594 = vmax.f32 %v1583, %v1593
        %v1595 = vld [vmem:[%s298 + $0x6b] sm:$0x1]
        %1596 = vset.pattern.permute.xlu0 107
        %1597 = vperm.xlu0 %1596, %v417
        %v1598 = vpop.permute.xlu0 %1597
        %v1600 = vlaneseq
        %v1601 = vshrl.u32 %v1600, 7
        %v1602 = vsub.s32 0, %v1601
        %v1603 = vrot.slane %v1595, %v1602
        %v1604 = vmul.f32 %v1598, %v1603
        %v1605 = vmax.f32 %v1594, %v1604
        %v1606 = vld [vmem:[%s298 + $0x6c] sm:$0x1]
        %1607 = vset.pattern.permute.xlu0 108
        %1608 = vperm.xlu0 %1607, %v417
        %v1609 = vpop.permute.xlu0 %1608
        %v1611 = vlaneseq
        %v1612 = vshrl.u32 %v1611, 7
        %v1613 = vsub.s32 0, %v1612
        %v1614 = vrot.slane %v1606, %v1613
        %v1615 = vmul.f32 %v1609, %v1614
        %v1616 = vmax.f32 %v1605, %v1615
        %v1617 = vld [vmem:[%s298 + $0x6d] sm:$0x1]
        %1618 = vset.pattern.permute.xlu0 109
        %1619 = vperm.xlu0 %1618, %v417
        %v1620 = vpop.permute.xlu0 %1619
        %v1622 = vlaneseq
        %v1623 = vshrl.u32 %v1622, 7
        %v1624 = vsub.s32 0, %v1623
        %v1625 = vrot.slane %v1617, %v1624
        %v1626 = vmul.f32 %v1620, %v1625
        %v1627 = vmax.f32 %v1616, %v1626
        %v1628 = vld [vmem:[%s298 + $0x6e] sm:$0x1]
        %1629 = vset.pattern.permute.xlu0 110
        %1630 = vperm.xlu0 %1629, %v417
        %v1631 = vpop.permute.xlu0 %1630
        %v1633 = vlaneseq
        %v1634 = vshrl.u32 %v1633, 7
        %v1635 = vsub.s32 0, %v1634
        %v1636 = vrot.slane %v1628, %v1635
        %v1637 = vmul.f32 %v1631, %v1636
        %v1638 = vmax.f32 %v1627, %v1637
        %v1639 = vld [vmem:[%s298 + $0x6f] sm:$0x1]
        %1640 = vset.pattern.permute.xlu0 111
        %1641 = vperm.xlu0 %1640, %v417
        %v1642 = vpop.permute.xlu0 %1641
        %v1644 = vlaneseq
        %v1645 = vshrl.u32 %v1644, 7
        %v1646 = vsub.s32 0, %v1645
        %v1647 = vrot.slane %v1639, %v1646
        %v1648 = vmul.f32 %v1642, %v1647
        %v1649 = vmax.f32 %v1638, %v1648
        %v1650 = vld [vmem:[%s298 + $0x70] sm:$0x1]
        %1651 = vset.pattern.permute.xlu0 112
        %1652 = vperm.xlu0 %1651, %v417
        %v1653 = vpop.permute.xlu0 %1652
        %v1655 = vlaneseq
        %v1656 = vshrl.u32 %v1655, 7
        %v1657 = vsub.s32 0, %v1656
        %v1658 = vrot.slane %v1650, %v1657
        %v1659 = vmul.f32 %v1653, %v1658
        %v1660 = vmax.f32 %v1649, %v1659
        %v1661 = vld [vmem:[%s298 + $0x71] sm:$0x1]
        %1662 = vset.pattern.permute.xlu0 113
        %1663 = vperm.xlu0 %1662, %v417
        %v1664 = vpop.permute.xlu0 %1663
        %v1666 = vlaneseq
        %v1667 = vshrl.u32 %v1666, 7
        %v1668 = vsub.s32 0, %v1667
        %v1669 = vrot.slane %v1661, %v1668
        %v1670 = vmul.f32 %v1664, %v1669
        %v1671 = vmax.f32 %v1660, %v1670
        %v1672 = vld [vmem:[%s298 + $0x72] sm:$0x1]
        %1673 = vset.pattern.permute.xlu0 114
        %1674 = vperm.xlu0 %1673, %v417
        %v1675 = vpop.permute.xlu0 %1674
        %v1677 = vlaneseq
        %v1678 = vshrl.u32 %v1677, 7
        %v1679 = vsub.s32 0, %v1678
        %v1680 = vrot.slane %v1672, %v1679
        %v1681 = vmul.f32 %v1675, %v1680
        %v1682 = vmax.f32 %v1671, %v1681
        %v1683 = vld [vmem:[%s298 + $0x73] sm:$0x1]
        %1684 = vset.pattern.permute.xlu0 115
        %1685 = vperm.xlu0 %1684, %v417
        %v1686 = vpop.permute.xlu0 %1685
        %v1688 = vlaneseq
        %v1689 = vshrl.u32 %v1688, 7
        %v1690 = vsub.s32 0, %v1689
        %v1691 = vrot.slane %v1683, %v1690
        %v1692 = vmul.f32 %v1686, %v1691
        %v1693 = vmax.f32 %v1682, %v1692
        %v1694 = vld [vmem:[%s298 + $0x74] sm:$0x1]
        %1695 = vset.pattern.permute.xlu0 116
        %1696 = vperm.xlu0 %1695, %v417
        %v1697 = vpop.permute.xlu0 %1696
        %v1699 = vlaneseq
        %v1700 = vshrl.u32 %v1699, 7
        %v1701 = vsub.s32 0, %v1700
        %v1702 = vrot.slane %v1694, %v1701
        %v1703 = vmul.f32 %v1697, %v1702
        %v1704 = vmax.f32 %v1693, %v1703
        %v1705 = vld [vmem:[%s298 + $0x75] sm:$0x1]
        %1706 = vset.pattern.permute.xlu0 117
        %1707 = vperm.xlu0 %1706, %v417
        %v1708 = vpop.permute.xlu0 %1707
        %v1710 = vlaneseq
        %v1711 = vshrl.u32 %v1710, 7
        %v1712 = vsub.s32 0, %v1711
        %v1713 = vrot.slane %v1705, %v1712
        %v1714 = vmul.f32 %v1708, %v1713
        %v1715 = vmax.f32 %v1704, %v1714
        %v1716 = vld [vmem:[%s298 + $0x76] sm:$0x1]
        %1717 = vset.pattern.permute.xlu0 118
        %1718 = vperm.xlu0 %1717, %v417
        %v1719 = vpop.permute.xlu0 %1718
        %v1721 = vlaneseq
        %v1722 = vshrl.u32 %v1721, 7
        %v1723 = vsub.s32 0, %v1722
        %v1724 = vrot.slane %v1716, %v1723
        %v1725 = vmul.f32 %v1719, %v1724
        %v1726 = vmax.f32 %v1715, %v1725
        %v1727 = vld [vmem:[%s298 + $0x77] sm:$0x1]
        %1728 = vset.pattern.permute.xlu0 119
        %1729 = vperm.xlu0 %1728, %v417
        %v1730 = vpop.permute.xlu0 %1729
        %v1732 = vlaneseq
        %v1733 = vshrl.u32 %v1732, 7
        %v1734 = vsub.s32 0, %v1733
        %v1735 = vrot.slane %v1727, %v1734
        %v1736 = vmul.f32 %v1730, %v1735
        %v1737 = vmax.f32 %v1726, %v1736
        %v1738 = vld [vmem:[%s298 + $0x78] sm:$0x1]
        %1739 = vset.pattern.permute.xlu0 120
        %1740 = vperm.xlu0 %1739, %v417
        %v1741 = vpop.permute.xlu0 %1740
        %v1743 = vlaneseq
        %v1744 = vshrl.u32 %v1743, 7
        %v1745 = vsub.s32 0, %v1744
        %v1746 = vrot.slane %v1738, %v1745
        %v1747 = vmul.f32 %v1741, %v1746
        %v1748 = vmax.f32 %v1737, %v1747
        %v1749 = vld [vmem:[%s298 + $0x79] sm:$0x1]
        %1750 = vset.pattern.permute.xlu0 121
        %1751 = vperm.xlu0 %1750, %v417
        %v1752 = vpop.permute.xlu0 %1751
        %v1754 = vlaneseq
        %v1755 = vshrl.u32 %v1754, 7
        %v1756 = vsub.s32 0, %v1755
        %v1757 = vrot.slane %v1749, %v1756
        %v1758 = vmul.f32 %v1752, %v1757
        %v1759 = vmax.f32 %v1748, %v1758
        %v1760 = vld [vmem:[%s298 + $0x7a] sm:$0x1]
        %1761 = vset.pattern.permute.xlu0 122
        %1762 = vperm.xlu0 %1761, %v417
        %v1763 = vpop.permute.xlu0 %1762
        %v1765 = vlaneseq
        %v1766 = vshrl.u32 %v1765, 7
        %v1767 = vsub.s32 0, %v1766
        %v1768 = vrot.slane %v1760, %v1767
        %v1769 = vmul.f32 %v1763, %v1768
        %v1770 = vmax.f32 %v1759, %v1769
        %v1771 = vld [vmem:[%s298 + $0x7b] sm:$0x1]
        %1772 = vset.pattern.permute.xlu0 123
        %1773 = vperm.xlu0 %1772, %v417
        %v1774 = vpop.permute.xlu0 %1773
        %v1776 = vlaneseq
        %v1777 = vshrl.u32 %v1776, 7
        %v1778 = vsub.s32 0, %v1777
        %v1779 = vrot.slane %v1771, %v1778
        %v1780 = vmul.f32 %v1774, %v1779
        %v1781 = vmax.f32 %v1770, %v1780
        %v1782 = vld [vmem:[%s298 + $0x7c] sm:$0x1]
        %1783 = vset.pattern.permute.xlu0 124
        %1784 = vperm.xlu0 %1783, %v417
        %v1785 = vpop.permute.xlu0 %1784
        %v1787 = vlaneseq
        %v1788 = vshrl.u32 %v1787, 7
        %v1789 = vsub.s32 0, %v1788
        %v1790 = vrot.slane %v1782, %v1789
        %v1791 = vmul.f32 %v1785, %v1790
        %v1792 = vmax.f32 %v1781, %v1791
        %v1793 = vld [vmem:[%s298 + $0x7d] sm:$0x1]
        %1794 = vset.pattern.permute.xlu0 125
        %1795 = vperm.xlu0 %1794, %v417
        %v1796 = vpop.permute.xlu0 %1795
        %v1798 = vlaneseq
        %v1799 = vshrl.u32 %v1798, 7
        %v1800 = vsub.s32 0, %v1799
        %v1801 = vrot.slane %v1793, %v1800
        %v1802 = vmul.f32 %v1796, %v1801
        %v1803 = vmax.f32 %v1792, %v1802
        %v1804 = vld [vmem:[%s298 + $0x7e] sm:$0x1]
        %1805 = vset.pattern.permute.xlu0 126
        %1806 = vperm.xlu0 %1805, %v417
        %v1807 = vpop.permute.xlu0 %1806
        %v1809 = vlaneseq
        %v1810 = vshrl.u32 %v1809, 7
        %v1811 = vsub.s32 0, %v1810
        %v1812 = vrot.slane %v1804, %v1811
        %v1813 = vmul.f32 %v1807, %v1812
        %v1814 = vmax.f32 %v1803, %v1813
        %v1815 = vld [vmem:[%s298 + $0x7f] sm:$0x1]
        %1816 = vset.pattern.permute.xlu0 127
        %1817 = vperm.xlu0 %1816, %v417
        %v1818 = vpop.permute.xlu0 %1817
        %v1820 = vlaneseq
        %v1821 = vshrl.u32 %v1820, 7
        %v1822 = vsub.s32 0, %v1821
        %v1823 = vrot.slane %v1815, %v1822
        %v1824 = vmul.f32 %v1818, %v1823
        %v1825 = vmax.f32 %v1814, %v1824
        %v1826 = vld [vmem:[#allocation2] sm:$0xff]
        %v1827 = vmax.f32 %v1826, %v1825
        %1828 = vst.msk [vmem:[#allocation2] sm:$0xff] %vm415, %v1827
        %p1829 = scmp.eq.s32.totalorder %s29, 1
        // Predicated region
        $region37: #{tpu_custom_call.1} parent=31 // pred_check
          %p1830 = pneg %p1829
        $region38: #{tpu_custom_call.1} parent=31 // pred_check_branch
          %1832 = sbr.rel (%p1830) target = $region40
        $region39: #{tpu_custom_call.1} parent=31 // pred_region
          %v1833 = vld [vmem:[%s318] sm:$0xff]
          %v1834 = vrcp.pop %v1833
          %v1835 = vld [vmem:[#allocation2] sm:$0xff]
          %1836 = vst.msk [vmem:[%s282] sm:$0xff] %vm415, %v1835
          %v1837 = vld [vmem:[#allocation3] sm:$0xff]
          %1839 = vset.pattern.permute.xlu0 0
          %1840 = vperm.xlu0 %1839, %v1834
          %v1841 = vpop.permute.xlu0 %1840
          %v1843 = vmul.f32 %v1837, %v1841
          %1844 = vst.msk [vmem:[%s289] sm:$0xff] %vm415, %v1843
        $region40: #{tpu_custom_call.1} parent=31 // pred_fallthru
          _
        %s1845 = sand.u32 %s137, 1
        %s1846 = scalar_lea.sflag [#allocation5], %s1845
        %s1847 = sand.u32 %s137, 1
        %s1848 = smul.addr %s1847, 8
        %s1849 = scalar_lea.vmem [#allocation4], %s1848
        %s1850 = sand.u32 %s165, 1
        %s1851 = scalar_lea.sflag [#allocation7], %s1850
        %s1852 = sand.u32 %s165, 1
        %s1853 = smul.addr %s1852, 8
        %s1854 = scalar_lea.vmem [#allocation6], %s1853
        // Predicated region
        $region41: #{tpu_custom_call.1} parent=31 // pred_check
          %p1855 = pneg %p147
        $region42: #{tpu_custom_call.1} parent=31 // pred_check_branch
          %1857 = sbr.rel (%p1855) target = $region44
        $region43: #{tpu_custom_call.1} parent=31 // pred_region
          %s1859 = ssub.s32 128, 128
          %1860 = vsyncadd %s1846, %s1859
          %s1861 = sadd.s32 %s28, %s27
          %s1862 = smul.addr %s1861, 128
          %s1863 = scalar_lea.hbm %s3, %s1862
          %s1865 = sshll.u32 %s1849, 4
          %s1866 = int_to_ptr.vmem [resolvable:$true] %s1865
          %1868 = dma.vmem_to_hbm [thread:$0]  %s1866, 128, %s1863, %s1846
        $region44: #{tpu_custom_call.1} parent=31 // pred_fallthru
          _
        // Predicated region
        $region45: #{tpu_custom_call.1} parent=31 // pred_check
          %p1869 = pneg %p175
        $region46: #{tpu_custom_call.1} parent=31 // pred_check_branch
          %1871 = sbr.rel (%p1869) target = $region48
        $region47: #{tpu_custom_call.1} parent=31 // pred_region
          %s1873 = ssub.s32 128, 128
          %1874 = vsyncadd %s1851, %s1873
          %s1875 = sadd.s32 %s28, %s27
          %s1876 = smul.addr %s1875, 128
          %s1877 = scalar_lea.hbm %s4, %s1876
          %s1879 = sshll.u32 %s1854, 4
          %s1880 = int_to_ptr.vmem [resolvable:$true] %s1879
          %1882 = dma.vmem_to_hbm [thread:$0]  %s1880, 128, %s1877, %s1851
        $region48: #{tpu_custom_call.1} parent=31 // pred_fallthru
          _
      $region32: #{tpu_custom_call.1} parent=5 // pred_fallthru
        _
      %p1883 = scmp.le.s32.totalorder 2, %s17
      // Predicated region
      $region49: #{tpu_custom_call.1} parent=5 // pred_check
        %p1884 = pneg %p1883
      $region50: #{tpu_custom_call.1} parent=5 // pred_check_branch
        %1886 = sbr.rel (%p1884) target = $region52
      $region51: #{tpu_custom_call.1} parent=5 // pred_region
        %s1887 = ssub.s32 %s17, 2
        // Predicated region
        $region53: #{tpu_custom_call.1} parent=51 // pred_check
          %p1888 = pneg %p153
        $region54: #{tpu_custom_call.1} parent=51 // pred_check_branch
          %1890 = sbr.rel (%p1888) target = $region56
        $region55: #{tpu_custom_call.1} parent=51 // pred_region
          %s1891 = sand.u32 %s138, 1
          %s1892 = scalar_lea.sflag [#allocation5], %s1891
          %s1893 = sand.u32 %s138, 1
          %s1894 = smul.addr %s1893, 8
          %s1895 = scalar_lea.vmem [#allocation4], %s1894
          %1896 = dma.done %s1892, 128
        $region56: #{tpu_custom_call.1} parent=51 // pred_fallthru
          _
        // Predicated region
        $region57: #{tpu_custom_call.1} parent=51 // pred_check
          %p1897 = pneg %p181
        $region58: #{tpu_custom_call.1} parent=51 // pred_check_branch
          %1899 = sbr.rel (%p1897) target = $region60
        $region59: #{tpu_custom_call.1} parent=51 // pred_region
          %s1900 = sand.u32 %s166, 1
          %s1901 = scalar_lea.sflag [#allocation7], %s1900
          %s1902 = sand.u32 %s166, 1
          %s1903 = smul.addr %s1902, 8
          %s1904 = scalar_lea.vmem [#allocation6], %s1903
          %1905 = dma.done %s1901, 128
        $region60: #{tpu_custom_call.1} parent=51 // pred_fallthru
          _
      $region52: #{tpu_custom_call.1} parent=5 // pred_fallthru
        _
    $region6: #{tpu_custom_call.1} parent=1 // loop_footer
      %s21 = sadd.s32 1, %s17
    $region7: #{tpu_custom_call.1} parent=1 // loop_footer_branch
      %16 = sbr.rel target = $region3
    $region8: #{tpu_custom_call.1} parent=1 // loop_exit
      _
    %1906 = vsyncpa [#allocation5], 1
    %s1907 = scalar_lea.sflag [#allocation5], 1
    %1908 = vsyncpa %s1907, 1
    %1909 = vsyncpa [#allocation7], 1
    %s1910 = scalar_lea.sflag [#allocation7], 1
    %1911 = vsyncpa %s1910, 1

</llo_original>
